<compile_context>
chip_gen: v7x
topology: tpu7x:2x2x1
jax: 0.10.0
libtpu: 0.0.40
codegen_flags: <defaults>
</compile_context>

<pallas_src>
import jax
import jax.numpy as jnp
from jax.experimental import pallas as pl
from jax.experimental.pallas import tpu as pltpu


LANE = 128


def _round_up(n, m):
    return (n + m - 1) // m * m


# ----------------------------------------------------------------------------
# Kernel
# ----------------------------------------------------------------------------
def lstm_anomaly_kernel(x_ref,        # (T, TB, Dp)   f32   time-major input
                        wih0_ref,     # (Dp, 4Hp)     bf16  Wih_l0, gates [i,f,o,g]
                        b0_ref,       # (1, 4Hp)      f32   b_ih_l0 + b_hh_l0
                        wbig_ref,     # (Hp, 8Hp)     bf16  [Whh_l0 | Wih_l1]
                        whh1_ref,     # (Hp, 4Hp)     bf16  Whh_l1
                        b1_ref,       # (1, 4Hp)      f32   b_ih_l1 + b_hh_l1
                        wfc_ref,      # (Hp, Dp)      bf16
                        bfc_ref,      # (1, Dp)       f32
                        out_ref,      # (TB, Dp)      f32
                        pg_ref):      # (T, TB, 4Hp)  f32   scratch: layer-0 pre-gates
    T, TB, Dp = x_ref.shape
    Hp4 = wih0_ref.shape[1]
    Hp = Hp4 // 4
    H3 = 3 * Hp
    mxu_dt = wih0_ref.dtype

    # ---- Phase A: batched layer-0 input projection over ALL timesteps -------
    # One big MXU matmul instead of T tiny ones; bias folded in here.
    x_all = x_ref[...].reshape(T * TB, Dp).astype(mxu_dt)
    pg = jnp.dot(x_all, wih0_ref[...], preferred_element_type=jnp.float32)
    pg_ref[...] = (pg + b0_ref[...]).reshape(T, TB, Hp4)

    # Hoisted out of the time loop.
    b1 = jnp.broadcast_to(b1_ref[...], (TB, Hp4))
    wbig = wbig_ref[...]
    whh1 = whh1_ref[...]

    def nonlin(gates, c):
        # Gate order [i, f, o, g]: one contiguous sigmoid slab + one tanh slab.
        ifo = jax.nn.sigmoid(gates[:, :H3])
        g = jnp.tanh(gates[:, H3:])
        c_new = ifo[:, Hp:2 * Hp] * c + ifo[:, :Hp] * g      # f*c + i*g
        h_new = ifo[:, 2 * Hp:] * jnp.tanh(c_new)            # o*tanh(c)
        return h_new, c_new

    zeros = jnp.zeros((TB, Hp), jnp.float32)

    # Layer 0, t = 0: h0 = c0 = 0, so the recurrent term vanishes.
    h0, c0 = nonlin(pg_ref[0], zeros)

    # ---- Phase B: 2-stage wavefront over time --------------------------------
    # Layer 1 at step t-1 and layer 0 at step t only read the loop carry, so
    # the two matmuls below are independent and overlap on the MXU.
    def step(t, carry):
        h0, c0, h1, c1 = carry
        mm = jnp.dot(h0.astype(mxu_dt), wbig,
                     preferred_element_type=jnp.float32)     # (TB, 8Hp)
        mm2 = jnp.dot(h1.astype(mxu_dt), whh1,
                      preferred_element_type=jnp.float32)    # (TB, 4Hp)
        h1n, c1n = nonlin(mm[:, Hp4:] + mm2 + b1, c1)        # layer 1, step t-1
        h0n, c0n = nonlin(pg_ref[t] + mm[:, :Hp4], c0)       # layer 0, step t
        return (h0n, c0n, h1n, c1n)

    h0, c0, h1, c1 = jax.lax.fori_loop(
        1, T, step, (h0, c0, zeros, zeros), unroll=True)

    # Drain: layer 1 at step T-1.
    mm = jnp.dot(h0.astype(mxu_dt), wbig, preferred_element_type=jnp.float32)
    mm2 = jnp.dot(h1.astype(mxu_dt), whh1, preferred_element_type=jnp.float32)
    h1, _ = nonlin(mm[:, Hp4:] + mm2 + b1, c1)

    # FC on the last-step top-layer hidden state.
    out = (jnp.dot(h1.astype(mxu_dt), wfc_ref[...],
                   preferred_element_type=jnp.float32)
           + bfc_ref[...])
    out_ref[...] = out.astype(out_ref.dtype)


# ----------------------------------------------------------------------------
# Parameter packing (gate reorder, lane padding, weight fusion, bf16 cast)
# ----------------------------------------------------------------------------
def _reorder_pad_gates(w_t, H, Hp):
    """(K, 4H) columns in torch order [i,f,g,o] -> (K, 4Hp) in [i,f,o,g], zero-padded."""
    i, f, g, o = jnp.split(w_t, 4, axis=1)
    blocks = [jnp.pad(blk, ((0, 0), (0, Hp - H))) for blk in (i, f, o, g)]
    return jnp.concatenate(blocks, axis=1)


def pack_params(p, input_size, hidden_size, mxu_dtype=jnp.bfloat16):
    D, H = input_size, hidden_size
    Dp, Hp = _round_up(D, LANE), _round_up(H, LANE)

    def gate_mat(w, in_dim, in_pad):
        # w: (4H, in_dim) torch layout -> (in_pad, 4Hp), gates [i,f,o,g], zero-padded.
        m = _reorder_pad_gates(w.T, H, Hp)
        return jnp.pad(m, ((0, in_pad - in_dim), (0, 0)))

    wih0 = gate_mat(p["weight_ih_l0"], D, Dp).astype(mxu_dtype)       # (Dp, 4Hp)
    whh0 = gate_mat(p["weight_hh_l0"], H, Hp)                         # (Hp, 4Hp)
    wih1 = gate_mat(p["weight_ih_l1"], H, Hp)                         # (Hp, 4Hp)
    whh1 = gate_mat(p["weight_hh_l1"], H, Hp).astype(mxu_dtype)       # (Hp, 4Hp)
    wbig = jnp.concatenate([whh0, wih1], axis=1).astype(mxu_dtype)    # (Hp, 8Hp)

    b0 = _reorder_pad_gates((p["bias_ih_l0"] + p["bias_hh_l0"])[None, :],
                            H, Hp).astype(jnp.float32)
    b1 = _reorder_pad_gates((p["bias_ih_l1"] + p["bias_hh_l1"])[None, :],
                            H, Hp).astype(jnp.float32)

    wfc = jnp.pad(p["fc_weight"].T, ((0, Hp - H), (0, Dp - D))).astype(mxu_dtype)
    bfc = jnp.pad(p["fc_bias"][None, :], ((0, 0), (0, Dp - D))).astype(jnp.float32)
    return dict(wih0=wih0, b0=b0, wbig=wbig, whh1=whh1, b1=b1,
                wfc=wfc, bfc=bfc, Dp=Dp, Hp=Hp)


# ----------------------------------------------------------------------------
# Wrapper
# ----------------------------------------------------------------------------
def lstm_anomaly_detector(x, packed, *, batch_tile=8):
    """x: (B, T, D) float32; packed: output of pack_params. Returns (B, D) f32."""
    B, T, D = x.shape
    Dp, Hp = packed["Dp"], packed["Hp"]
    Bp = _round_up(B, batch_tile)

    # (B, T, D) -> time-major (T, Bp, Dp) so the kernel reads x_ref[t] per step.
    xp = jnp.pad(x.astype(jnp.float32), ((0, Bp - B), (0, 0), (0, Dp - D)))
    xp = jnp.transpose(xp, (1, 0, 2))

    args = (xp, packed["wih0"], packed["b0"], packed["wbig"],
            packed["whh1"], packed["b1"], packed["wfc"], packed["bfc"])

    def full_spec(a):
        return pl.BlockSpec(a.shape, lambda b, _nd=a.ndim: (0,) * _nd)

    out = pl.pallas_call(
        lstm_anomaly_kernel,
        out_shape=jax.ShapeDtypeStruct((Bp, Dp), jnp.float32),
        grid=(Bp // batch_tile,),
        in_specs=[pl.BlockSpec((T, batch_tile, Dp), lambda b: (0, b, 0))]
                + [full_spec(a) for a in args[1:]],
        out_specs=pl.BlockSpec((batch_tile, Dp), lambda b: (b, 0)),
        scratch_shapes=[pltpu.VMEM((T, batch_tile, 4 * Hp), jnp.float32)],
        compiler_params=pltpu.CompilerParams(
            dimension_semantics=("parallel",)),
    )(*args)
    return out[:B, :D]


# ----------------------------------------------------------------------------
# Deterministic PyTorch-layout init + pure-JAX reference (for a sanity check)
# ----------------------------------------------------------------------------
def init_params(key, input_size, hidden_size):
    D, H = input_size, hidden_size
    k = float(H) ** -0.5
    keys = jax.random.split(key, 10)

    def u(kk, shape):
        return jax.random.uniform(kk, shape, jnp.float32, -k, k)

    return dict(
        weight_ih_l0=u(keys[0], (4 * H, D)),
        weight_hh_l0=u(keys[1], (4 * H, H)),
        bias_ih_l0=u(keys[2], (4 * H,)),
        bias_hh_l0=u(keys[3], (4 * H,)),
        weight_ih_l1=u(keys[4], (4 * H, H)),
        weight_hh_l1=u(keys[5], (4 * H, H)),
        bias_ih_l1=u(keys[6], (4 * H,)),
        bias_hh_l1=u(keys[7], (4 * H,)),
        fc_weight=u(keys[8], (D, H)),
        fc_bias=u(keys[9], (D,)),
    )


def reference_forward(x, p):
    """f32 pure-JAX replica of the PyTorch module (gate order [i,f,g,o])."""
    B, T, _ = x.shape
    H = p["weight_hh_l0"].shape[1]

    def cell(xt, h, c, w_ih, w_hh, b_ih, b_hh):
        gates = xt @ w_ih.T + h @ w_hh.T + b_ih + b_hh
        i = jax.nn.sigmoid(gates[:, 0 * H:1 * H])
        f = jax.nn.sigmoid(gates[:, 1 * H:2 * H])
        g = jnp.tanh(gates[:, 2 * H:3 * H])
        o = jax.nn.sigmoid(gates[:, 3 * H:4 * H])
        c = f * c + i * g
        return o * jnp.tanh(c), c

    h0 = c0 = h1 = c1 = jnp.zeros((B, H), jnp.float32)
    for t in range(T):
        h0, c0 = cell(x[:, t, :], h0, c0, p["weight_ih_l0"], p["weight_hh_l0"],
                      p["bias_ih_l0"], p["bias_hh_l0"])
        h1, c1 = cell(h0, h1, c1, p["weight_ih_l1"], p["weight_hh_l1"],
                      p["bias_ih_l1"], p["bias_hh_l1"])
    return h1 @ p["fc_weight"].T + p["fc_bias"]


if __name__ == "__main__":
    B, T, D, H = 2, 8, 4, 32   # batch, seq, input_size, hidden_size (num_layers=2)
    key = jax.random.PRNGKey(0)
    kx, kp = jax.random.split(key)
    x = jax.random.normal(kx, (B, T, D), jnp.float32)
    params = init_params(kp, input_size=D, hidden_size=H)

    packed = pack_params(params, input_size=D, hidden_size=H)
    out = lstm_anomaly_detector(x, packed, batch_tile=8)
    out = jax.block_until_ready(out)

    assert out.shape == (B, D) and bool(jnp.all(jnp.isfinite(out)))
    ref = reference_forward(x, params)
    err = float(jnp.max(jnp.abs(out - ref)))
    assert err < 1e-1, f"max abs err vs f32 reference = {err}"
    print("KERNEL_OK")
</pallas_src>

<mosaic_0001>
module attributes {stable_mosaic.version = 11 : i64} {
  func.func @lstm_anomaly_kernel(%arg0: i32, %arg1: memref<8x8x128xf32, #tpu.memory_space<vmem>>, %arg2: memref<128x512xbf16, #tpu.memory_space<vmem>>, %arg3: memref<1x512xf32, #tpu.memory_space<vmem>>, %arg4: memref<128x1024xbf16, #tpu.memory_space<vmem>>, %arg5: memref<128x512xbf16, #tpu.memory_space<vmem>>, %arg6: memref<1x512xf32, #tpu.memory_space<vmem>>, %arg7: memref<128x128xbf16, #tpu.memory_space<vmem>>, %arg8: memref<1x128xf32, #tpu.memory_space<vmem>>, %arg9: memref<8x128xf32, #tpu.memory_space<vmem>>, %arg10: memref<8x8x512xf32, #tpu.memory_space<vmem>>) attributes {dimension_semantics = [#tpu.dimension_semantics<parallel>], iteration_bounds = array<i64: 1>, scalar_prefetch = 0 : i64, scratch_operands = 1 : i64, tpu.core_type = #tpu.core_type<tc>, window_params = [{transform_indices = @transform_0, window_bounds = array<i64: 8, 8, 128>}, {pipeline_mode = #tpu.pipeline_mode<synchronous>, transform_indices = @transform_1, window_bounds = array<i64: 128, 512>}, {pipeline_mode = #tpu.pipeline_mode<synchronous>, transform_indices = @transform_2, window_bounds = array<i64: 1, 512>}, {pipeline_mode = #tpu.pipeline_mode<synchronous>, transform_indices = @transform_3, window_bounds = array<i64: 128, 1024>}, {pipeline_mode = #tpu.pipeline_mode<synchronous>, transform_indices = @transform_4, window_bounds = array<i64: 128, 512>}, {pipeline_mode = #tpu.pipeline_mode<synchronous>, transform_indices = @transform_5, window_bounds = array<i64: 1, 512>}, {pipeline_mode = #tpu.pipeline_mode<synchronous>, transform_indices = @transform_6, window_bounds = array<i64: 128, 128>}, {pipeline_mode = #tpu.pipeline_mode<synchronous>, transform_indices = @transform_7, window_bounds = array<i64: 1, 128>}, {transform_indices = @transform_8, window_bounds = array<i64: 8, 128>}]} {
    %c0 = arith.constant 0 : index
    %c0_0 = arith.constant 0 : index
    %c0_1 = arith.constant 0 : index
    %0 = vector.load %arg1[%c0, %c0_0, %c0_1] : memref<8x8x128xf32, #tpu.memory_space<vmem>>, vector<8x8x128xf32>
    %1 = vector.shape_cast %0 : vector<8x8x128xf32> to vector<64x128xf32>
    %2 = arith.truncf %1 : vector<64x128xf32> to vector<64x128xbf16>
    %c0_2 = arith.constant 0 : index
    %c0_3 = arith.constant 0 : index
    %3 = vector.load %arg2[%c0_2, %c0_3] : memref<128x512xbf16, #tpu.memory_space<vmem>>, vector<128x512xbf16>
    %cst = arith.constant dense<0.000000e+00> : vector<64x512xf32>
    %4 = tpu.matmul %2, %3, %cst {dimension_numbers = #tpu.dot_dimension_numbers<[1], [0], [0], [1], [0, 0, 1, 1], [], []>} : vector<64x128xbf16>, vector<128x512xbf16>, vector<64x512xf32> -> vector<64x512xf32>
    %c0_4 = arith.constant 0 : index
    %c0_5 = arith.constant 0 : index
    %5 = vector.load %arg3[%c0_4, %c0_5] : memref<1x512xf32, #tpu.memory_space<vmem>>, vector<1x512xf32>
    %6 = vector.broadcast %5 : vector<1x512xf32> to vector<64x512xf32>
    %7 = arith.addf %4, %6 : vector<64x512xf32>
    %8 = vector.shape_cast %7 : vector<64x512xf32> to vector<8x8x512xf32>
    %c0_6 = arith.constant 0 : index
    %c0_7 = arith.constant 0 : index
    %c0_8 = arith.constant 0 : index
    %9 = vector.load %arg10[%c0_6, %c0_7, %c0_8] : memref<8x8x512xf32, #tpu.memory_space<vmem>>, vector<8x8x512xf32>
    tpu.vector_store %arg10[%c0_6, %c0_7, %c0_8], %8 {strides = array<i32>} : memref<8x8x512xf32, #tpu.memory_space<vmem>>, vector<8x8x512xf32>,
    %c0_9 = arith.constant 0 : index
    %c0_10 = arith.constant 0 : index
    %10 = vector.load %arg6[%c0_9, %c0_10] : memref<1x512xf32, #tpu.memory_space<vmem>>, vector<1x512xf32>
    %11 = vector.shape_cast %10 : vector<1x512xf32> to vector<1x512xf32>
    %12 = vector.broadcast %11 : vector<1x512xf32> to vector<8x512xf32>
    %c0_11 = arith.constant 0 : index
    %c0_12 = arith.constant 0 : index
    %13 = vector.load %arg4[%c0_11, %c0_12] : memref<128x1024xbf16, #tpu.memory_space<vmem>>, vector<128x1024xbf16>
    %c0_13 = arith.constant 0 : index
    %c0_14 = arith.constant 0 : index
    %14 = vector.load %arg5[%c0_13, %c0_14] : memref<128x512xbf16, #tpu.memory_space<vmem>>, vector<128x512xbf16>
    %cst_15 = arith.constant 0.000000e+00 : f32
    %15 = vector.broadcast %cst_15 : f32 to vector<8x128xf32>
    %c0_16 = arith.constant 0 : index
    %c0_17 = arith.constant 0 : index
    %c0_18 = arith.constant 0 : index
    %16 = vector.load %arg10[%c0_16, %c0_17, %c0_18] : memref<8x8x512xf32, #tpu.memory_space<vmem>>, vector<1x8x512xf32>
    %17 = vector.shape_cast %16 : vector<1x8x512xf32> to vector<8x512xf32>
    %18 = vector.extract_strided_slice %17 {offsets = [0, 0], sizes = [8, 384], strides = [1, 1]} : vector<8x512xf32> to vector<8x384xf32>
    %19 = arith.negf %18 : vector<8x384xf32>
    %20 = math.exp %19 : vector<8x384xf32>
    %cst_19 = arith.constant 1.000000e+00 : f32
    %21 = vector.broadcast %cst_19 : f32 to vector<8x384xf32>
    %22 = arith.addf %21, %20 : vector<8x384xf32>
    %23 = arith.divf %21, %22 : vector<8x384xf32>
    %24 = vector.extract_strided_slice %17 {offsets = [0, 384], sizes = [8, 128], strides = [1, 1]} : vector<8x512xf32> to vector<8x128xf32>
    %25 = math.tanh %24 : vector<8x128xf32>
    %26 = vector.extract_strided_slice %23 {offsets = [0, 128], sizes = [8, 128], strides = [1, 1]} : vector<8x384xf32> to vector<8x128xf32>
    %27 = arith.mulf %26, %15 : vector<8x128xf32>
    %28 = vector.extract_strided_slice %23 {offsets = [0, 0], sizes = [8, 128], strides = [1, 1]} : vector<8x384xf32> to vector<8x128xf32>
    %29 = arith.mulf %28, %25 : vector<8x128xf32>
    %30 = arith.addf %27, %29 : vector<8x128xf32>
    %31 = vector.extract_strided_slice %23 {offsets = [0, 256], sizes = [8, 128], strides = [1, 1]} : vector<8x384xf32> to vector<8x128xf32>
    %32 = math.tanh %30 : vector<8x128xf32>
    %33 = arith.mulf %31, %32 : vector<8x128xf32>
    %c1_i32 = arith.constant 1 : i32
    %34 = arith.truncf %33 : vector<8x128xf32> to vector<8x128xbf16>
    %cst_20 = arith.constant dense<0.000000e+00> : vector<8x1024xf32>
    %35 = tpu.matmul %34, %13, %cst_20 {dimension_numbers = #tpu.dot_dimension_numbers<[1], [0], [0], [1], [0, 0, 1, 1], [], []>} : vector<8x128xbf16>, vector<128x1024xbf16>, vector<8x1024xf32> -> vector<8x1024xf32>
    %36 = arith.truncf %15 : vector<8x128xf32> to vector<8x128xbf16>
    %cst_21 = arith.constant dense<0.000000e+00> : vector<8x512xf32>
    %37 = tpu.matmul %36, %14, %cst_21 {dimension_numbers = #tpu.dot_dimension_numbers<[1], [0], [0], [1], [0, 0, 1, 1], [], []>} : vector<8x128xbf16>, vector<128x512xbf16>, vector<8x512xf32> -> vector<8x512xf32>
    %38 = vector.extract_strided_slice %35 {offsets = [0, 512], sizes = [8, 512], strides = [1, 1]} : vector<8x1024xf32> to vector<8x512xf32>
    %39 = arith.addf %38, %37 : vector<8x512xf32>
    %40 = arith.addf %39, %12 : vector<8x512xf32>
    %41 = vector.extract_strided_slice %40 {offsets = [0, 0], sizes = [8, 384], strides = [1, 1]} : vector<8x512xf32> to vector<8x384xf32>
    %42 = arith.negf %41 : vector<8x384xf32>
    %43 = math.exp %42 : vector<8x384xf32>
    %cst_22 = arith.constant 1.000000e+00 : f32
    %44 = vector.broadcast %cst_22 : f32 to vector<8x384xf32>
    %45 = arith.addf %44, %43 : vector<8x384xf32>
    %46 = arith.divf %44, %45 : vector<8x384xf32>
    %47 = vector.extract_strided_slice %40 {offsets = [0, 384], sizes = [8, 128], strides = [1, 1]} : vector<8x512xf32> to vector<8x128xf32>
    %48 = math.tanh %47 : vector<8x128xf32>
    %49 = vector.extract_strided_slice %46 {offsets = [0, 128], sizes = [8, 128], strides = [1, 1]} : vector<8x384xf32> to vector<8x128xf32>
    %50 = arith.mulf %49, %15 : vector<8x128xf32>
    %51 = vector.extract_strided_slice %46 {offsets = [0, 0], sizes = [8, 128], strides = [1, 1]} : vector<8x384xf32> to vector<8x128xf32>
    %52 = arith.mulf %51, %48 : vector<8x128xf32>
    %53 = arith.addf %50, %52 : vector<8x128xf32>
    %54 = vector.extract_strided_slice %46 {offsets = [0, 256], sizes = [8, 128], strides = [1, 1]} : vector<8x384xf32> to vector<8x128xf32>
    %55 = math.tanh %53 : vector<8x128xf32>
    %56 = arith.mulf %54, %55 : vector<8x128xf32>
    %57 = arith.index_cast %c1_i32 : i32 to index
    %c0_23 = arith.constant 0 : index
    %c0_24 = arith.constant 0 : index
    %58 = vector.load %arg10[%57, %c0_23, %c0_24] : memref<8x8x512xf32, #tpu.memory_space<vmem>>, vector<1x8x512xf32>
    %59 = vector.shape_cast %58 : vector<1x8x512xf32> to vector<8x512xf32>
    %60 = vector.extract_strided_slice %35 {offsets = [0, 0], sizes = [8, 512], strides = [1, 1]} : vector<8x1024xf32> to vector<8x512xf32>
    %61 = arith.addf %59, %60 : vector<8x512xf32>
    %62 = vector.extract_strided_slice %61 {offsets = [0, 0], sizes = [8, 384], strides = [1, 1]} : vector<8x512xf32> to vector<8x384xf32>
    %63 = arith.negf %62 : vector<8x384xf32>
    %64 = math.exp %63 : vector<8x384xf32>
    %cst_25 = arith.constant 1.000000e+00 : f32
    %65 = vector.broadcast %cst_25 : f32 to vector<8x384xf32>
    %66 = arith.addf %65, %64 : vector<8x384xf32>
    %67 = arith.divf %65, %66 : vector<8x384xf32>
    %68 = vector.extract_strided_slice %61 {offsets = [0, 384], sizes = [8, 128], strides = [1, 1]} : vector<8x512xf32> to vector<8x128xf32>
    %69 = math.tanh %68 : vector<8x128xf32>
    %70 = vector.extract_strided_slice %67 {offsets = [0, 128], sizes = [8, 128], strides = [1, 1]} : vector<8x384xf32> to vector<8x128xf32>
    %71 = arith.mulf %70, %30 : vector<8x128xf32>
    %72 = vector.extract_strided_slice %67 {offsets = [0, 0], sizes = [8, 128], strides = [1, 1]} : vector<8x384xf32> to vector<8x128xf32>
    %73 = arith.mulf %72, %69 : vector<8x128xf32>
    %74 = arith.addf %71, %73 : vector<8x128xf32>
    %75 = vector.extract_strided_slice %67 {offsets = [0, 256], sizes = [8, 128], strides = [1, 1]} : vector<8x384xf32> to vector<8x128xf32>
    %76 = math.tanh %74 : vector<8x128xf32>
    %77 = arith.mulf %75, %76 : vector<8x128xf32>
    %c2_i32 = arith.constant 2 : i32
    %78 = arith.truncf %77 : vector<8x128xf32> to vector<8x128xbf16>
    %cst_26 = arith.constant dense<0.000000e+00> : vector<8x1024xf32>
    %79 = tpu.matmul %78, %13, %cst_26 {dimension_numbers = #tpu.dot_dimension_numbers<[1], [0], [0], [1], [0, 0, 1, 1], [], []>} : vector<8x128xbf16>, vector<128x1024xbf16>, vector<8x1024xf32> -> vector<8x1024xf32>
    %80 = arith.truncf %56 : vector<8x128xf32> to vector<8x128xbf16>
    %cst_27 = arith.constant dense<0.000000e+00> : vector<8x512xf32>
    %81 = tpu.matmul %80, %14, %cst_27 {dimension_numbers = #tpu.dot_dimension_numbers<[1], [0], [0], [1], [0, 0, 1, 1], [], []>} : vector<8x128xbf16>, vector<128x512xbf16>, vector<8x512xf32> -> vector<8x512xf32>
    %82 = vector.extract_strided_slice %79 {offsets = [0, 512], sizes = [8, 512], strides = [1, 1]} : vector<8x1024xf32> to vector<8x512xf32>
    %83 = arith.addf %82, %81 : vector<8x512xf32>
    %84 = arith.addf %83, %12 : vector<8x512xf32>
    %85 = vector.extract_strided_slice %84 {offsets = [0, 0], sizes = [8, 384], strides = [1, 1]} : vector<8x512xf32> to vector<8x384xf32>
    %86 = arith.negf %85 : vector<8x384xf32>
    %87 = math.exp %86 : vector<8x384xf32>
    %cst_28 = arith.constant 1.000000e+00 : f32
    %88 = vector.broadcast %cst_28 : f32 to vector<8x384xf32>
    %89 = arith.addf %88, %87 : vector<8x384xf32>
    %90 = arith.divf %88, %89 : vector<8x384xf32>
    %91 = vector.extract_strided_slice %84 {offsets = [0, 384], sizes = [8, 128], strides = [1, 1]} : vector<8x512xf32> to vector<8x128xf32>
    %92 = math.tanh %91 : vector<8x128xf32>
    %93 = vector.extract_strided_slice %90 {offsets = [0, 128], sizes = [8, 128], strides = [1, 1]} : vector<8x384xf32> to vector<8x128xf32>
    %94 = arith.mulf %93, %53 : vector<8x128xf32>
    %95 = vector.extract_strided_slice %90 {offsets = [0, 0], sizes = [8, 128], strides = [1, 1]} : vector<8x384xf32> to vector<8x128xf32>
    %96 = arith.mulf %95, %92 : vector<8x128xf32>
    %97 = arith.addf %94, %96 : vector<8x128xf32>
    %98 = vector.extract_strided_slice %90 {offsets = [0, 256], sizes = [8, 128], strides = [1, 1]} : vector<8x384xf32> to vector<8x128xf32>
    %99 = math.tanh %97 : vector<8x128xf32>
    %100 = arith.mulf %98, %99 : vector<8x128xf32>
    %101 = arith.index_cast %c2_i32 : i32 to index
    %c0_29 = arith.constant 0 : index
    %c0_30 = arith.constant 0 : index
    %102 = vector.load %arg10[%101, %c0_29, %c0_30] : memref<8x8x512xf32, #tpu.memory_space<vmem>>, vector<1x8x512xf32>
    %103 = vector.shape_cast %102 : vector<1x8x512xf32> to vector<8x512xf32>
    %104 = vector.extract_strided_slice %79 {offsets = [0, 0], sizes = [8, 512], strides = [1, 1]} : vector<8x1024xf32> to vector<8x512xf32>
    %105 = arith.addf %103, %104 : vector<8x512xf32>
    %106 = vector.extract_strided_slice %105 {offsets = [0, 0], sizes = [8, 384], strides = [1, 1]} : vector<8x512xf32> to vector<8x384xf32>
    %107 = arith.negf %106 : vector<8x384xf32>
    %108 = math.exp %107 : vector<8x384xf32>
    %cst_31 = arith.constant 1.000000e+00 : f32
    %109 = vector.broadcast %cst_31 : f32 to vector<8x384xf32>
    %110 = arith.addf %109, %108 : vector<8x384xf32>
    %111 = arith.divf %109, %110 : vector<8x384xf32>
    %112 = vector.extract_strided_slice %105 {offsets = [0, 384], sizes = [8, 128], strides = [1, 1]} : vector<8x512xf32> to vector<8x128xf32>
    %113 = math.tanh %112 : vector<8x128xf32>
    %114 = vector.extract_strided_slice %111 {offsets = [0, 128], sizes = [8, 128], strides = [1, 1]} : vector<8x384xf32> to vector<8x128xf32>
    %115 = arith.mulf %114, %74 : vector<8x128xf32>
    %116 = vector.extract_strided_slice %111 {offsets = [0, 0], sizes = [8, 128], strides = [1, 1]} : vector<8x384xf32> to vector<8x128xf32>
    %117 = arith.mulf %116, %113 : vector<8x128xf32>
    %118 = arith.addf %115, %117 : vector<8x128xf32>
    %119 = vector.extract_strided_slice %111 {offsets = [0, 256], sizes = [8, 128], strides = [1, 1]} : vector<8x384xf32> to vector<8x128xf32>
    %120 = math.tanh %118 : vector<8x128xf32>
    %121 = arith.mulf %119, %120 : vector<8x128xf32>
    %c3_i32 = arith.constant 3 : i32
    %122 = arith.truncf %121 : vector<8x128xf32> to vector<8x128xbf16>
    %cst_32 = arith.constant dense<0.000000e+00> : vector<8x1024xf32>
    %123 = tpu.matmul %122, %13, %cst_32 {dimension_numbers = #tpu.dot_dimension_numbers<[1], [0], [0], [1], [0, 0, 1, 1], [], []>} : vector<8x128xbf16>, vector<128x1024xbf16>, vector<8x1024xf32> -> vector<8x1024xf32>
    %124 = arith.truncf %100 : vector<8x128xf32> to vector<8x128xbf16>
    %cst_33 = arith.constant dense<0.000000e+00> : vector<8x512xf32>
    %125 = tpu.matmul %124, %14, %cst_33 {dimension_numbers = #tpu.dot_dimension_numbers<[1], [0], [0], [1], [0, 0, 1, 1], [], []>} : vector<8x128xbf16>, vector<128x512xbf16>, vector<8x512xf32> -> vector<8x512xf32>
    %126 = vector.extract_strided_slice %123 {offsets = [0, 512], sizes = [8, 512], strides = [1, 1]} : vector<8x1024xf32> to vector<8x512xf32>
    %127 = arith.addf %126, %125 : vector<8x512xf32>
    %128 = arith.addf %127, %12 : vector<8x512xf32>
    %129 = vector.extract_strided_slice %128 {offsets = [0, 0], sizes = [8, 384], strides = [1, 1]} : vector<8x512xf32> to vector<8x384xf32>
    %130 = arith.negf %129 : vector<8x384xf32>
    %131 = math.exp %130 : vector<8x384xf32>
    %cst_34 = arith.constant 1.000000e+00 : f32
    %132 = vector.broadcast %cst_34 : f32 to vector<8x384xf32>
    %133 = arith.addf %132, %131 : vector<8x384xf32>
    %134 = arith.divf %132, %133 : vector<8x384xf32>
    %135 = vector.extract_strided_slice %128 {offsets = [0, 384], sizes = [8, 128], strides = [1, 1]} : vector<8x512xf32> to vector<8x128xf32>
    %136 = math.tanh %135 : vector<8x128xf32>
    %137 = vector.extract_strided_slice %134 {offsets = [0, 128], sizes = [8, 128], strides = [1, 1]} : vector<8x384xf32> to vector<8x128xf32>
    %138 = arith.mulf %137, %97 : vector<8x128xf32>
    %139 = vector.extract_strided_slice %134 {offsets = [0, 0], sizes = [8, 128], strides = [1, 1]} : vector<8x384xf32> to vector<8x128xf32>
    %140 = arith.mulf %139, %136 : vector<8x128xf32>
    %141 = arith.addf %138, %140 : vector<8x128xf32>
    %142 = vector.extract_strided_slice %134 {offsets = [0, 256], sizes = [8, 128], strides = [1, 1]} : vector<8x384xf32> to vector<8x128xf32>
    %143 = math.tanh %141 : vector<8x128xf32>
    %144 = arith.mulf %142, %143 : vector<8x128xf32>
    %145 = arith.index_cast %c3_i32 : i32 to index
    %c0_35 = arith.constant 0 : index
    %c0_36 = arith.constant 0 : index
    %146 = vector.load %arg10[%145, %c0_35, %c0_36] : memref<8x8x512xf32, #tpu.memory_space<vmem>>, vector<1x8x512xf32>
    %147 = vector.shape_cast %146 : vector<1x8x512xf32> to vector<8x512xf32>
    %148 = vector.extract_strided_slice %123 {offsets = [0, 0], sizes = [8, 512], strides = [1, 1]} : vector<8x1024xf32> to vector<8x512xf32>
    %149 = arith.addf %147, %148 : vector<8x512xf32>
    %150 = vector.extract_strided_slice %149 {offsets = [0, 0], sizes = [8, 384], strides = [1, 1]} : vector<8x512xf32> to vector<8x384xf32>
    %151 = arith.negf %150 : vector<8x384xf32>
    %152 = math.exp %151 : vector<8x384xf32>
    %cst_37 = arith.constant 1.000000e+00 : f32
    %153 = vector.broadcast %cst_37 : f32 to vector<8x384xf32>
    %154 = arith.addf %153, %152 : vector<8x384xf32>
    %155 = arith.divf %153, %154 : vector<8x384xf32>
    %156 = vector.extract_strided_slice %149 {offsets = [0, 384], sizes = [8, 128], strides = [1, 1]} : vector<8x512xf32> to vector<8x128xf32>
    %157 = math.tanh %156 : vector<8x128xf32>
    %158 = vector.extract_strided_slice %155 {offsets = [0, 128], sizes = [8, 128], strides = [1, 1]} : vector<8x384xf32> to vector<8x128xf32>
    %159 = arith.mulf %158, %118 : vector<8x128xf32>
    %160 = vector.extract_strided_slice %155 {offsets = [0, 0], sizes = [8, 128], strides = [1, 1]} : vector<8x384xf32> to vector<8x128xf32>
    %161 = arith.mulf %160, %157 : vector<8x128xf32>
    %162 = arith.addf %159, %161 : vector<8x128xf32>
    %163 = vector.extract_strided_slice %155 {offsets = [0, 256], sizes = [8, 128], strides = [1, 1]} : vector<8x384xf32> to vector<8x128xf32>
    %164 = math.tanh %162 : vector<8x128xf32>
    %165 = arith.mulf %163, %164 : vector<8x128xf32>
    %c4_i32 = arith.constant 4 : i32
    %166 = arith.truncf %165 : vector<8x128xf32> to vector<8x128xbf16>
    %cst_38 = arith.constant dense<0.000000e+00> : vector<8x1024xf32>
    %167 = tpu.matmul %166, %13, %cst_38 {dimension_numbers = #tpu.dot_dimension_numbers<[1], [0], [0], [1], [0, 0, 1, 1], [], []>} : vector<8x128xbf16>, vector<128x1024xbf16>, vector<8x1024xf32> -> vector<8x1024xf32>
    %168 = arith.truncf %144 : vector<8x128xf32> to vector<8x128xbf16>
    %cst_39 = arith.constant dense<0.000000e+00> : vector<8x512xf32>
    %169 = tpu.matmul %168, %14, %cst_39 {dimension_numbers = #tpu.dot_dimension_numbers<[1], [0], [0], [1], [0, 0, 1, 1], [], []>} : vector<8x128xbf16>, vector<128x512xbf16>, vector<8x512xf32> -> vector<8x512xf32>
    %170 = vector.extract_strided_slice %167 {offsets = [0, 512], sizes = [8, 512], strides = [1, 1]} : vector<8x1024xf32> to vector<8x512xf32>
    %171 = arith.addf %170, %169 : vector<8x512xf32>
    %172 = arith.addf %171, %12 : vector<8x512xf32>
    %173 = vector.extract_strided_slice %172 {offsets = [0, 0], sizes = [8, 384], strides = [1, 1]} : vector<8x512xf32> to vector<8x384xf32>
    %174 = arith.negf %173 : vector<8x384xf32>
    %175 = math.exp %174 : vector<8x384xf32>
    %cst_40 = arith.constant 1.000000e+00 : f32
    %176 = vector.broadcast %cst_40 : f32 to vector<8x384xf32>
    %177 = arith.addf %176, %175 : vector<8x384xf32>
    %178 = arith.divf %176, %177 : vector<8x384xf32>
    %179 = vector.extract_strided_slice %172 {offsets = [0, 384], sizes = [8, 128], strides = [1, 1]} : vector<8x512xf32> to vector<8x128xf32>
    %180 = math.tanh %179 : vector<8x128xf32>
    %181 = vector.extract_strided_slice %178 {offsets = [0, 128], sizes = [8, 128], strides = [1, 1]} : vector<8x384xf32> to vector<8x128xf32>
    %182 = arith.mulf %181, %141 : vector<8x128xf32>
    %183 = vector.extract_strided_slice %178 {offsets = [0, 0], sizes = [8, 128], strides = [1, 1]} : vector<8x384xf32> to vector<8x128xf32>
    %184 = arith.mulf %183, %180 : vector<8x128xf32>
    %185 = arith.addf %182, %184 : vector<8x128xf32>
    %186 = vector.extract_strided_slice %178 {offsets = [0, 256], sizes = [8, 128], strides = [1, 1]} : vector<8x384xf32> to vector<8x128xf32>
    %187 = math.tanh %185 : vector<8x128xf32>
    %188 = arith.mulf %186, %187 : vector<8x128xf32>
    %189 = arith.index_cast %c4_i32 : i32 to index
    %c0_41 = arith.constant 0 : index
    %c0_42 = arith.constant 0 : index
    %190 = vector.load %arg10[%189, %c0_41, %c0_42] : memref<8x8x512xf32, #tpu.memory_space<vmem>>, vector<1x8x512xf32>
    %191 = vector.shape_cast %190 : vector<1x8x512xf32> to vector<8x512xf32>
    %192 = vector.extract_strided_slice %167 {offsets = [0, 0], sizes = [8, 512], strides = [1, 1]} : vector<8x1024xf32> to vector<8x512xf32>
    %193 = arith.addf %191, %192 : vector<8x512xf32>
    %194 = vector.extract_strided_slice %193 {offsets = [0, 0], sizes = [8, 384], strides = [1, 1]} : vector<8x512xf32> to vector<8x384xf32>
    %195 = arith.negf %194 : vector<8x384xf32>
    %196 = math.exp %195 : vector<8x384xf32>
    %cst_43 = arith.constant 1.000000e+00 : f32
    %197 = vector.broadcast %cst_43 : f32 to vector<8x384xf32>
    %198 = arith.addf %197, %196 : vector<8x384xf32>
    %199 = arith.divf %197, %198 : vector<8x384xf32>
    %200 = vector.extract_strided_slice %193 {offsets = [0, 384], sizes = [8, 128], strides = [1, 1]} : vector<8x512xf32> to vector<8x128xf32>
    %201 = math.tanh %200 : vector<8x128xf32>
    %202 = vector.extract_strided_slice %199 {offsets = [0, 128], sizes = [8, 128], strides = [1, 1]} : vector<8x384xf32> to vector<8x128xf32>
    %203 = arith.mulf %202, %162 : vector<8x128xf32>
    %204 = vector.extract_strided_slice %199 {offsets = [0, 0], sizes = [8, 128], strides = [1, 1]} : vector<8x384xf32> to vector<8x128xf32>
    %205 = arith.mulf %204, %201 : vector<8x128xf32>
    %206 = arith.addf %203, %205 : vector<8x128xf32>
    %207 = vector.extract_strided_slice %199 {offsets = [0, 256], sizes = [8, 128], strides = [1, 1]} : vector<8x384xf32> to vector<8x128xf32>
    %208 = math.tanh %206 : vector<8x128xf32>
    %209 = arith.mulf %207, %208 : vector<8x128xf32>
    %c5_i32 = arith.constant 5 : i32
    %210 = arith.truncf %209 : vector<8x128xf32> to vector<8x128xbf16>
    %cst_44 = arith.constant dense<0.000000e+00> : vector<8x1024xf32>
    %211 = tpu.matmul %210, %13, %cst_44 {dimension_numbers = #tpu.dot_dimension_numbers<[1], [0], [0], [1], [0, 0, 1, 1], [], []>} : vector<8x128xbf16>, vector<128x1024xbf16>, vector<8x1024xf32> -> vector<8x1024xf32>
    %212 = arith.truncf %188 : vector<8x128xf32> to vector<8x128xbf16>
    %cst_45 = arith.constant dense<0.000000e+00> : vector<8x512xf32>
    %213 = tpu.matmul %212, %14, %cst_45 {dimension_numbers = #tpu.dot_dimension_numbers<[1], [0], [0], [1], [0, 0, 1, 1], [], []>} : vector<8x128xbf16>, vector<128x512xbf16>, vector<8x512xf32> -> vector<8x512xf32>
    %214 = vector.extract_strided_slice %211 {offsets = [0, 512], sizes = [8, 512], strides = [1, 1]} : vector<8x1024xf32> to vector<8x512xf32>
    %215 = arith.addf %214, %213 : vector<8x512xf32>
    %216 = arith.addf %215, %12 : vector<8x512xf32>
    %217 = vector.extract_strided_slice %216 {offsets = [0, 0], sizes = [8, 384], strides = [1, 1]} : vector<8x512xf32> to vector<8x384xf32>
    %218 = arith.negf %217 : vector<8x384xf32>
    %219 = math.exp %218 : vector<8x384xf32>
    %cst_46 = arith.constant 1.000000e+00 : f32
    %220 = vector.broadcast %cst_46 : f32 to vector<8x384xf32>
    %221 = arith.addf %220, %219 : vector<8x384xf32>
    %222 = arith.divf %220, %221 : vector<8x384xf32>
    %223 = vector.extract_strided_slice %216 {offsets = [0, 384], sizes = [8, 128], strides = [1, 1]} : vector<8x512xf32> to vector<8x128xf32>
    %224 = math.tanh %223 : vector<8x128xf32>
    %225 = vector.extract_strided_slice %222 {offsets = [0, 128], sizes = [8, 128], strides = [1, 1]} : vector<8x384xf32> to vector<8x128xf32>
    %226 = arith.mulf %225, %185 : vector<8x128xf32>
    %227 = vector.extract_strided_slice %222 {offsets = [0, 0], sizes = [8, 128], strides = [1, 1]} : vector<8x384xf32> to vector<8x128xf32>
    %228 = arith.mulf %227, %224 : vector<8x128xf32>
    %229 = arith.addf %226, %228 : vector<8x128xf32>
    %230 = vector.extract_strided_slice %222 {offsets = [0, 256], sizes = [8, 128], strides = [1, 1]} : vector<8x384xf32> to vector<8x128xf32>
    %231 = math.tanh %229 : vector<8x128xf32>
    %232 = arith.mulf %230, %231 : vector<8x128xf32>
    %233 = arith.index_cast %c5_i32 : i32 to index
    %c0_47 = arith.constant 0 : index
    %c0_48 = arith.constant 0 : index
    %234 = vector.load %arg10[%233, %c0_47, %c0_48] : memref<8x8x512xf32, #tpu.memory_space<vmem>>, vector<1x8x512xf32>
    %235 = vector.shape_cast %234 : vector<1x8x512xf32> to vector<8x512xf32>
    %236 = vector.extract_strided_slice %211 {offsets = [0, 0], sizes = [8, 512], strides = [1, 1]} : vector<8x1024xf32> to vector<8x512xf32>
    %237 = arith.addf %235, %236 : vector<8x512xf32>
    %238 = vector.extract_strided_slice %237 {offsets = [0, 0], sizes = [8, 384], strides = [1, 1]} : vector<8x512xf32> to vector<8x384xf32>
    %239 = arith.negf %238 : vector<8x384xf32>
    %240 = math.exp %239 : vector<8x384xf32>
    %cst_49 = arith.constant 1.000000e+00 : f32
    %241 = vector.broadcast %cst_49 : f32 to vector<8x384xf32>
    %242 = arith.addf %241, %240 : vector<8x384xf32>
    %243 = arith.divf %241, %242 : vector<8x384xf32>
    %244 = vector.extract_strided_slice %237 {offsets = [0, 384], sizes = [8, 128], strides = [1, 1]} : vector<8x512xf32> to vector<8x128xf32>
    %245 = math.tanh %244 : vector<8x128xf32>
    %246 = vector.extract_strided_slice %243 {offsets = [0, 128], sizes = [8, 128], strides = [1, 1]} : vector<8x384xf32> to vector<8x128xf32>
    %247 = arith.mulf %246, %206 : vector<8x128xf32>
    %248 = vector.extract_strided_slice %243 {offsets = [0, 0], sizes = [8, 128], strides = [1, 1]} : vector<8x384xf32> to vector<8x128xf32>
    %249 = arith.mulf %248, %245 : vector<8x128xf32>
    %250 = arith.addf %247, %249 : vector<8x128xf32>
    %251 = vector.extract_strided_slice %243 {offsets = [0, 256], sizes = [8, 128], strides = [1, 1]} : vector<8x384xf32> to vector<8x128xf32>
    %252 = math.tanh %250 : vector<8x128xf32>
    %253 = arith.mulf %251, %252 : vector<8x128xf32>
    %c6_i32 = arith.constant 6 : i32
    %254 = arith.truncf %253 : vector<8x128xf32> to vector<8x128xbf16>
    %cst_50 = arith.constant dense<0.000000e+00> : vector<8x1024xf32>
    %255 = tpu.matmul %254, %13, %cst_50 {dimension_numbers = #tpu.dot_dimension_numbers<[1], [0], [0], [1], [0, 0, 1, 1], [], []>} : vector<8x128xbf16>, vector<128x1024xbf16>, vector<8x1024xf32> -> vector<8x1024xf32>
    %256 = arith.truncf %232 : vector<8x128xf32> to vector<8x128xbf16>
    %cst_51 = arith.constant dense<0.000000e+00> : vector<8x512xf32>
    %257 = tpu.matmul %256, %14, %cst_51 {dimension_numbers = #tpu.dot_dimension_numbers<[1], [0], [0], [1], [0, 0, 1, 1], [], []>} : vector<8x128xbf16>, vector<128x512xbf16>, vector<8x512xf32> -> vector<8x512xf32>
    %258 = vector.extract_strided_slice %255 {offsets = [0, 512], sizes = [8, 512], strides = [1, 1]} : vector<8x1024xf32> to vector<8x512xf32>
    %259 = arith.addf %258, %257 : vector<8x512xf32>
    %260 = arith.addf %259, %12 : vector<8x512xf32>
    %261 = vector.extract_strided_slice %260 {offsets = [0, 0], sizes = [8, 384], strides = [1, 1]} : vector<8x512xf32> to vector<8x384xf32>
    %262 = arith.negf %261 : vector<8x384xf32>
    %263 = math.exp %262 : vector<8x384xf32>
    %cst_52 = arith.constant 1.000000e+00 : f32
    %264 = vector.broadcast %cst_52 : f32 to vector<8x384xf32>
    %265 = arith.addf %264, %263 : vector<8x384xf32>
    %266 = arith.divf %264, %265 : vector<8x384xf32>
    %267 = vector.extract_strided_slice %260 {offsets = [0, 384], sizes = [8, 128], strides = [1, 1]} : vector<8x512xf32> to vector<8x128xf32>
    %268 = math.tanh %267 : vector<8x128xf32>
    %269 = vector.extract_strided_slice %266 {offsets = [0, 128], sizes = [8, 128], strides = [1, 1]} : vector<8x384xf32> to vector<8x128xf32>
    %270 = arith.mulf %269, %229 : vector<8x128xf32>
    %271 = vector.extract_strided_slice %266 {offsets = [0, 0], sizes = [8, 128], strides = [1, 1]} : vector<8x384xf32> to vector<8x128xf32>
    %272 = arith.mulf %271, %268 : vector<8x128xf32>
    %273 = arith.addf %270, %272 : vector<8x128xf32>
    %274 = vector.extract_strided_slice %266 {offsets = [0, 256], sizes = [8, 128], strides = [1, 1]} : vector<8x384xf32> to vector<8x128xf32>
    %275 = math.tanh %273 : vector<8x128xf32>
    %276 = arith.mulf %274, %275 : vector<8x128xf32>
    %277 = arith.index_cast %c6_i32 : i32 to index
    %c0_53 = arith.constant 0 : index
    %c0_54 = arith.constant 0 : index
    %278 = vector.load %arg10[%277, %c0_53, %c0_54] : memref<8x8x512xf32, #tpu.memory_space<vmem>>, vector<1x8x512xf32>
    %279 = vector.shape_cast %278 : vector<1x8x512xf32> to vector<8x512xf32>
    %280 = vector.extract_strided_slice %255 {offsets = [0, 0], sizes = [8, 512], strides = [1, 1]} : vector<8x1024xf32> to vector<8x512xf32>
    %281 = arith.addf %279, %280 : vector<8x512xf32>
    %282 = vector.extract_strided_slice %281 {offsets = [0, 0], sizes = [8, 384], strides = [1, 1]} : vector<8x512xf32> to vector<8x384xf32>
    %283 = arith.negf %282 : vector<8x384xf32>
    %284 = math.exp %283 : vector<8x384xf32>
    %cst_55 = arith.constant 1.000000e+00 : f32
    %285 = vector.broadcast %cst_55 : f32 to vector<8x384xf32>
    %286 = arith.addf %285, %284 : vector<8x384xf32>
    %287 = arith.divf %285, %286 : vector<8x384xf32>
    %288 = vector.extract_strided_slice %281 {offsets = [0, 384], sizes = [8, 128], strides = [1, 1]} : vector<8x512xf32> to vector<8x128xf32>
    %289 = math.tanh %288 : vector<8x128xf32>
    %290 = vector.extract_strided_slice %287 {offsets = [0, 128], sizes = [8, 128], strides = [1, 1]} : vector<8x384xf32> to vector<8x128xf32>
    %291 = arith.mulf %290, %250 : vector<8x128xf32>
    %292 = vector.extract_strided_slice %287 {offsets = [0, 0], sizes = [8, 128], strides = [1, 1]} : vector<8x384xf32> to vector<8x128xf32>
    %293 = arith.mulf %292, %289 : vector<8x128xf32>
    %294 = arith.addf %291, %293 : vector<8x128xf32>
    %295 = vector.extract_strided_slice %287 {offsets = [0, 256], sizes = [8, 128], strides = [1, 1]} : vector<8x384xf32> to vector<8x128xf32>
    %296 = math.tanh %294 : vector<8x128xf32>
    %297 = arith.mulf %295, %296 : vector<8x128xf32>
    %c7_i32 = arith.constant 7 : i32
    %298 = arith.truncf %297 : vector<8x128xf32> to vector<8x128xbf16>
    %cst_56 = arith.constant dense<0.000000e+00> : vector<8x1024xf32>
    %299 = tpu.matmul %298, %13, %cst_56 {dimension_numbers = #tpu.dot_dimension_numbers<[1], [0], [0], [1], [0, 0, 1, 1], [], []>} : vector<8x128xbf16>, vector<128x1024xbf16>, vector<8x1024xf32> -> vector<8x1024xf32>
    %300 = arith.truncf %276 : vector<8x128xf32> to vector<8x128xbf16>
    %cst_57 = arith.constant dense<0.000000e+00> : vector<8x512xf32>
    %301 = tpu.matmul %300, %14, %cst_57 {dimension_numbers = #tpu.dot_dimension_numbers<[1], [0], [0], [1], [0, 0, 1, 1], [], []>} : vector<8x128xbf16>, vector<128x512xbf16>, vector<8x512xf32> -> vector<8x512xf32>
    %302 = vector.extract_strided_slice %299 {offsets = [0, 512], sizes = [8, 512], strides = [1, 1]} : vector<8x1024xf32> to vector<8x512xf32>
    %303 = arith.addf %302, %301 : vector<8x512xf32>
    %304 = arith.addf %303, %12 : vector<8x512xf32>
    %305 = vector.extract_strided_slice %304 {offsets = [0, 0], sizes = [8, 384], strides = [1, 1]} : vector<8x512xf32> to vector<8x384xf32>
    %306 = arith.negf %305 : vector<8x384xf32>
    %307 = math.exp %306 : vector<8x384xf32>
    %cst_58 = arith.constant 1.000000e+00 : f32
    %308 = vector.broadcast %cst_58 : f32 to vector<8x384xf32>
    %309 = arith.addf %308, %307 : vector<8x384xf32>
    %310 = arith.divf %308, %309 : vector<8x384xf32>
    %311 = vector.extract_strided_slice %304 {offsets = [0, 384], sizes = [8, 128], strides = [1, 1]} : vector<8x512xf32> to vector<8x128xf32>
    %312 = math.tanh %311 : vector<8x128xf32>
    %313 = vector.extract_strided_slice %310 {offsets = [0, 128], sizes = [8, 128], strides = [1, 1]} : vector<8x384xf32> to vector<8x128xf32>
    %314 = arith.mulf %313, %273 : vector<8x128xf32>
    %315 = vector.extract_strided_slice %310 {offsets = [0, 0], sizes = [8, 128], strides = [1, 1]} : vector<8x384xf32> to vector<8x128xf32>
    %316 = arith.mulf %315, %312 : vector<8x128xf32>
    %317 = arith.addf %314, %316 : vector<8x128xf32>
    %318 = vector.extract_strided_slice %310 {offsets = [0, 256], sizes = [8, 128], strides = [1, 1]} : vector<8x384xf32> to vector<8x128xf32>
    %319 = math.tanh %317 : vector<8x128xf32>
    %320 = arith.mulf %318, %319 : vector<8x128xf32>
    %321 = arith.index_cast %c7_i32 : i32 to index
    %c0_59 = arith.constant 0 : index
    %c0_60 = arith.constant 0 : index
    %322 = vector.load %arg10[%321, %c0_59, %c0_60] : memref<8x8x512xf32, #tpu.memory_space<vmem>>, vector<1x8x512xf32>
    %323 = vector.shape_cast %322 : vector<1x8x512xf32> to vector<8x512xf32>
    %324 = vector.extract_strided_slice %299 {offsets = [0, 0], sizes = [8, 512], strides = [1, 1]} : vector<8x1024xf32> to vector<8x512xf32>
    %325 = arith.addf %323, %324 : vector<8x512xf32>
    %326 = vector.extract_strided_slice %325 {offsets = [0, 0], sizes = [8, 384], strides = [1, 1]} : vector<8x512xf32> to vector<8x384xf32>
    %327 = arith.negf %326 : vector<8x384xf32>
    %328 = math.exp %327 : vector<8x384xf32>
    %cst_61 = arith.constant 1.000000e+00 : f32
    %329 = vector.broadcast %cst_61 : f32 to vector<8x384xf32>
    %330 = arith.addf %329, %328 : vector<8x384xf32>
    %331 = arith.divf %329, %330 : vector<8x384xf32>
    %332 = vector.extract_strided_slice %325 {offsets = [0, 384], sizes = [8, 128], strides = [1, 1]} : vector<8x512xf32> to vector<8x128xf32>
    %333 = math.tanh %332 : vector<8x128xf32>
    %334 = vector.extract_strided_slice %331 {offsets = [0, 128], sizes = [8, 128], strides = [1, 1]} : vector<8x384xf32> to vector<8x128xf32>
    %335 = arith.mulf %334, %294 : vector<8x128xf32>
    %336 = vector.extract_strided_slice %331 {offsets = [0, 0], sizes = [8, 128], strides = [1, 1]} : vector<8x384xf32> to vector<8x128xf32>
    %337 = arith.mulf %336, %333 : vector<8x128xf32>
    %338 = arith.addf %335, %337 : vector<8x128xf32>
    %339 = vector.extract_strided_slice %331 {offsets = [0, 256], sizes = [8, 128], strides = [1, 1]} : vector<8x384xf32> to vector<8x128xf32>
    %340 = math.tanh %338 : vector<8x128xf32>
    %341 = arith.mulf %339, %340 : vector<8x128xf32>
    %c7_i32_62 = arith.constant 7 : i32
    %342 = arith.truncf %341 : vector<8x128xf32> to vector<8x128xbf16>
    %cst_63 = arith.constant dense<0.000000e+00> : vector<8x1024xf32>
    %343 = tpu.matmul %342, %13, %cst_63 {dimension_numbers = #tpu.dot_dimension_numbers<[1], [0], [0], [1], [0, 0, 1, 1], [], []>} : vector<8x128xbf16>, vector<128x1024xbf16>, vector<8x1024xf32> -> vector<8x1024xf32>
    %344 = arith.truncf %320 : vector<8x128xf32> to vector<8x128xbf16>
    %cst_64 = arith.constant dense<0.000000e+00> : vector<8x512xf32>
    %345 = tpu.matmul %344, %14, %cst_64 {dimension_numbers = #tpu.dot_dimension_numbers<[1], [0], [0], [1], [0, 0, 1, 1], [], []>} : vector<8x128xbf16>, vector<128x512xbf16>, vector<8x512xf32> -> vector<8x512xf32>
    %346 = vector.extract_strided_slice %343 {offsets = [0, 512], sizes = [8, 512], strides = [1, 1]} : vector<8x1024xf32> to vector<8x512xf32>
    %347 = arith.addf %346, %345 : vector<8x512xf32>
    %348 = arith.addf %347, %12 : vector<8x512xf32>
    %349 = vector.extract_strided_slice %348 {offsets = [0, 0], sizes = [8, 384], strides = [1, 1]} : vector<8x512xf32> to vector<8x384xf32>
    %350 = arith.negf %349 : vector<8x384xf32>
    %351 = math.exp %350 : vector<8x384xf32>
    %cst_65 = arith.constant 1.000000e+00 : f32
    %352 = vector.broadcast %cst_65 : f32 to vector<8x384xf32>
    %353 = arith.addf %352, %351 : vector<8x384xf32>
    %354 = arith.divf %352, %353 : vector<8x384xf32>
    %355 = vector.extract_strided_slice %348 {offsets = [0, 384], sizes = [8, 128], strides = [1, 1]} : vector<8x512xf32> to vector<8x128xf32>
    %356 = math.tanh %355 : vector<8x128xf32>
    %357 = vector.extract_strided_slice %354 {offsets = [0, 128], sizes = [8, 128], strides = [1, 1]} : vector<8x384xf32> to vector<8x128xf32>
    %358 = arith.mulf %357, %317 : vector<8x128xf32>
    %359 = vector.extract_strided_slice %354 {offsets = [0, 0], sizes = [8, 128], strides = [1, 1]} : vector<8x384xf32> to vector<8x128xf32>
    %360 = arith.mulf %359, %356 : vector<8x128xf32>
    %361 = arith.addf %358, %360 : vector<8x128xf32>
    %362 = vector.extract_strided_slice %354 {offsets = [0, 256], sizes = [8, 128], strides = [1, 1]} : vector<8x384xf32> to vector<8x128xf32>
    %363 = math.tanh %361 : vector<8x128xf32>
    %364 = arith.mulf %362, %363 : vector<8x128xf32>
    %365 = arith.truncf %364 : vector<8x128xf32> to vector<8x128xbf16>
    %c0_66 = arith.constant 0 : index
    %c0_67 = arith.constant 0 : index
    %366 = vector.load %arg7[%c0_66, %c0_67] : memref<128x128xbf16, #tpu.memory_space<vmem>>, vector<128x128xbf16>
    %cst_68 = arith.constant dense<0.000000e+00> : vector<8x128xf32>
    %367 = tpu.matmul %365, %366, %cst_68 {dimension_numbers = #tpu.dot_dimension_numbers<[1], [0], [0], [1], [0, 0, 1, 1], [], []>} : vector<8x128xbf16>, vector<128x128xbf16>, vector<8x128xf32> -> vector<8x128xf32>
    %c0_69 = arith.constant 0 : index
    %c0_70 = arith.constant 0 : index
    %368 = vector.load %arg8[%c0_69, %c0_70] : memref<1x128xf32, #tpu.memory_space<vmem>>, vector<1x128xf32>
    %369 = vector.broadcast %368 : vector<1x128xf32> to vector<8x128xf32>
    %370 = arith.addf %367, %369 : vector<8x128xf32>
    %c0_71 = arith.constant 0 : index
    %c0_72 = arith.constant 0 : index
    %371 = vector.load %arg9[%c0_71, %c0_72] : memref<8x128xf32, #tpu.memory_space<vmem>>, vector<8x128xf32>
    tpu.vector_store %arg9[%c0_71, %c0_72], %370 {strides = array<i32>} : memref<8x128xf32, #tpu.memory_space<vmem>>, vector<8x128xf32>,
    return
  }
  func.func @transform_0(%arg0: i32) -> (i32, i32, i32) {
    %c0_i32 = arith.constant 0 : i32
    %c0_i32_0 = arith.constant 0 : i32
    %c0_i32_1 = arith.constant 0 : i32
    return %c0_i32, %arg0, %c0_i32_0 : i32, i32, i32
  }
  func.func @transform_1(%arg0: i32) -> (i32, i32) {
    %c0_i32 = arith.constant 0 : i32
    %c0_i32_0 = arith.constant 0 : i32
    %c0_i32_1 = arith.constant 0 : i32
    return %c0_i32, %c0_i32_0 : i32, i32
  }
  func.func @transform_2(%arg0: i32) -> (i32, i32) {
    %c0_i32 = arith.constant 0 : i32
    %c0_i32_0 = arith.constant 0 : i32
    %c0_i32_1 = arith.constant 0 : i32
    return %c0_i32, %c0_i32_0 : i32, i32
  }
  func.func @transform_3(%arg0: i32) -> (i32, i32) {
    %c0_i32 = arith.constant 0 : i32
    %c0_i32_0 = arith.constant 0 : i32
    %c0_i32_1 = arith.constant 0 : i32
    return %c0_i32, %c0_i32_0 : i32, i32
  }
  func.func @transform_4(%arg0: i32) -> (i32, i32) {
    %c0_i32 = arith.constant 0 : i32
    %c0_i32_0 = arith.constant 0 : i32
    %c0_i32_1 = arith.constant 0 : i32
    return %c0_i32, %c0_i32_0 : i32, i32
  }
  func.func @transform_5(%arg0: i32) -> (i32, i32) {
    %c0_i32 = arith.constant 0 : i32
    %c0_i32_0 = arith.constant 0 : i32
    %c0_i32_1 = arith.constant 0 : i32
    return %c0_i32, %c0_i32_0 : i32, i32
  }
  func.func @transform_6(%arg0: i32) -> (i32, i32) {
    %c0_i32 = arith.constant 0 : i32
    %c0_i32_0 = arith.constant 0 : i32
    %c0_i32_1 = arith.constant 0 : i32
    return %c0_i32, %c0_i32_0 : i32, i32
  }
  func.func @transform_7(%arg0: i32) -> (i32, i32) {
    %c0_i32 = arith.constant 0 : i32
    %c0_i32_0 = arith.constant 0 : i32
    %c0_i32_1 = arith.constant 0 : i32
    return %c0_i32, %c0_i32_0 : i32, i32
  }
  func.func @transform_8(%arg0: i32) -> (i32, i32) {
    %c0_i32 = arith.constant 0 : i32
    %c0_i32_0 = arith.constant 0 : i32
    return %arg0, %c0_i32 : i32, i32
  }
}

</mosaic_0001>

<llo_original>
// kernel: tpu_custom_call.1
$region0: #{tpu_custom_call.1}
  #allocation0 [shape = 'u32[]', space=smem, size = 0x4, offset = 0x4, fixed_abs, tag = 'smem constant byte address 0x4 - core index']
  #allocation1 [shape = 'u32[144,128]{1,0:T(1,128)}', space=vmem, size = 0x12000, scoped, tag = 'internal scratch']
  #allocation2 [shape = 'f32[8,8,512]{2,1,0:T(8,128)}', space=vmem, size = 0x20000, scoped, tag = 'scratch operand']
  %s0 = inlined_call_operand.hbm [shape: f32[8,8,128], index: 0, kind: input, shape index: {}]
  %s1 = inlined_call_operand.hbm [shape: bf16[128,512], index: 1, kind: input, shape index: {}]
  %s2 = inlined_call_operand.vmem [shape: f32[1,512], index: 2, kind: input, shape index: {}]
  %s3 = inlined_call_operand.hbm [shape: bf16[128,1024], index: 3, kind: input, shape index: {}]
  %s4 = inlined_call_operand.hbm [shape: bf16[128,512], index: 4, kind: input, shape index: {}]
  %s5 = inlined_call_operand.vmem [shape: f32[1,512], index: 5, kind: input, shape index: {}]
  %s6 = inlined_call_operand.hbm [shape: bf16[128,128], index: 6, kind: input, shape index: {}]
  %s7 = inlined_call_operand.vmem [shape: f32[1,128], index: 7, kind: input, shape index: {}]
  %s8 = inlined_call_operand.hbm [shape: f32[8,128], index: 8, kind: output, shape index: {}]
  %s9 = sld [smem:[#allocation0]]
  $region62: #{tpu_custom_call.1} parent=0
    _
  %s11 = ssub.s32 1, %s9
  %s12 = scalar_select 0, %s11, %s9
  $region1: #{tpu_custom_call.1} parent=0
    #allocation3 [shape = 'u8[32768]{0}', space=vmem, size = 0x8000, scoped, tag = 'input window, operand 0, single buffered']
    #allocation4 [shape = 's32[1]{0}', space=sflag, size = 0x4, scoped, tag = 'scoped memory for tpu_custom_call.1']
    #allocation5 [shape = 's32[1]{0}', space=sflag, size = 0x4, scoped, tag = 'scoped memory for tpu_custom_call.1']
    #allocation6 [shape = 'u8[131072]{0}', space=vmem, size = 0x20000, scoped, tag = 'input window, operand 1, single buffered']
    #allocation7 [shape = 's32[1]{0}', space=sflag, size = 0x4, scoped, tag = 'scoped memory for tpu_custom_call.1']
    #allocation8 [shape = 'u8[262144]{0}', space=vmem, size = 0x40000, scoped, tag = 'input window, operand 3, single buffered']
    #allocation9 [shape = 'u8[131072]{0}', space=vmem, size = 0x20000, scoped, tag = 'input window, operand 4, single buffered']
    #allocation10 [shape = 's32[1]{0}', space=sflag, size = 0x4, scoped, tag = 'scoped memory for tpu_custom_call.1']
    #allocation11 [shape = 'u8[32768]{0}', space=vmem, size = 0x8000, scoped, tag = 'input window, operand 6, single buffered']
    #allocation12 [shape = 'u8[4096]{0}', space=vmem, size = 0x1000, scoped, tag = 'output window, operand 0, single buffered']
    %13 = vsyncpa [#allocation4], 0
    %14 = vsyncpa [#allocation7], 0
    %15 = vsyncpa [#allocation10], 0
    %16 = vsyncpa [#allocation5], 0
    // Predicated region
    $region2: #{tpu_custom_call.1} parent=1 // pred_check
      _
    $region3: #{tpu_custom_call.1} parent=1 // pred_check_branch
      %18 = sbr.rel (0) target = $region5
    $region4: #{tpu_custom_call.1} parent=1 // pred_region
      %s20 = ssub.s32 1024, 1024
      %21 = vsyncadd [#allocation4], %s20
      %s22 = sshll.u32 [#allocation3], 4
      %s23 = int_to_ptr.vmem [resolvable:$true] %s22
      %28 = dma.hbm_to_vmem [thread:$0]  %s0, 1024, %s23, [#allocation4], 128, 128, 8
    $region5: #{tpu_custom_call.1} parent=1 // pred_fallthru
      _
    // Predicated region
    $region6: #{tpu_custom_call.1} parent=1 // pred_check
      _
    $region7: #{tpu_custom_call.1} parent=1 // pred_check_branch
      %30 = sbr.rel (0) target = $region9
    $region8: #{tpu_custom_call.1} parent=1 // pred_region
      %s32 = ssub.s32 4096, 4096
      %33 = vsyncadd [#allocation7], %s32
      %s34 = sshll.u32 [#allocation6], 4
      %s35 = int_to_ptr.vmem [resolvable:$true] %s34
      %40 = dma.hbm_to_vmem [thread:$0]  %s1, 4096, %s35, [#allocation7], 256, 256, 16
    $region9: #{tpu_custom_call.1} parent=1 // pred_fallthru
      _
    // Predicated region
    $region10: #{tpu_custom_call.1} parent=1 // pred_check
      _
    $region11: #{tpu_custom_call.1} parent=1 // pred_check_branch
      %42 = sbr.rel (0) target = $region13
    $region12: #{tpu_custom_call.1} parent=1 // pred_region
      _
    $region13: #{tpu_custom_call.1} parent=1 // pred_fallthru
      _
    // Predicated region
    $region14: #{tpu_custom_call.1} parent=1 // pred_check
      _
    $region15: #{tpu_custom_call.1} parent=1 // pred_check_branch
      %44 = sbr.rel (0) target = $region17
    $region16: #{tpu_custom_call.1} parent=1 // pred_region
      %s46 = ssub.s32 8192, 8192
      %47 = vsyncadd [#allocation7], %s46
      %s48 = sshll.u32 [#allocation8], 4
      %s49 = int_to_ptr.vmem [resolvable:$true] %s48
      %54 = dma.hbm_to_vmem [thread:$0]  %s3, 8192, %s49, [#allocation7], 512, 512, 32
    $region17: #{tpu_custom_call.1} parent=1 // pred_fallthru
      _
    // Predicated region
    $region18: #{tpu_custom_call.1} parent=1 // pred_check
      _
    $region19: #{tpu_custom_call.1} parent=1 // pred_check_branch
      %56 = sbr.rel (0) target = $region21
    $region20: #{tpu_custom_call.1} parent=1 // pred_region
      %s58 = ssub.s32 4096, 4096
      %59 = vsyncadd [#allocation10], %s58
      %s60 = sshll.u32 [#allocation9], 4
      %s61 = int_to_ptr.vmem [resolvable:$true] %s60
      %66 = dma.hbm_to_vmem [thread:$0]  %s4, 4096, %s61, [#allocation10], 256, 256, 16
    $region21: #{tpu_custom_call.1} parent=1 // pred_fallthru
      _
    // Predicated region
    $region22: #{tpu_custom_call.1} parent=1 // pred_check
      _
    $region23: #{tpu_custom_call.1} parent=1 // pred_check_branch
      %68 = sbr.rel (0) target = $region25
    $region24: #{tpu_custom_call.1} parent=1 // pred_region
      _
    $region25: #{tpu_custom_call.1} parent=1 // pred_fallthru
      _
    // Predicated region
    $region26: #{tpu_custom_call.1} parent=1 // pred_check
      _
    $region27: #{tpu_custom_call.1} parent=1 // pred_check_branch
      %70 = sbr.rel (0) target = $region29
    $region28: #{tpu_custom_call.1} parent=1 // pred_region
      %s72 = ssub.s32 1024, 1024
      %73 = vsyncadd [#allocation10], %s72
      %s74 = sshll.u32 [#allocation11], 4
      %s75 = int_to_ptr.vmem [resolvable:$true] %s74
      %80 = dma.hbm_to_vmem [thread:$0]  %s6, 1024, %s75, [#allocation10], 64, 64, 4
    $region29: #{tpu_custom_call.1} parent=1 // pred_fallthru
      _
    // Predicated region
    $region30: #{tpu_custom_call.1} parent=1 // pred_check
      _
    $region31: #{tpu_custom_call.1} parent=1 // pred_check_branch
      %82 = sbr.rel (0) target = $region33
    $region32: #{tpu_custom_call.1} parent=1 // pred_region
      _
    $region33: #{tpu_custom_call.1} parent=1 // pred_fallthru
      _
    // Predicated region
    $region34: #{tpu_custom_call.1} parent=1 // pred_check
      _
    $region35: #{tpu_custom_call.1} parent=1 // pred_check_branch
      %84 = sbr.rel (0) target = $region37
    $region36: #{tpu_custom_call.1} parent=1 // pred_region
      %85 = dma.done [#allocation4], 1024
    $region37: #{tpu_custom_call.1} parent=1 // pred_fallthru
      _
    // Predicated region
    $region38: #{tpu_custom_call.1} parent=1 // pred_check
      _
    $region39: #{tpu_custom_call.1} parent=1 // pred_check_branch
      %87 = sbr.rel (0) target = $region41
    $region40: #{tpu_custom_call.1} parent=1 // pred_region
      %88 = dma.done [#allocation7], 4096
    $region41: #{tpu_custom_call.1} parent=1 // pred_fallthru
      _
    // Predicated region
    $region42: #{tpu_custom_call.1} parent=1 // pred_check
      _
    $region43: #{tpu_custom_call.1} parent=1 // pred_check_branch
      %90 = sbr.rel (0) target = $region45
    $region44: #{tpu_custom_call.1} parent=1 // pred_region
      %91 = dma.done [#allocation7], 8192
    $region45: #{tpu_custom_call.1} parent=1 // pred_fallthru
      _
    // Predicated region
    $region46: #{tpu_custom_call.1} parent=1 // pred_check
      _
    $region47: #{tpu_custom_call.1} parent=1 // pred_check_branch
      %93 = sbr.rel (0) target = $region49
    $region48: #{tpu_custom_call.1} parent=1 // pred_region
      %94 = dma.done [#allocation10], 4096
    $region49: #{tpu_custom_call.1} parent=1 // pred_fallthru
      _
    // Predicated region
    $region50: #{tpu_custom_call.1} parent=1 // pred_check
      _
    $region51: #{tpu_custom_call.1} parent=1 // pred_check_branch
      %96 = sbr.rel (0) target = $region53
    $region52: #{tpu_custom_call.1} parent=1 // pred_region
      %97 = dma.done [#allocation10], 1024
    $region53: #{tpu_custom_call.1} parent=1 // pred_fallthru
      _
    %v99 = vld [vmem:[#allocation3] sm:$0xff]
    %v100 = vld [vmem:[#allocation3 + $0x8] sm:$0xff]
    %v101 = vld [vmem:[#allocation3 + $0x10] sm:$0xff]
    %v102 = vld [vmem:[#allocation3 + $0x18] sm:$0xff]
    %v103 = vld [vmem:[#allocation3 + $0x20] sm:$0xff]
    %v104 = vld [vmem:[#allocation3 + $0x28] sm:$0xff]
    %v105 = vld [vmem:[#allocation3 + $0x30] sm:$0xff]
    %v106 = vld [vmem:[#allocation3 + $0x38] sm:$0xff]
    %v107 = vpack.c.bf16 %v100, %v99
    %v108 = vpack.c.bf16 %v102, %v101
    %v109 = vpack.c.bf16 %v104, %v103
    %v110 = vpack.c.bf16 %v106, %v105
    %v111 = vld [vmem:[#allocation6] sm:$0xff]
    %v112 = vld [vmem:[#allocation6 + $0x8] sm:$0xff]
    %v113 = vld [vmem:[#allocation6 + $0x10] sm:$0xff]
    %v114 = vld [vmem:[#allocation6 + $0x18] sm:$0xff]
    %v115 = vld [vmem:[#allocation6 + $0x20] sm:$0xff]
    %v116 = vld [vmem:[#allocation6 + $0x28] sm:$0xff]
    %v117 = vld [vmem:[#allocation6 + $0x30] sm:$0xff]
    %v118 = vld [vmem:[#allocation6 + $0x38] sm:$0xff]
    %v119 = vld [vmem:[#allocation6 + $0x40] sm:$0xff]
    %v120 = vld [vmem:[#allocation6 + $0x48] sm:$0xff]
    %v121 = vld [vmem:[#allocation6 + $0x50] sm:$0xff]
    %v122 = vld [vmem:[#allocation6 + $0x58] sm:$0xff]
    %v123 = vld [vmem:[#allocation6 + $0x60] sm:$0xff]
    %v124 = vld [vmem:[#allocation6 + $0x68] sm:$0xff]
    %v125 = vld [vmem:[#allocation6 + $0x70] sm:$0xff]
    %v126 = vld [vmem:[#allocation6 + $0x78] sm:$0xff]
    %v127 = vld [vmem:[#allocation6 + $0x80] sm:$0xff]
    %v128 = vld [vmem:[#allocation6 + $0x88] sm:$0xff]
    %v129 = vld [vmem:[#allocation6 + $0x90] sm:$0xff]
    %v130 = vld [vmem:[#allocation6 + $0x98] sm:$0xff]
    %v131 = vld [vmem:[#allocation6 + $0xa0] sm:$0xff]
    %v132 = vld [vmem:[#allocation6 + $0xa8] sm:$0xff]
    %v133 = vld [vmem:[#allocation6 + $0xb0] sm:$0xff]
    %v134 = vld [vmem:[#allocation6 + $0xb8] sm:$0xff]
    %v135 = vld [vmem:[#allocation6 + $0xc0] sm:$0xff]
    %v136 = vld [vmem:[#allocation6 + $0xc8] sm:$0xff]
    %v137 = vld [vmem:[#allocation6 + $0xd0] sm:$0xff]
    %v138 = vld [vmem:[#allocation6 + $0xd8] sm:$0xff]
    %v139 = vld [vmem:[#allocation6 + $0xe0] sm:$0xff]
    %v140 = vld [vmem:[#allocation6 + $0xe8] sm:$0xff]
    %v141 = vld [vmem:[#allocation6 + $0xf0] sm:$0xff]
    %v142 = vld [vmem:[#allocation6 + $0xf8] sm:$0xff]
    %v143 = vld [vmem:[%s2] sm:$0xf]
    %v145 = vlaneseq
    %v146 = vshrl.u32 %v145, 7
    %v147 = vsub.s32 0, %v146
    %v148 = vrot.slane %v143, %v147
    %v149 = vlaneseq
    %v150 = vshrl.u32 %v149, 7
    %v151 = vsub.s32 1, %v150
    %v152 = vrot.slane %v143, %v151
    %v153 = vlaneseq
    %v154 = vshrl.u32 %v153, 7
    %v155 = vsub.s32 2, %v154
    %v156 = vrot.slane %v143, %v155
    %v157 = vlaneseq
    %v158 = vshrl.u32 %v157, 7
    %v159 = vsub.s32 3, %v158
    %v160 = vrot.slane %v143, %v159
    %v197 = vunpack.c.l.b16 %v111
    %v198 = vunpack.c.h.b16 %v111
    %v199 = vunpack.c.l.b16 %v112
    %v200 = vunpack.c.h.b16 %v112
    %v201 = vunpack.c.l.b16 %v113
    %v202 = vunpack.c.h.b16 %v113
    %v203 = vunpack.c.l.b16 %v114
    %v204 = vunpack.c.h.b16 %v114
    %v205 = vunpack.c.l.b16 %v115
    %v206 = vunpack.c.h.b16 %v115
    %v207 = vunpack.c.l.b16 %v116
    %v208 = vunpack.c.h.b16 %v116
    %v209 = vunpack.c.l.b16 %v117
    %v210 = vunpack.c.h.b16 %v117
    %v211 = vunpack.c.l.b16 %v118
    %v212 = vunpack.c.h.b16 %v118
    %v213 = vunpack.c.l.b16 %v119
    %v214 = vunpack.c.h.b16 %v119
    %v215 = vunpack.c.l.b16 %v120
    %v216 = vunpack.c.h.b16 %v120
    %v217 = vunpack.c.l.b16 %v121
    %v218 = vunpack.c.h.b16 %v121
    %v219 = vunpack.c.l.b16 %v122
    %v220 = vunpack.c.h.b16 %v122
    %v221 = vunpack.c.l.b16 %v123
    %v222 = vunpack.c.h.b16 %v123
    %v223 = vunpack.c.l.b16 %v124
    %v224 = vunpack.c.h.b16 %v124
    %v225 = vunpack.c.l.b16 %v125
    %v226 = vunpack.c.h.b16 %v125
    %v227 = vunpack.c.l.b16 %v126
    %v228 = vunpack.c.h.b16 %v126
    %v229 = vunpack.c.l.b16 %v127
    %v230 = vunpack.c.h.b16 %v127
    %v231 = vunpack.c.l.b16 %v128
    %v232 = vunpack.c.h.b16 %v128
    %v233 = vunpack.c.l.b16 %v129
    %v234 = vunpack.c.h.b16 %v129
    %v235 = vunpack.c.l.b16 %v130
    %v236 = vunpack.c.h.b16 %v130
    %v237 = vunpack.c.l.b16 %v131
    %v238 = vunpack.c.h.b16 %v131
    %v239 = vunpack.c.l.b16 %v132
    %v240 = vunpack.c.h.b16 %v132
    %v241 = vunpack.c.l.b16 %v133
    %v242 = vunpack.c.h.b16 %v133
    %v243 = vunpack.c.l.b16 %v134
    %v244 = vunpack.c.h.b16 %v134
    %v245 = vunpack.c.l.b16 %v135
    %v246 = vunpack.c.h.b16 %v135
    %v247 = vunpack.c.l.b16 %v136
    %v248 = vunpack.c.h.b16 %v136
    %v249 = vunpack.c.l.b16 %v137
    %v250 = vunpack.c.h.b16 %v137
    %v251 = vunpack.c.l.b16 %v138
    %v252 = vunpack.c.h.b16 %v138
    %v253 = vunpack.c.l.b16 %v139
    %v254 = vunpack.c.h.b16 %v139
    %v255 = vunpack.c.l.b16 %v140
    %v256 = vunpack.c.h.b16 %v140
    %v257 = vunpack.c.l.b16 %v141
    %v258 = vunpack.c.h.b16 %v141
    %v259 = vunpack.c.l.b16 %v142
    %v260 = vunpack.c.h.b16 %v142
    %v261 = vpack.c.b16 %v201, %v197
    %v262 = vpack.c.b16 %v202, %v198
    %v263 = vpack.c.b16 %v203, %v199
    %v264 = vpack.c.b16 %v204, %v200
    %v265 = vpack.c.b16 %v209, %v205
    %v266 = vpack.c.b16 %v210, %v206
    %v267 = vpack.c.b16 %v211, %v207
    %v268 = vpack.c.b16 %v212, %v208
    %v269 = vpack.c.b16 %v217, %v213
    %v270 = vpack.c.b16 %v218, %v214
    %v271 = vpack.c.b16 %v219, %v215
    %v272 = vpack.c.b16 %v220, %v216
    %v273 = vpack.c.b16 %v225, %v221
    %v274 = vpack.c.b16 %v226, %v222
    %v275 = vpack.c.b16 %v227, %v223
    %v276 = vpack.c.b16 %v228, %v224
    %v277 = vpack.c.b16 %v233, %v229
    %v278 = vpack.c.b16 %v234, %v230
    %v279 = vpack.c.b16 %v235, %v231
    %v280 = vpack.c.b16 %v236, %v232
    %v281 = vpack.c.b16 %v241, %v237
    %v282 = vpack.c.b16 %v242, %v238
    %v283 = vpack.c.b16 %v243, %v239
    %v284 = vpack.c.b16 %v244, %v240
    %v285 = vpack.c.b16 %v249, %v245
    %v286 = vpack.c.b16 %v250, %v246
    %v287 = vpack.c.b16 %v251, %v247
    %v288 = vpack.c.b16 %v252, %v248
    %v289 = vpack.c.b16 %v257, %v253
    %v290 = vpack.c.b16 %v258, %v254
    %v291 = vpack.c.b16 %v259, %v255
    %v292 = vpack.c.b16 %v260, %v256
    %325 = vmatprep.subr.bf16.mxu0 %v262
    %326 = vmatpush1.bf16.msra.mxu0 %v261
    %327 = vmatprep.subr.bf16.mxu0 %v266
    %328 = vmatpush1.bf16.msra.mxu0 %v265
    %329 = vmatprep.subr.bf16.mxu0 %v270
    %330 = vmatpush1.bf16.msra.mxu0 %v269
    %331 = vmatprep.subr.bf16.mxu0 %v274
    %332 = vmatpush1.bf16.msra.mxu0 %v273
    %333 = vmatprep.subr.bf16.mxu0 %v278
    %334 = vmatpush1.bf16.msra.mxu0 %v277
    %335 = vmatprep.subr.bf16.mxu0 %v282
    %336 = vmatpush1.bf16.msra.mxu0 %v281
    %337 = vmatprep.subr.bf16.mxu0 %v286
    %338 = vmatpush1.bf16.msra.mxu0 %v285
    %339 = vmatprep.subr.bf16.mxu0 %v290
    %340 = vmatpush1.bf16.msra.mxu0 %v289
    %341 = vmatprep.subr.bf16.mxu0 0
    %342 = vmatpush1.bf16.msra.mxu0 0
    %343 = vmatprep.subr.bf16.mxu0 0
    %344 = vmatpush1.bf16.msra.mxu0 0
    %345 = vmatprep.subr.bf16.mxu0 0
    %346 = vmatpush1.bf16.msra.mxu0 0
    %347 = vmatprep.subr.bf16.mxu0 0
    %348 = vmatpush1.bf16.msra.mxu0 0
    %349 = vmatprep.subr.bf16.mxu0 0
    %350 = vmatpush1.bf16.msra.mxu0 0
    %351 = vmatprep.subr.bf16.mxu0 0
    %352 = vmatpush1.bf16.msra.mxu0 0
    %353 = vmatprep.subr.bf16.mxu0 0
    %354 = vmatpush1.bf16.msra.mxu0 0
    %355 = vmatprep.subr.bf16.mxu0 0
    %356 = vmatpush1.bf16.msra.mxu0 0
    %357 = vmatprep.mubr.bf16.mxu0 0
    %358 = vmatmul.mubr.bf16.gmra.mrb[0].mxu0 %v107
    %v359 = vpop.f32.mrb[0].mxu0
    %v360 = vadd.f32 %v148, %v359
    %v361 = vpop.f32.mrb[0].mxu0
    %v362 = vadd.f32 %v152, %v361
    %v363 = vpop.f32.mrb[0].mxu0
    %v364 = vadd.f32 %v148, %v363
    %v365 = vpop.f32.mrb[0].mxu0
    %v366 = vadd.f32 %v152, %v365
    %367 = vmatprep.mubr.bf16.mxu0 0
    %368 = vmatmul.mubr.bf16.gmra.mrb[0].mxu0 %v108
    %v369 = vpop.f32.mrb[0].mxu0
    %v370 = vadd.f32 %v148, %v369
    %v371 = vpop.f32.mrb[0].mxu0
    %v372 = vadd.f32 %v152, %v371
    %v373 = vpop.f32.mrb[0].mxu0
    %v374 = vadd.f32 %v148, %v373
    %v375 = vpop.f32.mrb[0].mxu0
    %v376 = vadd.f32 %v152, %v375
    %377 = vmatprep.mubr.bf16.mxu0 0
    %378 = vmatmul.mubr.bf16.gmra.mrb[0].mxu0 %v109
    %v379 = vpop.f32.mrb[0].mxu0
    %v380 = vadd.f32 %v148, %v379
    %v381 = vpop.f32.mrb[0].mxu0
    %v382 = vadd.f32 %v152, %v381
    %v383 = vpop.f32.mrb[0].mxu0
    %v384 = vadd.f32 %v148, %v383
    %v385 = vpop.f32.mrb[0].mxu0
    %v386 = vadd.f32 %v152, %v385
    %387 = vmatprep.mubr.bf16.mxu0 0
    %388 = vmatmul.mubr.bf16.gmra.mrb[0].mxu0 %v110
    %v389 = vpop.f32.mrb[0].mxu0
    %v390 = vadd.f32 %v148, %v389
    %v391 = vpop.f32.mrb[0].mxu0
    %v392 = vadd.f32 %v152, %v391
    %v393 = vpop.f32.mrb[0].mxu0
    %v394 = vadd.f32 %v148, %v393
    %v395 = vpop.f32.mrb[0].mxu0
    %v396 = vadd.f32 %v152, %v395
    %397 = vdwg.mxu0
    %398 = vmatprep.subr.bf16.mxu0 %v264
    %399 = vmatpush1.bf16.msra.mxu0 %v263
    %400 = vmatprep.subr.bf16.mxu0 %v268
    %401 = vmatpush1.bf16.msra.mxu0 %v267
    %402 = vmatprep.subr.bf16.mxu0 %v272
    %403 = vmatpush1.bf16.msra.mxu0 %v271
    %404 = vmatprep.subr.bf16.mxu0 %v276
    %405 = vmatpush1.bf16.msra.mxu0 %v275
    %406 = vmatprep.subr.bf16.mxu0 %v280
    %407 = vmatpush1.bf16.msra.mxu0 %v279
    %408 = vmatprep.subr.bf16.mxu0 %v284
    %409 = vmatpush1.bf16.msra.mxu0 %v283
    %410 = vmatprep.subr.bf16.mxu0 %v288
    %411 = vmatpush1.bf16.msra.mxu0 %v287
    %412 = vmatprep.subr.bf16.mxu0 %v292
    %413 = vmatpush1.bf16.msra.mxu0 %v291
    %414 = vmatprep.subr.bf16.mxu0 0
    %415 = vmatpush1.bf16.msra.mxu0 0
    %416 = vmatprep.subr.bf16.mxu0 0
    %417 = vmatpush1.bf16.msra.mxu0 0
    %418 = vmatprep.subr.bf16.mxu0 0
    %419 = vmatpush1.bf16.msra.mxu0 0
    %420 = vmatprep.subr.bf16.mxu0 0
    %421 = vmatpush1.bf16.msra.mxu0 0
    %422 = vmatprep.subr.bf16.mxu0 0
    %423 = vmatpush1.bf16.msra.mxu0 0
    %424 = vmatprep.subr.bf16.mxu0 0
    %425 = vmatpush1.bf16.msra.mxu0 0
    %426 = vmatprep.subr.bf16.mxu0 0
    %427 = vmatpush1.bf16.msra.mxu0 0
    %428 = vmatprep.subr.bf16.mxu0 0
    %429 = vmatpush1.bf16.msra.mxu0 0
    %430 = vmatprep.mubr.bf16.mxu0 0
    %431 = vmatmul.mubr.bf16.gmra.mrb[0].mxu0 %v107
    %v432 = vpop.f32.mrb[0].mxu0
    %v433 = vadd.f32 %v156, %v432
    %v434 = vpop.f32.mrb[0].mxu0
    %v435 = vadd.f32 %v160, %v434
    %v436 = vpop.f32.mrb[0].mxu0
    %v437 = vadd.f32 %v156, %v436
    %v438 = vpop.f32.mrb[0].mxu0
    %v439 = vadd.f32 %v160, %v438
    %440 = vmatprep.mubr.bf16.mxu0 0
    %441 = vmatmul.mubr.bf16.gmra.mrb[0].mxu0 %v108
    %v442 = vpop.f32.mrb[0].mxu0
    %v443 = vadd.f32 %v156, %v442
    %v444 = vpop.f32.mrb[0].mxu0
    %v445 = vadd.f32 %v160, %v444
    %v446 = vpop.f32.mrb[0].mxu0
    %v447 = vadd.f32 %v156, %v446
    %v448 = vpop.f32.mrb[0].mxu0
    %v449 = vadd.f32 %v160, %v448
    %450 = vmatprep.mubr.bf16.mxu0 0
    %451 = vmatmul.mubr.bf16.gmra.mrb[0].mxu0 %v109
    %v452 = vpop.f32.mrb[0].mxu0
    %v453 = vadd.f32 %v156, %v452
    %v454 = vpop.f32.mrb[0].mxu0
    %v455 = vadd.f32 %v160, %v454
    %v456 = vpop.f32.mrb[0].mxu0
    %v457 = vadd.f32 %v156, %v456
    %v458 = vpop.f32.mrb[0].mxu0
    %v459 = vadd.f32 %v160, %v458
    %460 = vmatprep.mubr.bf16.mxu0 0
    %461 = vmatmul.mubr.bf16.gmra.mrb[0].mxu0 %v110
    %v462 = vpop.f32.mrb[0].mxu0
    %v463 = vadd.f32 %v156, %v462
    %v464 = vpop.f32.mrb[0].mxu0
    %v465 = vadd.f32 %v160, %v464
    %v466 = vpop.f32.mrb[0].mxu0
    %v467 = vadd.f32 %v156, %v466
    %v468 = vpop.f32.mrb[0].mxu0
    %v469 = vadd.f32 %v160, %v468
    %470 = vdwg.mxu0
    %471 = vst [vmem:[#allocation2] sm:$0xff] %v360
    %472 = vst [vmem:[#allocation2 + $0x8] sm:$0xff] %v362
    %473 = vst [vmem:[#allocation2 + $0x10] sm:$0xff] %v433
    %474 = vst [vmem:[#allocation2 + $0x18] sm:$0xff] %v435
    %475 = vst [vmem:[#allocation2 + $0x20] sm:$0xff] %v364
    %476 = vst [vmem:[#allocation2 + $0x28] sm:$0xff] %v366
    %477 = vst [vmem:[#allocation2 + $0x30] sm:$0xff] %v437
    %478 = vst [vmem:[#allocation2 + $0x38] sm:$0xff] %v439
    %479 = vst [vmem:[#allocation2 + $0x40] sm:$0xff] %v370
    %480 = vst [vmem:[#allocation2 + $0x48] sm:$0xff] %v372
    %481 = vst [vmem:[#allocation2 + $0x50] sm:$0xff] %v443
    %482 = vst [vmem:[#allocation2 + $0x58] sm:$0xff] %v445
    %483 = vst [vmem:[#allocation2 + $0x60] sm:$0xff] %v374
    %484 = vst [vmem:[#allocation2 + $0x68] sm:$0xff] %v376
    %485 = vst [vmem:[#allocation2 + $0x70] sm:$0xff] %v447
    %486 = vst [vmem:[#allocation2 + $0x78] sm:$0xff] %v449
    %487 = vst [vmem:[#allocation2 + $0x80] sm:$0xff] %v380
    %488 = vst [vmem:[#allocation2 + $0x88] sm:$0xff] %v382
    %489 = vst [vmem:[#allocation2 + $0x90] sm:$0xff] %v453
    %490 = vst [vmem:[#allocation2 + $0x98] sm:$0xff] %v455
    %491 = vst [vmem:[#allocation2 + $0xa0] sm:$0xff] %v384
    %492 = vst [vmem:[#allocation2 + $0xa8] sm:$0xff] %v386
    %493 = vst [vmem:[#allocation2 + $0xb0] sm:$0xff] %v457
    %494 = vst [vmem:[#allocation2 + $0xb8] sm:$0xff] %v459
    %495 = vst [vmem:[#allocation2 + $0xc0] sm:$0xff] %v390
    %496 = vst [vmem:[#allocation2 + $0xc8] sm:$0xff] %v392
    %497 = vst [vmem:[#allocation2 + $0xd0] sm:$0xff] %v463
    %498 = vst [vmem:[#allocation2 + $0xd8] sm:$0xff] %v465
    %499 = vst [vmem:[#allocation2 + $0xe0] sm:$0xff] %v394
    %500 = vst [vmem:[#allocation2 + $0xe8] sm:$0xff] %v396
    %501 = vst [vmem:[#allocation2 + $0xf0] sm:$0xff] %v467
    %502 = vst [vmem:[#allocation2 + $0xf8] sm:$0xff] %v469
    %v503 = vld [vmem:[%s5] sm:$0xf]
    %v505 = vlaneseq
    %v506 = vshrl.u32 %v505, 7
    %v507 = vsub.s32 0, %v506
    %v508 = vrot.slane %v503, %v507
    %v509 = vlaneseq
    %v510 = vshrl.u32 %v509, 7
    %v511 = vsub.s32 1, %v510
    %v512 = vrot.slane %v503, %v511
    %v513 = vlaneseq
    %v514 = vshrl.u32 %v513, 7
    %v515 = vsub.s32 2, %v514
    %v516 = vrot.slane %v503, %v515
    %v517 = vlaneseq
    %v518 = vshrl.u32 %v517, 7
    %v519 = vsub.s32 3, %v518
    %v520 = vrot.slane %v503, %v519
    %v525 = vld [vmem:[#allocation8] sm:$0xff]
    %v526 = vld [vmem:[#allocation8 + $0x8] sm:$0xff]
    %v527 = vld [vmem:[#allocation8 + $0x10] sm:$0xff]
    %v528 = vld [vmem:[#allocation8 + $0x18] sm:$0xff]
    %v529 = vld [vmem:[#allocation8 + $0x20] sm:$0xff]
    %v530 = vld [vmem:[#allocation8 + $0x28] sm:$0xff]
    %v531 = vld [vmem:[#allocation8 + $0x30] sm:$0xff]
    %v532 = vld [vmem:[#allocation8 + $0x38] sm:$0xff]
    %v533 = vld [vmem:[#allocation8 + $0x40] sm:$0xff]
    %v534 = vld [vmem:[#allocation8 + $0x48] sm:$0xff]
    %v535 = vld [vmem:[#allocation8 + $0x50] sm:$0xff]
    %v536 = vld [vmem:[#allocation8 + $0x58] sm:$0xff]
    %v537 = vld [vmem:[#allocation8 + $0x60] sm:$0xff]
    %v538 = vld [vmem:[#allocation8 + $0x68] sm:$0xff]
    %v539 = vld [vmem:[#allocation8 + $0x70] sm:$0xff]
    %v540 = vld [vmem:[#allocation8 + $0x78] sm:$0xff]
    %v541 = vld [vmem:[#allocation8 + $0x80] sm:$0xff]
    %v542 = vld [vmem:[#allocation8 + $0x88] sm:$0xff]
    %v543 = vld [vmem:[#allocation8 + $0x90] sm:$0xff]
    %v544 = vld [vmem:[#allocation8 + $0x98] sm:$0xff]
    %v545 = vld [vmem:[#allocation8 + $0xa0] sm:$0xff]
    %v546 = vld [vmem:[#allocation8 + $0xa8] sm:$0xff]
    %v547 = vld [vmem:[#allocation8 + $0xb0] sm:$0xff]
    %v548 = vld [vmem:[#allocation8 + $0xb8] sm:$0xff]
    %v549 = vld [vmem:[#allocation8 + $0xc0] sm:$0xff]
    %v550 = vld [vmem:[#allocation8 + $0xc8] sm:$0xff]
    %v551 = vld [vmem:[#allocation8 + $0xd0] sm:$0xff]
    %v552 = vld [vmem:[#allocation8 + $0xd8] sm:$0xff]
    %v553 = vld [vmem:[#allocation8 + $0xe0] sm:$0xff]
    %v554 = vld [vmem:[#allocation8 + $0xe8] sm:$0xff]
    %v555 = vld [vmem:[#allocation8 + $0xf0] sm:$0xff]
    %v556 = vld [vmem:[#allocation8 + $0xf8] sm:$0xff]
    %v557 = vld [vmem:[#allocation8 + $0x100] sm:$0xff]
    %v558 = vld [vmem:[#allocation8 + $0x108] sm:$0xff]
    %v559 = vld [vmem:[#allocation8 + $0x110] sm:$0xff]
    %v560 = vld [vmem:[#allocation8 + $0x118] sm:$0xff]
    %v561 = vld [vmem:[#allocation8 + $0x120] sm:$0xff]
    %v562 = vld [vmem:[#allocation8 + $0x128] sm:$0xff]
    %v563 = vld [vmem:[#allocation8 + $0x130] sm:$0xff]
    %v564 = vld [vmem:[#allocation8 + $0x138] sm:$0xff]
    %v565 = vld [vmem:[#allocation8 + $0x140] sm:$0xff]
    %v566 = vld [vmem:[#allocation8 + $0x148] sm:$0xff]
    %v567 = vld [vmem:[#allocation8 + $0x150] sm:$0xff]
    %v568 = vld [vmem:[#allocation8 + $0x158] sm:$0xff]
    %v569 = vld [vmem:[#allocation8 + $0x160] sm:$0xff]
    %v570 = vld [vmem:[#allocation8 + $0x168] sm:$0xff]
    %v571 = vld [vmem:[#allocation8 + $0x170] sm:$0xff]
    %v572 = vld [vmem:[#allocation8 + $0x178] sm:$0xff]
    %v573 = vld [vmem:[#allocation8 + $0x180] sm:$0xff]
    %v574 = vld [vmem:[#allocation8 + $0x188] sm:$0xff]
    %v575 = vld [vmem:[#allocation8 + $0x190] sm:$0xff]
    %v576 = vld [vmem:[#allocation8 + $0x198] sm:$0xff]
    %v577 = vld [vmem:[#allocation8 + $0x1a0] sm:$0xff]
    %v578 = vld [vmem:[#allocation8 + $0x1a8] sm:$0xff]
    %v579 = vld [vmem:[#allocation8 + $0x1b0] sm:$0xff]
    %v580 = vld [vmem:[#allocation8 + $0x1b8] sm:$0xff]
    %v581 = vld [vmem:[#allocation8 + $0x1c0] sm:$0xff]
    %v582 = vld [vmem:[#allocation8 + $0x1c8] sm:$0xff]
    %v583 = vld [vmem:[#allocation8 + $0x1d0] sm:$0xff]
    %v584 = vld [vmem:[#allocation8 + $0x1d8] sm:$0xff]
    %v585 = vld [vmem:[#allocation8 + $0x1e0] sm:$0xff]
    %v586 = vld [vmem:[#allocation8 + $0x1e8] sm:$0xff]
    %v587 = vld [vmem:[#allocation8 + $0x1f0] sm:$0xff]
    %v588 = vld [vmem:[#allocation8 + $0x1f8] sm:$0xff]
    %v589 = vld [vmem:[#allocation9] sm:$0xff]
    %v590 = vld [vmem:[#allocation9 + $0x8] sm:$0xff]
    %v591 = vld [vmem:[#allocation9 + $0x10] sm:$0xff]
    %v592 = vld [vmem:[#allocation9 + $0x18] sm:$0xff]
    %v593 = vld [vmem:[#allocation9 + $0x20] sm:$0xff]
    %v594 = vld [vmem:[#allocation9 + $0x28] sm:$0xff]
    %v595 = vld [vmem:[#allocation9 + $0x30] sm:$0xff]
    %v596 = vld [vmem:[#allocation9 + $0x38] sm:$0xff]
    %v597 = vld [vmem:[#allocation9 + $0x40] sm:$0xff]
    %v598 = vld [vmem:[#allocation9 + $0x48] sm:$0xff]
    %v599 = vld [vmem:[#allocation9 + $0x50] sm:$0xff]
    %v600 = vld [vmem:[#allocation9 + $0x58] sm:$0xff]
    %v601 = vld [vmem:[#allocation9 + $0x60] sm:$0xff]
    %v602 = vld [vmem:[#allocation9 + $0x68] sm:$0xff]
    %v603 = vld [vmem:[#allocation9 + $0x70] sm:$0xff]
    %v604 = vld [vmem:[#allocation9 + $0x78] sm:$0xff]
    %v605 = vld [vmem:[#allocation9 + $0x80] sm:$0xff]
    %v606 = vld [vmem:[#allocation9 + $0x88] sm:$0xff]
    %v607 = vld [vmem:[#allocation9 + $0x90] sm:$0xff]
    %v608 = vld [vmem:[#allocation9 + $0x98] sm:$0xff]
    %v609 = vld [vmem:[#allocation9 + $0xa0] sm:$0xff]
    %v610 = vld [vmem:[#allocation9 + $0xa8] sm:$0xff]
    %v611 = vld [vmem:[#allocation9 + $0xb0] sm:$0xff]
    %v612 = vld [vmem:[#allocation9 + $0xb8] sm:$0xff]
    %v613 = vld [vmem:[#allocation9 + $0xc0] sm:$0xff]
    %v614 = vld [vmem:[#allocation9 + $0xc8] sm:$0xff]
    %v615 = vld [vmem:[#allocation9 + $0xd0] sm:$0xff]
    %v616 = vld [vmem:[#allocation9 + $0xd8] sm:$0xff]
    %v617 = vld [vmem:[#allocation9 + $0xe0] sm:$0xff]
    %v618 = vld [vmem:[#allocation9 + $0xe8] sm:$0xff]
    %v619 = vld [vmem:[#allocation9 + $0xf0] sm:$0xff]
    %v620 = vld [vmem:[#allocation9 + $0xf8] sm:$0xff]
    %v621 = vld [vmem:[#allocation2] sm:$0xff]
    %v622 = vld [vmem:[#allocation2 + $0x8] sm:$0xff]
    %v623 = vld [vmem:[#allocation2 + $0x10] sm:$0xff]
    %v624 = vld [vmem:[#allocation2 + $0x18] sm:$0xff]
    %v625 = vxor.u32 %v621, 2147483648
    %v626 = vxor.u32 %v622, 2147483648
    %v627 = vxor.u32 %v623, 2147483648
    %v628 = vmul.f32 %v625, 1.442695
    %v629 = vpow.pop %v628
    %v630 = vmul.f32 %v626, 1.442695
    %v631 = vpow.pop %v630
    %v632 = vmul.f32 %v627, 1.442695
    %v633 = vpow.pop %v632
    %v634 = vadd.f32 %v629, 1.0
    %v635 = vadd.f32 %v631, 1.0
    %v636 = vadd.f32 %v633, 1.0
    %v637 = vrcp.pop %v634
    %v638 = vmul.f32 1.0, %v637
    %v639 = vrcp.pop %v635
    %v640 = vmul.f32 1.0, %v639
    %v641 = vrcp.pop %v636
    %v642 = vmul.f32 1.0, %v641
    %v643 = vtanh.pop %v624
    %v644 = vmul.f32 %v640, 0.0
    %v645 = vmul.f32 %v638, %v643
    %v646 = vadd.f32 %v644, %v645
    %v647 = vtanh.pop %v646
    %v648 = vmul.f32 %v642, %v647
    %v649 = vpack.c.bf16 %v648, %v648
    %v714 = vunpack.c.l.b16 %v525
    %v715 = vunpack.c.h.b16 %v525
    %v716 = vunpack.c.l.b16 %v526
    %v717 = vunpack.c.h.b16 %v526
    %v718 = vunpack.c.l.b16 %v527
    %v719 = vunpack.c.h.b16 %v527
    %v720 = vunpack.c.l.b16 %v528
    %v721 = vunpack.c.h.b16 %v528
    %v722 = vunpack.c.l.b16 %v529
    %v723 = vunpack.c.h.b16 %v529
    %v724 = vunpack.c.l.b16 %v530
    %v725 = vunpack.c.h.b16 %v530
    %v726 = vunpack.c.l.b16 %v531
    %v727 = vunpack.c.h.b16 %v531
    %v728 = vunpack.c.l.b16 %v532
    %v729 = vunpack.c.h.b16 %v532
    %v730 = vunpack.c.l.b16 %v533
    %v731 = vunpack.c.h.b16 %v533
    %v732 = vunpack.c.l.b16 %v534
    %v733 = vunpack.c.h.b16 %v534
    %v734 = vunpack.c.l.b16 %v535
    %v735 = vunpack.c.h.b16 %v535
    %v736 = vunpack.c.l.b16 %v536
    %v737 = vunpack.c.h.b16 %v536
    %v738 = vunpack.c.l.b16 %v537
    %v739 = vunpack.c.h.b16 %v537
    %v740 = vunpack.c.l.b16 %v538
    %v741 = vunpack.c.h.b16 %v538
    %v742 = vunpack.c.l.b16 %v539
    %v743 = vunpack.c.h.b16 %v539
    %v744 = vunpack.c.l.b16 %v540
    %v745 = vunpack.c.h.b16 %v540
    %v746 = vunpack.c.l.b16 %v541
    %v747 = vunpack.c.h.b16 %v541
    %v748 = vunpack.c.l.b16 %v542
    %v749 = vunpack.c.h.b16 %v542
    %v750 = vunpack.c.l.b16 %v543
    %v751 = vunpack.c.h.b16 %v543
    %v752 = vunpack.c.l.b16 %v544
    %v753 = vunpack.c.h.b16 %v544
    %v754 = vunpack.c.l.b16 %v545
    %v755 = vunpack.c.h.b16 %v545
    %v756 = vunpack.c.l.b16 %v546
    %v757 = vunpack.c.h.b16 %v546
    %v758 = vunpack.c.l.b16 %v547
    %v759 = vunpack.c.h.b16 %v547
    %v760 = vunpack.c.l.b16 %v548
    %v761 = vunpack.c.h.b16 %v548
    %v762 = vunpack.c.l.b16 %v549
    %v763 = vunpack.c.h.b16 %v549
    %v764 = vunpack.c.l.b16 %v550
    %v765 = vunpack.c.h.b16 %v550
    %v766 = vunpack.c.l.b16 %v551
    %v767 = vunpack.c.h.b16 %v551
    %v768 = vunpack.c.l.b16 %v552
    %v769 = vunpack.c.h.b16 %v552
    %v770 = vunpack.c.l.b16 %v553
    %v771 = vunpack.c.h.b16 %v553
    %v772 = vunpack.c.l.b16 %v554
    %v773 = vunpack.c.h.b16 %v554
    %v774 = vunpack.c.l.b16 %v555
    %v775 = vunpack.c.h.b16 %v555
    %v776 = vunpack.c.l.b16 %v556
    %v777 = vunpack.c.h.b16 %v556
    %v778 = vunpack.c.l.b16 %v557
    %v779 = vunpack.c.h.b16 %v557
    %v780 = vunpack.c.l.b16 %v558
    %v781 = vunpack.c.h.b16 %v558
    %v782 = vunpack.c.l.b16 %v559
    %v783 = vunpack.c.h.b16 %v559
    %v784 = vunpack.c.l.b16 %v560
    %v785 = vunpack.c.h.b16 %v560
    %v786 = vunpack.c.l.b16 %v561
    %v787 = vunpack.c.h.b16 %v561
    %v788 = vunpack.c.l.b16 %v562
    %v789 = vunpack.c.h.b16 %v562
    %v790 = vunpack.c.l.b16 %v563
    %v791 = vunpack.c.h.b16 %v563
    %v792 = vunpack.c.l.b16 %v564
    %v793 = vunpack.c.h.b16 %v564
    %v794 = vunpack.c.l.b16 %v565
    %v795 = vunpack.c.h.b16 %v565
    %v796 = vunpack.c.l.b16 %v566
    %v797 = vunpack.c.h.b16 %v566
    %v798 = vunpack.c.l.b16 %v567
    %v799 = vunpack.c.h.b16 %v567
    %v800 = vunpack.c.l.b16 %v568
    %v801 = vunpack.c.h.b16 %v568
    %v802 = vunpack.c.l.b16 %v569
    %v803 = vunpack.c.h.b16 %v569
    %v804 = vunpack.c.l.b16 %v570
    %v805 = vunpack.c.h.b16 %v570
    %v806 = vunpack.c.l.b16 %v571
    %v807 = vunpack.c.h.b16 %v571
    %v808 = vunpack.c.l.b16 %v572
    %v809 = vunpack.c.h.b16 %v572
    %v810 = vunpack.c.l.b16 %v573
    %v811 = vunpack.c.h.b16 %v573
    %v812 = vunpack.c.l.b16 %v574
    %v813 = vunpack.c.h.b16 %v574
    %v814 = vunpack.c.l.b16 %v575
    %v815 = vunpack.c.h.b16 %v575
    %v816 = vunpack.c.l.b16 %v576
    %v817 = vunpack.c.h.b16 %v576
    %v818 = vunpack.c.l.b16 %v577
    %v819 = vunpack.c.h.b16 %v577
    %v820 = vunpack.c.l.b16 %v578
    %v821 = vunpack.c.h.b16 %v578
    %v822 = vunpack.c.l.b16 %v579
    %v823 = vunpack.c.h.b16 %v579
    %v824 = vunpack.c.l.b16 %v580
    %v825 = vunpack.c.h.b16 %v580
    %v826 = vunpack.c.l.b16 %v581
    %v827 = vunpack.c.h.b16 %v581
    %v828 = vunpack.c.l.b16 %v582
    %v829 = vunpack.c.h.b16 %v582
    %v830 = vunpack.c.l.b16 %v583
    %v831 = vunpack.c.h.b16 %v583
    %v832 = vunpack.c.l.b16 %v584
    %v833 = vunpack.c.h.b16 %v584
    %v834 = vunpack.c.l.b16 %v585
    %v835 = vunpack.c.h.b16 %v585
    %v836 = vunpack.c.l.b16 %v586
    %v837 = vunpack.c.h.b16 %v586
    %v838 = vunpack.c.l.b16 %v587
    %v839 = vunpack.c.h.b16 %v587
    %v840 = vunpack.c.l.b16 %v588
    %v841 = vunpack.c.h.b16 %v588
    %v842 = vpack.c.b16 %v722, %v714
    %v843 = vpack.c.b16 %v723, %v715
    %v844 = vpack.c.b16 %v724, %v716
    %v845 = vpack.c.b16 %v725, %v717
    %v846 = vpack.c.b16 %v726, %v718
    %v847 = vpack.c.b16 %v727, %v719
    %v848 = vpack.c.b16 %v728, %v720
    %v849 = vpack.c.b16 %v729, %v721
    %v850 = vpack.c.b16 %v738, %v730
    %v851 = vpack.c.b16 %v739, %v731
    %v852 = vpack.c.b16 %v740, %v732
    %v853 = vpack.c.b16 %v741, %v733
    %v854 = vpack.c.b16 %v742, %v734
    %v855 = vpack.c.b16 %v743, %v735
    %v856 = vpack.c.b16 %v744, %v736
    %v857 = vpack.c.b16 %v745, %v737
    %v858 = vpack.c.b16 %v754, %v746
    %v859 = vpack.c.b16 %v755, %v747
    %v860 = vpack.c.b16 %v756, %v748
    %v861 = vpack.c.b16 %v757, %v749
    %v862 = vpack.c.b16 %v758, %v750
    %v863 = vpack.c.b16 %v759, %v751
    %v864 = vpack.c.b16 %v760, %v752
    %v865 = vpack.c.b16 %v761, %v753
    %v866 = vpack.c.b16 %v770, %v762
    %v867 = vpack.c.b16 %v771, %v763
    %v868 = vpack.c.b16 %v772, %v764
    %v869 = vpack.c.b16 %v773, %v765
    %v870 = vpack.c.b16 %v774, %v766
    %v871 = vpack.c.b16 %v775, %v767
    %v872 = vpack.c.b16 %v776, %v768
    %v873 = vpack.c.b16 %v777, %v769
    %v874 = vpack.c.b16 %v786, %v778
    %v875 = vpack.c.b16 %v787, %v779
    %v876 = vpack.c.b16 %v788, %v780
    %v877 = vpack.c.b16 %v789, %v781
    %v878 = vpack.c.b16 %v790, %v782
    %v879 = vpack.c.b16 %v791, %v783
    %v880 = vpack.c.b16 %v792, %v784
    %v881 = vpack.c.b16 %v793, %v785
    %v882 = vpack.c.b16 %v802, %v794
    %v883 = vpack.c.b16 %v803, %v795
    %v884 = vpack.c.b16 %v804, %v796
    %v885 = vpack.c.b16 %v805, %v797
    %v886 = vpack.c.b16 %v806, %v798
    %v887 = vpack.c.b16 %v807, %v799
    %v888 = vpack.c.b16 %v808, %v800
    %v889 = vpack.c.b16 %v809, %v801
    %v890 = vpack.c.b16 %v818, %v810
    %v891 = vpack.c.b16 %v819, %v811
    %v892 = vpack.c.b16 %v820, %v812
    %v893 = vpack.c.b16 %v821, %v813
    %v894 = vpack.c.b16 %v822, %v814
    %v895 = vpack.c.b16 %v823, %v815
    %v896 = vpack.c.b16 %v824, %v816
    %v897 = vpack.c.b16 %v825, %v817
    %v898 = vpack.c.b16 %v834, %v826
    %v899 = vpack.c.b16 %v835, %v827
    %v900 = vpack.c.b16 %v836, %v828
    %v901 = vpack.c.b16 %v837, %v829
    %v902 = vpack.c.b16 %v838, %v830
    %v903 = vpack.c.b16 %v839, %v831
    %v904 = vpack.c.b16 %v840, %v832
    %v905 = vpack.c.b16 %v841, %v833
    %970 = vmatprep.subr.bf16.mxu0 %v843
    %971 = vmatpush1.bf16.msra.mxu0 %v842
    %972 = vmatprep.subr.bf16.mxu0 %v851
    %973 = vmatpush1.bf16.msra.mxu0 %v850
    %974 = vmatprep.subr.bf16.mxu0 %v859
    %975 = vmatpush1.bf16.msra.mxu0 %v858
    %976 = vmatprep.subr.bf16.mxu0 %v867
    %977 = vmatpush1.bf16.msra.mxu0 %v866
    %978 = vmatprep.subr.bf16.mxu0 %v875
    %979 = vmatpush1.bf16.msra.mxu0 %v874
    %980 = vmatprep.subr.bf16.mxu0 %v883
    %981 = vmatpush1.bf16.msra.mxu0 %v882
    %982 = vmatprep.subr.bf16.mxu0 %v891
    %983 = vmatpush1.bf16.msra.mxu0 %v890
    %984 = vmatprep.subr.bf16.mxu0 %v899
    %985 = vmatpush1.bf16.msra.mxu0 %v898
    %986 = vmatprep.subr.bf16.mxu0 0
    %987 = vmatpush1.bf16.msra.mxu0 0
    %988 = vmatprep.subr.bf16.mxu0 0
    %989 = vmatpush1.bf16.msra.mxu0 0
    %990 = vmatprep.subr.bf16.mxu0 0
    %991 = vmatpush1.bf16.msra.mxu0 0
    %992 = vmatprep.subr.bf16.mxu0 0
    %993 = vmatpush1.bf16.msra.mxu0 0
    %994 = vmatprep.subr.bf16.mxu0 0
    %995 = vmatpush1.bf16.msra.mxu0 0
    %996 = vmatprep.subr.bf16.mxu0 0
    %997 = vmatpush1.bf16.msra.mxu0 0
    %998 = vmatprep.subr.bf16.mxu0 0
    %999 = vmatpush1.bf16.msra.mxu0 0
    %1000 = vmatprep.subr.bf16.mxu0 0
    %1001 = vmatpush1.bf16.msra.mxu0 0
    %1002 = vmatprep.mubr.bf16.mxu0 0
    %1003 = vmatmul.mubr.bf16.gmra.mrb[0].mxu0 %v649
    %v1004 = vpop.f32.mrb[0].mxu0
    %v1005 = vadd.f32 0.0, %v1004
    %v1006 = vpop.f32.mrb[0].mxu0
    %v1007 = vadd.f32 0.0, %v1006
    %v1008 = vpop.f32.mrb[0].mxu0
    %v1009 = vpop.f32.mrb[0].mxu0
    %1010 = vdwg.mxu0
    %1011 = vmatprep.subr.bf16.mxu0 %v845
    %1012 = vmatpush1.bf16.msra.mxu0 %v844
    %1013 = vmatprep.subr.bf16.mxu0 %v853
    %1014 = vmatpush1.bf16.msra.mxu0 %v852
    %1015 = vmatprep.subr.bf16.mxu0 %v861
    %1016 = vmatpush1.bf16.msra.mxu0 %v860
    %1017 = vmatprep.subr.bf16.mxu0 %v869
    %1018 = vmatpush1.bf16.msra.mxu0 %v868
    %1019 = vmatprep.subr.bf16.mxu0 %v877
    %1020 = vmatpush1.bf16.msra.mxu0 %v876
    %1021 = vmatprep.subr.bf16.mxu0 %v885
    %1022 = vmatpush1.bf16.msra.mxu0 %v884
    %1023 = vmatprep.subr.bf16.mxu0 %v893
    %1024 = vmatpush1.bf16.msra.mxu0 %v892
    %1025 = vmatprep.subr.bf16.mxu0 %v901
    %1026 = vmatpush1.bf16.msra.mxu0 %v900
    %1027 = vmatprep.subr.bf16.mxu0 0
    %1028 = vmatpush1.bf16.msra.mxu0 0
    %1029 = vmatprep.subr.bf16.mxu0 0
    %1030 = vmatpush1.bf16.msra.mxu0 0
    %1031 = vmatprep.subr.bf16.mxu0 0
    %1032 = vmatpush1.bf16.msra.mxu0 0
    %1033 = vmatprep.subr.bf16.mxu0 0
    %1034 = vmatpush1.bf16.msra.mxu0 0
    %1035 = vmatprep.subr.bf16.mxu0 0
    %1036 = vmatpush1.bf16.msra.mxu0 0
    %1037 = vmatprep.subr.bf16.mxu0 0
    %1038 = vmatpush1.bf16.msra.mxu0 0
    %1039 = vmatprep.subr.bf16.mxu0 0
    %1040 = vmatpush1.bf16.msra.mxu0 0
    %1041 = vmatprep.subr.bf16.mxu0 0
    %1042 = vmatpush1.bf16.msra.mxu0 0
    %1043 = vmatprep.mubr.bf16.mxu0 0
    %1044 = vmatmul.mubr.bf16.gmra.mrb[0].mxu0 %v649
    %v1045 = vpop.f32.mrb[0].mxu0
    %v1046 = vadd.f32 0.0, %v1045
    %v1047 = vpop.f32.mrb[0].mxu0
    %v1048 = vadd.f32 0.0, %v1047
    %v1049 = vpop.f32.mrb[0].mxu0
    %v1050 = vpop.f32.mrb[0].mxu0
    %1051 = vdwg.mxu0
    %1052 = vmatprep.subr.bf16.mxu0 %v847
    %1053 = vmatpush1.bf16.msra.mxu0 %v846
    %1054 = vmatprep.subr.bf16.mxu0 %v855
    %1055 = vmatpush1.bf16.msra.mxu0 %v854
    %1056 = vmatprep.subr.bf16.mxu0 %v863
    %1057 = vmatpush1.bf16.msra.mxu0 %v862
    %1058 = vmatprep.subr.bf16.mxu0 %v871
    %1059 = vmatpush1.bf16.msra.mxu0 %v870
    %1060 = vmatprep.subr.bf16.mxu0 %v879
    %1061 = vmatpush1.bf16.msra.mxu0 %v878
    %1062 = vmatprep.subr.bf16.mxu0 %v887
    %1063 = vmatpush1.bf16.msra.mxu0 %v886
    %1064 = vmatprep.subr.bf16.mxu0 %v895
    %1065 = vmatpush1.bf16.msra.mxu0 %v894
    %1066 = vmatprep.subr.bf16.mxu0 %v903
    %1067 = vmatpush1.bf16.msra.mxu0 %v902
    %1068 = vmatprep.subr.bf16.mxu0 0
    %1069 = vmatpush1.bf16.msra.mxu0 0
    %1070 = vmatprep.subr.bf16.mxu0 0
    %1071 = vmatpush1.bf16.msra.mxu0 0
    %1072 = vmatprep.subr.bf16.mxu0 0
    %1073 = vmatpush1.bf16.msra.mxu0 0
    %1074 = vmatprep.subr.bf16.mxu0 0
    %1075 = vmatpush1.bf16.msra.mxu0 0
    %1076 = vmatprep.subr.bf16.mxu0 0
    %1077 = vmatpush1.bf16.msra.mxu0 0
    %1078 = vmatprep.subr.bf16.mxu0 0
    %1079 = vmatpush1.bf16.msra.mxu0 0
    %1080 = vmatprep.subr.bf16.mxu0 0
    %1081 = vmatpush1.bf16.msra.mxu0 0
    %1082 = vmatprep.subr.bf16.mxu0 0
    %1083 = vmatpush1.bf16.msra.mxu0 0
    %1084 = vmatprep.mubr.bf16.mxu0 0
    %1085 = vmatmul.mubr.bf16.gmra.mrb[0].mxu0 %v649
    %v1086 = vpop.f32.mrb[0].mxu0
    %v1087 = vadd.f32 0.0, %v1086
    %v1088 = vpop.f32.mrb[0].mxu0
    %v1089 = vadd.f32 0.0, %v1088
    %v1090 = vpop.f32.mrb[0].mxu0
    %v1091 = vpop.f32.mrb[0].mxu0
    %1092 = vdwg.mxu0
    %1093 = vmatprep.subr.bf16.mxu0 %v849
    %1094 = vmatpush1.bf16.msra.mxu0 %v848
    %1095 = vmatprep.subr.bf16.mxu0 %v857
    %1096 = vmatpush1.bf16.msra.mxu0 %v856
    %1097 = vmatprep.subr.bf16.mxu0 %v865
    %1098 = vmatpush1.bf16.msra.mxu0 %v864
    %1099 = vmatprep.subr.bf16.mxu0 %v873
    %1100 = vmatpush1.bf16.msra.mxu0 %v872
    %1101 = vmatprep.subr.bf16.mxu0 %v881
    %1102 = vmatpush1.bf16.msra.mxu0 %v880
    %1103 = vmatprep.subr.bf16.mxu0 %v889
    %1104 = vmatpush1.bf16.msra.mxu0 %v888
    %1105 = vmatprep.subr.bf16.mxu0 %v897
    %1106 = vmatpush1.bf16.msra.mxu0 %v896
    %1107 = vmatprep.subr.bf16.mxu0 %v905
    %1108 = vmatpush1.bf16.msra.mxu0 %v904
    %1109 = vmatprep.subr.bf16.mxu0 0
    %1110 = vmatpush1.bf16.msra.mxu0 0
    %1111 = vmatprep.subr.bf16.mxu0 0
    %1112 = vmatpush1.bf16.msra.mxu0 0
    %1113 = vmatprep.subr.bf16.mxu0 0
    %1114 = vmatpush1.bf16.msra.mxu0 0
    %1115 = vmatprep.subr.bf16.mxu0 0
    %1116 = vmatpush1.bf16.msra.mxu0 0
    %1117 = vmatprep.subr.bf16.mxu0 0
    %1118 = vmatpush1.bf16.msra.mxu0 0
    %1119 = vmatprep.subr.bf16.mxu0 0
    %1120 = vmatpush1.bf16.msra.mxu0 0
    %1121 = vmatprep.subr.bf16.mxu0 0
    %1122 = vmatpush1.bf16.msra.mxu0 0
    %1123 = vmatprep.subr.bf16.mxu0 0
    %1124 = vmatpush1.bf16.msra.mxu0 0
    %1125 = vmatprep.mubr.bf16.mxu0 0
    %1126 = vmatmul.mubr.bf16.gmra.mrb[0].mxu0 %v649
    %v1127 = vpop.f32.mrb[0].mxu0
    %v1128 = vadd.f32 0.0, %v1127
    %v1129 = vpop.f32.mrb[0].mxu0
    %v1130 = vadd.f32 0.0, %v1129
    %v1131 = vpop.f32.mrb[0].mxu0
    %v1132 = vpop.f32.mrb[0].mxu0
    %1133 = vdwg.mxu0
    %v1166 = vunpack.c.l.b16 %v589
    %v1167 = vunpack.c.h.b16 %v589
    %v1168 = vunpack.c.l.b16 %v590
    %v1169 = vunpack.c.h.b16 %v590
    %v1170 = vunpack.c.l.b16 %v591
    %v1171 = vunpack.c.h.b16 %v591
    %v1172 = vunpack.c.l.b16 %v592
    %v1173 = vunpack.c.h.b16 %v592
    %v1174 = vunpack.c.l.b16 %v593
    %v1175 = vunpack.c.h.b16 %v593
    %v1176 = vunpack.c.l.b16 %v594
    %v1177 = vunpack.c.h.b16 %v594
    %v1178 = vunpack.c.l.b16 %v595
    %v1179 = vunpack.c.h.b16 %v595
    %v1180 = vunpack.c.l.b16 %v596
    %v1181 = vunpack.c.h.b16 %v596
    %v1182 = vunpack.c.l.b16 %v597
    %v1183 = vunpack.c.h.b16 %v597
    %v1184 = vunpack.c.l.b16 %v598
    %v1185 = vunpack.c.h.b16 %v598
    %v1186 = vunpack.c.l.b16 %v599
    %v1187 = vunpack.c.h.b16 %v599
    %v1188 = vunpack.c.l.b16 %v600
    %v1189 = vunpack.c.h.b16 %v600
    %v1190 = vunpack.c.l.b16 %v601
    %v1191 = vunpack.c.h.b16 %v601
    %v1192 = vunpack.c.l.b16 %v602
    %v1193 = vunpack.c.h.b16 %v602
    %v1194 = vunpack.c.l.b16 %v603
    %v1195 = vunpack.c.h.b16 %v603
    %v1196 = vunpack.c.l.b16 %v604
    %v1197 = vunpack.c.h.b16 %v604
    %v1198 = vunpack.c.l.b16 %v605
    %v1199 = vunpack.c.h.b16 %v605
    %v1200 = vunpack.c.l.b16 %v606
    %v1201 = vunpack.c.h.b16 %v606
    %v1202 = vunpack.c.l.b16 %v607
    %v1203 = vunpack.c.h.b16 %v607
    %v1204 = vunpack.c.l.b16 %v608
    %v1205 = vunpack.c.h.b16 %v608
    %v1206 = vunpack.c.l.b16 %v609
    %v1207 = vunpack.c.h.b16 %v609
    %v1208 = vunpack.c.l.b16 %v610
    %v1209 = vunpack.c.h.b16 %v610
    %v1210 = vunpack.c.l.b16 %v611
    %v1211 = vunpack.c.h.b16 %v611
    %v1212 = vunpack.c.l.b16 %v612
    %v1213 = vunpack.c.h.b16 %v612
    %v1214 = vunpack.c.l.b16 %v613
    %v1215 = vunpack.c.h.b16 %v613
    %v1216 = vunpack.c.l.b16 %v614
    %v1217 = vunpack.c.h.b16 %v614
    %v1218 = vunpack.c.l.b16 %v615
    %v1219 = vunpack.c.h.b16 %v615
    %v1220 = vunpack.c.l.b16 %v616
    %v1221 = vunpack.c.h.b16 %v616
    %v1222 = vunpack.c.l.b16 %v617
    %v1223 = vunpack.c.h.b16 %v617
    %v1224 = vunpack.c.l.b16 %v618
    %v1225 = vunpack.c.h.b16 %v618
    %v1226 = vunpack.c.l.b16 %v619
    %v1227 = vunpack.c.h.b16 %v619
    %v1228 = vunpack.c.l.b16 %v620
    %v1229 = vunpack.c.h.b16 %v620
    %v1230 = vpack.c.b16 %v1170, %v1166
    %v1231 = vpack.c.b16 %v1171, %v1167
    %v1232 = vpack.c.b16 %v1172, %v1168
    %v1233 = vpack.c.b16 %v1173, %v1169
    %v1234 = vpack.c.b16 %v1178, %v1174
    %v1235 = vpack.c.b16 %v1179, %v1175
    %v1236 = vpack.c.b16 %v1180, %v1176
    %v1237 = vpack.c.b16 %v1181, %v1177
    %v1238 = vpack.c.b16 %v1186, %v1182
    %v1239 = vpack.c.b16 %v1187, %v1183
    %v1240 = vpack.c.b16 %v1188, %v1184
    %v1241 = vpack.c.b16 %v1189, %v1185
    %v1242 = vpack.c.b16 %v1194, %v1190
    %v1243 = vpack.c.b16 %v1195, %v1191
    %v1244 = vpack.c.b16 %v1196, %v1192
    %v1245 = vpack.c.b16 %v1197, %v1193
    %v1246 = vpack.c.b16 %v1202, %v1198
    %v1247 = vpack.c.b16 %v1203, %v1199
    %v1248 = vpack.c.b16 %v1204, %v1200
    %v1249 = vpack.c.b16 %v1205, %v1201
    %v1250 = vpack.c.b16 %v1210, %v1206
    %v1251 = vpack.c.b16 %v1211, %v1207
    %v1252 = vpack.c.b16 %v1212, %v1208
    %v1253 = vpack.c.b16 %v1213, %v1209
    %v1254 = vpack.c.b16 %v1218, %v1214
    %v1255 = vpack.c.b16 %v1219, %v1215
    %v1256 = vpack.c.b16 %v1220, %v1216
    %v1257 = vpack.c.b16 %v1221, %v1217
    %v1258 = vpack.c.b16 %v1226, %v1222
    %v1259 = vpack.c.b16 %v1227, %v1223
    %v1260 = vpack.c.b16 %v1228, %v1224
    %v1261 = vpack.c.b16 %v1229, %v1225
    %1294 = vmatprep.subr.bf16.mxu0 %v1231
    %1295 = vmatpush1.bf16.msra.mxu0 %v1230
    %1296 = vmatprep.subr.bf16.mxu0 %v1235
    %1297 = vmatpush1.bf16.msra.mxu0 %v1234
    %1298 = vmatprep.subr.bf16.mxu0 %v1239
    %1299 = vmatpush1.bf16.msra.mxu0 %v1238
    %1300 = vmatprep.subr.bf16.mxu0 %v1243
    %1301 = vmatpush1.bf16.msra.mxu0 %v1242
    %1302 = vmatprep.subr.bf16.mxu0 %v1247
    %1303 = vmatpush1.bf16.msra.mxu0 %v1246
    %1304 = vmatprep.subr.bf16.mxu0 %v1251
    %1305 = vmatpush1.bf16.msra.mxu0 %v1250
    %1306 = vmatprep.subr.bf16.mxu0 %v1255
    %1307 = vmatpush1.bf16.msra.mxu0 %v1254
    %1308 = vmatprep.subr.bf16.mxu0 %v1259
    %1309 = vmatpush1.bf16.msra.mxu0 %v1258
    %1310 = vmatprep.subr.bf16.mxu0 0
    %1311 = vmatpush1.bf16.msra.mxu0 0
    %1312 = vmatprep.subr.bf16.mxu0 0
    %1313 = vmatpush1.bf16.msra.mxu0 0
    %1314 = vmatprep.subr.bf16.mxu0 0
    %1315 = vmatpush1.bf16.msra.mxu0 0
    %1316 = vmatprep.subr.bf16.mxu0 0
    %1317 = vmatpush1.bf16.msra.mxu0 0
    %1318 = vmatprep.subr.bf16.mxu0 0
    %1319 = vmatpush1.bf16.msra.mxu0 0
    %1320 = vmatprep.subr.bf16.mxu0 0
    %1321 = vmatpush1.bf16.msra.mxu0 0
    %1322 = vmatprep.subr.bf16.mxu0 0
    %1323 = vmatpush1.bf16.msra.mxu0 0
    %1324 = vmatprep.subr.bf16.mxu0 0
    %1325 = vmatpush1.bf16.msra.mxu0 0
    %1326 = vmatprep.mubr.bf16.mxu0 0
    %1327 = vmatmul.mubr.bf16.gmra.mrb[0].mxu0 0
    %v1328 = vpop.f32.mrb[0].mxu0
    %v1329 = vadd.f32 0.0, %v1328
    %v1330 = vpop.f32.mrb[0].mxu0
    %v1331 = vadd.f32 0.0, %v1330
    %v1332 = vpop.f32.mrb[0].mxu0
    %v1333 = vpop.f32.mrb[0].mxu0
    %1334 = vdwg.mxu0
    %1335 = vmatprep.subr.bf16.mxu0 %v1233
    %1336 = vmatpush1.bf16.msra.mxu0 %v1232
    %1337 = vmatprep.subr.bf16.mxu0 %v1237
    %1338 = vmatpush1.bf16.msra.mxu0 %v1236
    %1339 = vmatprep.subr.bf16.mxu0 %v1241
    %1340 = vmatpush1.bf16.msra.mxu0 %v1240
    %1341 = vmatprep.subr.bf16.mxu0 %v1245
    %1342 = vmatpush1.bf16.msra.mxu0 %v1244
    %1343 = vmatprep.subr.bf16.mxu0 %v1249
    %1344 = vmatpush1.bf16.msra.mxu0 %v1248
    %1345 = vmatprep.subr.bf16.mxu0 %v1253
    %1346 = vmatpush1.bf16.msra.mxu0 %v1252
    %1347 = vmatprep.subr.bf16.mxu0 %v1257
    %1348 = vmatpush1.bf16.msra.mxu0 %v1256
    %1349 = vmatprep.subr.bf16.mxu0 %v1261
    %1350 = vmatpush1.bf16.msra.mxu0 %v1260
    %1351 = vmatprep.subr.bf16.mxu0 0
    %1352 = vmatpush1.bf16.msra.mxu0 0
    %1353 = vmatprep.subr.bf16.mxu0 0
    %1354 = vmatpush1.bf16.msra.mxu0 0
    %1355 = vmatprep.subr.bf16.mxu0 0
    %1356 = vmatpush1.bf16.msra.mxu0 0
    %1357 = vmatprep.subr.bf16.mxu0 0
    %1358 = vmatpush1.bf16.msra.mxu0 0
    %1359 = vmatprep.subr.bf16.mxu0 0
    %1360 = vmatpush1.bf16.msra.mxu0 0
    %1361 = vmatprep.subr.bf16.mxu0 0
    %1362 = vmatpush1.bf16.msra.mxu0 0
    %1363 = vmatprep.subr.bf16.mxu0 0
    %1364 = vmatpush1.bf16.msra.mxu0 0
    %1365 = vmatprep.subr.bf16.mxu0 0
    %1366 = vmatpush1.bf16.msra.mxu0 0
    %1367 = vmatprep.mubr.bf16.mxu0 0
    %1368 = vmatmul.mubr.bf16.gmra.mrb[0].mxu0 0
    %v1369 = vpop.f32.mrb[0].mxu0
    %v1370 = vadd.f32 0.0, %v1369
    %v1371 = vpop.f32.mrb[0].mxu0
    %v1372 = vadd.f32 0.0, %v1371
    %v1373 = vpop.f32.mrb[0].mxu0
    %v1374 = vpop.f32.mrb[0].mxu0
    %1375 = vdwg.mxu0
    %v1376 = vadd.f32 %v1087, %v1329
    %v1377 = vadd.f32 %v1089, %v1331
    %v1378 = vadd.f32 %v1128, %v1370
    %v1379 = vadd.f32 %v1130, %v1372
    %v1380 = vadd.f32 %v1376, %v508
    %v1381 = vadd.f32 %v1377, %v512
    %v1382 = vadd.f32 %v1378, %v516
    %v1383 = vadd.f32 %v1379, %v520
    %v1384 = vxor.u32 %v1380, 2147483648
    %v1385 = vxor.u32 %v1381, 2147483648
    %v1386 = vxor.u32 %v1382, 2147483648
    %v1387 = vmul.f32 %v1384, 1.442695
    %v1388 = vpow.pop %v1387
    %v1389 = vmul.f32 %v1385, 1.442695
    %v1390 = vpow.pop %v1389
    %v1391 = vmul.f32 %v1386, 1.442695
    %v1392 = vpow.pop %v1391
    %v1393 = vadd.f32 %v1388, 1.0
    %v1394 = vadd.f32 %v1390, 1.0
    %v1395 = vadd.f32 %v1392, 1.0
    %v1396 = vrcp.pop %v1393
    %v1397 = vmul.f32 1.0, %v1396
    %v1398 = vrcp.pop %v1394
    %v1399 = vmul.f32 1.0, %v1398
    %v1400 = vrcp.pop %v1395
    %v1401 = vmul.f32 1.0, %v1400
    %v1402 = vtanh.pop %v1383
    %v1403 = vmul.f32 %v1399, 0.0
    %v1404 = vmul.f32 %v1397, %v1402
    %v1405 = vadd.f32 %v1403, %v1404
    %v1406 = vtanh.pop %v1405
    %v1407 = vmul.f32 %v1401, %v1406
    %s1408 = scalar_lea.vmem [#allocation2], 32
    %v1409 = vld [vmem:[%s1408] sm:$0xff]
    %v1410 = vld [vmem:[%s1408 + $0x8] sm:$0xff]
    %v1411 = vld [vmem:[%s1408 + $0x10] sm:$0xff]
    %v1412 = vld [vmem:[%s1408 + $0x18] sm:$0xff]
    %v1413 = vadd.f32 %v1409, %v1005
    %v1414 = vadd.f32 %v1410, %v1007
    %v1415 = vadd.f32 %v1411, %v1046
    %v1416 = vadd.f32 %v1412, %v1048
    %v1417 = vxor.u32 %v1413, 2147483648
    %v1418 = vxor.u32 %v1414, 2147483648
    %v1419 = vxor.u32 %v1415, 2147483648
    %v1420 = vmul.f32 %v1417, 1.442695
    %v1421 = vpow.pop %v1420
    %v1422 = vmul.f32 %v1418, 1.442695
    %v1423 = vpow.pop %v1422
    %v1424 = vmul.f32 %v1419, 1.442695
    %v1425 = vpow.pop %v1424
    %v1426 = vadd.f32 %v1421, 1.0
    %v1427 = vadd.f32 %v1423, 1.0
    %v1428 = vadd.f32 %v1425, 1.0
    %v1429 = vrcp.pop %v1426
    %v1430 = vmul.f32 1.0, %v1429
    %v1431 = vrcp.pop %v1427
    %v1432 = vmul.f32 1.0, %v1431
    %v1433 = vrcp.pop %v1428
    %v1434 = vmul.f32 1.0, %v1433
    %v1435 = vtanh.pop %v1416
    %v1436 = vmul.f32 %v1432, %v646
    %v1437 = vmul.f32 %v1430, %v1435
    %v1438 = vadd.f32 %v1436, %v1437
    %v1439 = vtanh.pop %v1438
    %v1440 = vmul.f32 %v1434, %v1439
    %v1441 = vpack.c.bf16 %v1440, %v1440
    %1442 = vmatprep.subr.bf16.mxu0 %v843
    %1443 = vmatpush1.bf16.msra.mxu0 %v842
    %1444 = vmatprep.subr.bf16.mxu0 %v851
    %1445 = vmatpush1.bf16.msra.mxu0 %v850
    %1446 = vmatprep.subr.bf16.mxu0 %v859
    %1447 = vmatpush1.bf16.msra.mxu0 %v858
    %1448 = vmatprep.subr.bf16.mxu0 %v867
    %1449 = vmatpush1.bf16.msra.mxu0 %v866
    %1450 = vmatprep.subr.bf16.mxu0 %v875
    %1451 = vmatpush1.bf16.msra.mxu0 %v874
    %1452 = vmatprep.subr.bf16.mxu0 %v883
    %1453 = vmatpush1.bf16.msra.mxu0 %v882
    %1454 = vmatprep.subr.bf16.mxu0 %v891
    %1455 = vmatpush1.bf16.msra.mxu0 %v890
    %1456 = vmatprep.subr.bf16.mxu0 %v899
    %1457 = vmatpush1.bf16.msra.mxu0 %v898
    %1458 = vmatprep.subr.bf16.mxu0 0
    %1459 = vmatpush1.bf16.msra.mxu0 0
    %1460 = vmatprep.subr.bf16.mxu0 0
    %1461 = vmatpush1.bf16.msra.mxu0 0
    %1462 = vmatprep.subr.bf16.mxu0 0
    %1463 = vmatpush1.bf16.msra.mxu0 0
    %1464 = vmatprep.subr.bf16.mxu0 0
    %1465 = vmatpush1.bf16.msra.mxu0 0
    %1466 = vmatprep.subr.bf16.mxu0 0
    %1467 = vmatpush1.bf16.msra.mxu0 0
    %1468 = vmatprep.subr.bf16.mxu0 0
    %1469 = vmatpush1.bf16.msra.mxu0 0
    %1470 = vmatprep.subr.bf16.mxu0 0
    %1471 = vmatpush1.bf16.msra.mxu0 0
    %1472 = vmatprep.subr.bf16.mxu0 0
    %1473 = vmatpush1.bf16.msra.mxu0 0
    %1474 = vmatprep.mubr.bf16.mxu0 0
    %1475 = vmatmul.mubr.bf16.gmra.mrb[0].mxu0 %v1441
    %v1476 = vpop.f32.mrb[0].mxu0
    %v1477 = vadd.f32 0.0, %v1476
    %v1478 = vpop.f32.mrb[0].mxu0
    %v1479 = vadd.f32 0.0, %v1478
    %v1480 = vpop.f32.mrb[0].mxu0
    %v1481 = vpop.f32.mrb[0].mxu0
    %1482 = vdwg.mxu0
    %1483 = vmatprep.subr.bf16.mxu0 %v845
    %1484 = vmatpush1.bf16.msra.mxu0 %v844
    %1485 = vmatprep.subr.bf16.mxu0 %v853
    %1486 = vmatpush1.bf16.msra.mxu0 %v852
    %1487 = vmatprep.subr.bf16.mxu0 %v861
    %1488 = vmatpush1.bf16.msra.mxu0 %v860
    %1489 = vmatprep.subr.bf16.mxu0 %v869
    %1490 = vmatpush1.bf16.msra.mxu0 %v868
    %1491 = vmatprep.subr.bf16.mxu0 %v877
    %1492 = vmatpush1.bf16.msra.mxu0 %v876
    %1493 = vmatprep.subr.bf16.mxu0 %v885
    %1494 = vmatpush1.bf16.msra.mxu0 %v884
    %1495 = vmatprep.subr.bf16.mxu0 %v893
    %1496 = vmatpush1.bf16.msra.mxu0 %v892
    %1497 = vmatprep.subr.bf16.mxu0 %v901
    %1498 = vmatpush1.bf16.msra.mxu0 %v900
    %1499 = vmatprep.subr.bf16.mxu0 0
    %1500 = vmatpush1.bf16.msra.mxu0 0
    %1501 = vmatprep.subr.bf16.mxu0 0
    %1502 = vmatpush1.bf16.msra.mxu0 0
    %1503 = vmatprep.subr.bf16.mxu0 0
    %1504 = vmatpush1.bf16.msra.mxu0 0
    %1505 = vmatprep.subr.bf16.mxu0 0
    %1506 = vmatpush1.bf16.msra.mxu0 0
    %1507 = vmatprep.subr.bf16.mxu0 0
    %1508 = vmatpush1.bf16.msra.mxu0 0
    %1509 = vmatprep.subr.bf16.mxu0 0
    %1510 = vmatpush1.bf16.msra.mxu0 0
    %1511 = vmatprep.subr.bf16.mxu0 0
    %1512 = vmatpush1.bf16.msra.mxu0 0
    %1513 = vmatprep.subr.bf16.mxu0 0
    %1514 = vmatpush1.bf16.msra.mxu0 0
    %1515 = vmatprep.mubr.bf16.mxu0 0
    %1516 = vmatmul.mubr.bf16.gmra.mrb[0].mxu0 %v1441
    %v1517 = vpop.f32.mrb[0].mxu0
    %v1518 = vadd.f32 0.0, %v1517
    %v1519 = vpop.f32.mrb[0].mxu0
    %v1520 = vadd.f32 0.0, %v1519
    %v1521 = vpop.f32.mrb[0].mxu0
    %v1522 = vpop.f32.mrb[0].mxu0
    %1523 = vdwg.mxu0
    %1524 = vmatprep.subr.bf16.mxu0 %v847
    %1525 = vmatpush1.bf16.msra.mxu0 %v846
    %1526 = vmatprep.subr.bf16.mxu0 %v855
    %1527 = vmatpush1.bf16.msra.mxu0 %v854
    %1528 = vmatprep.subr.bf16.mxu0 %v863
    %1529 = vmatpush1.bf16.msra.mxu0 %v862
    %1530 = vmatprep.subr.bf16.mxu0 %v871
    %1531 = vmatpush1.bf16.msra.mxu0 %v870
    %1532 = vmatprep.subr.bf16.mxu0 %v879
    %1533 = vmatpush1.bf16.msra.mxu0 %v878
    %1534 = vmatprep.subr.bf16.mxu0 %v887
    %1535 = vmatpush1.bf16.msra.mxu0 %v886
    %1536 = vmatprep.subr.bf16.mxu0 %v895
    %1537 = vmatpush1.bf16.msra.mxu0 %v894
    %1538 = vmatprep.subr.bf16.mxu0 %v903
    %1539 = vmatpush1.bf16.msra.mxu0 %v902
    %1540 = vmatprep.subr.bf16.mxu0 0
    %1541 = vmatpush1.bf16.msra.mxu0 0
    %1542 = vmatprep.subr.bf16.mxu0 0
    %1543 = vmatpush1.bf16.msra.mxu0 0
    %1544 = vmatprep.subr.bf16.mxu0 0
    %1545 = vmatpush1.bf16.msra.mxu0 0
    %1546 = vmatprep.subr.bf16.mxu0 0
    %1547 = vmatpush1.bf16.msra.mxu0 0
    %1548 = vmatprep.subr.bf16.mxu0 0
    %1549 = vmatpush1.bf16.msra.mxu0 0
    %1550 = vmatprep.subr.bf16.mxu0 0
    %1551 = vmatpush1.bf16.msra.mxu0 0
    %1552 = vmatprep.subr.bf16.mxu0 0
    %1553 = vmatpush1.bf16.msra.mxu0 0
    %1554 = vmatprep.subr.bf16.mxu0 0
    %1555 = vmatpush1.bf16.msra.mxu0 0
    %1556 = vmatprep.mubr.bf16.mxu0 0
    %1557 = vmatmul.mubr.bf16.gmra.mrb[0].mxu0 %v1441
    %v1558 = vpop.f32.mrb[0].mxu0
    %v1559 = vadd.f32 0.0, %v1558
    %v1560 = vpop.f32.mrb[0].mxu0
    %v1561 = vadd.f32 0.0, %v1560
    %v1562 = vpop.f32.mrb[0].mxu0
    %v1563 = vpop.f32.mrb[0].mxu0
    %1564 = vdwg.mxu0
    %1565 = vmatprep.subr.bf16.mxu0 %v849
    %1566 = vmatpush1.bf16.msra.mxu0 %v848
    %1567 = vmatprep.subr.bf16.mxu0 %v857
    %1568 = vmatpush1.bf16.msra.mxu0 %v856
    %1569 = vmatprep.subr.bf16.mxu0 %v865
    %1570 = vmatpush1.bf16.msra.mxu0 %v864
    %1571 = vmatprep.subr.bf16.mxu0 %v873
    %1572 = vmatpush1.bf16.msra.mxu0 %v872
    %1573 = vmatprep.subr.bf16.mxu0 %v881
    %1574 = vmatpush1.bf16.msra.mxu0 %v880
    %1575 = vmatprep.subr.bf16.mxu0 %v889
    %1576 = vmatpush1.bf16.msra.mxu0 %v888
    %1577 = vmatprep.subr.bf16.mxu0 %v897
    %1578 = vmatpush1.bf16.msra.mxu0 %v896
    %1579 = vmatprep.subr.bf16.mxu0 %v905
    %1580 = vmatpush1.bf16.msra.mxu0 %v904
    %1581 = vmatprep.subr.bf16.mxu0 0
    %1582 = vmatpush1.bf16.msra.mxu0 0
    %1583 = vmatprep.subr.bf16.mxu0 0
    %1584 = vmatpush1.bf16.msra.mxu0 0
    %1585 = vmatprep.subr.bf16.mxu0 0
    %1586 = vmatpush1.bf16.msra.mxu0 0
    %1587 = vmatprep.subr.bf16.mxu0 0
    %1588 = vmatpush1.bf16.msra.mxu0 0
    %1589 = vmatprep.subr.bf16.mxu0 0
    %1590 = vmatpush1.bf16.msra.mxu0 0
    %1591 = vmatprep.subr.bf16.mxu0 0
    %1592 = vmatpush1.bf16.msra.mxu0 0
    %1593 = vmatprep.subr.bf16.mxu0 0
    %1594 = vmatpush1.bf16.msra.mxu0 0
    %1595 = vmatprep.subr.bf16.mxu0 0
    %1596 = vmatpush1.bf16.msra.mxu0 0
    %1597 = vmatprep.mubr.bf16.mxu0 0
    %1598 = vmatmul.mubr.bf16.gmra.mrb[0].mxu0 %v1441
    %v1599 = vpop.f32.mrb[0].mxu0
    %v1600 = vadd.f32 0.0, %v1599
    %v1601 = vpop.f32.mrb[0].mxu0
    %v1602 = vadd.f32 0.0, %v1601
    %v1603 = vpop.f32.mrb[0].mxu0
    %v1604 = vpop.f32.mrb[0].mxu0
    %1605 = vdwg.mxu0
    %v1606 = vpack.c.bf16 %v1407, %v1407
    %1607 = vmatprep.subr.bf16.mxu0 %v1231
    %1608 = vmatpush1.bf16.msra.mxu0 %v1230
    %1609 = vmatprep.subr.bf16.mxu0 %v1235
    %1610 = vmatpush1.bf16.msra.mxu0 %v1234
    %1611 = vmatprep.subr.bf16.mxu0 %v1239
    %1612 = vmatpush1.bf16.msra.mxu0 %v1238
    %1613 = vmatprep.subr.bf16.mxu0 %v1243
    %1614 = vmatpush1.bf16.msra.mxu0 %v1242
    %1615 = vmatprep.subr.bf16.mxu0 %v1247
    %1616 = vmatpush1.bf16.msra.mxu0 %v1246
    %1617 = vmatprep.subr.bf16.mxu0 %v1251
    %1618 = vmatpush1.bf16.msra.mxu0 %v1250
    %1619 = vmatprep.subr.bf16.mxu0 %v1255
    %1620 = vmatpush1.bf16.msra.mxu0 %v1254
    %1621 = vmatprep.subr.bf16.mxu0 %v1259
    %1622 = vmatpush1.bf16.msra.mxu0 %v1258
    %1623 = vmatprep.subr.bf16.mxu0 0
    %1624 = vmatpush1.bf16.msra.mxu0 0
    %1625 = vmatprep.subr.bf16.mxu0 0
    %1626 = vmatpush1.bf16.msra.mxu0 0
    %1627 = vmatprep.subr.bf16.mxu0 0
    %1628 = vmatpush1.bf16.msra.mxu0 0
    %1629 = vmatprep.subr.bf16.mxu0 0
    %1630 = vmatpush1.bf16.msra.mxu0 0
    %1631 = vmatprep.subr.bf16.mxu0 0
    %1632 = vmatpush1.bf16.msra.mxu0 0
    %1633 = vmatprep.subr.bf16.mxu0 0
    %1634 = vmatpush1.bf16.msra.mxu0 0
    %1635 = vmatprep.subr.bf16.mxu0 0
    %1636 = vmatpush1.bf16.msra.mxu0 0
    %1637 = vmatprep.subr.bf16.mxu0 0
    %1638 = vmatpush1.bf16.msra.mxu0 0
    %1639 = vmatprep.mubr.bf16.mxu0 0
    %1640 = vmatmul.mubr.bf16.gmra.mrb[0].mxu0 %v1606
    %v1641 = vpop.f32.mrb[0].mxu0
    %v1642 = vadd.f32 0.0, %v1641
    %v1643 = vpop.f32.mrb[0].mxu0
    %v1644 = vadd.f32 0.0, %v1643
    %v1645 = vpop.f32.mrb[0].mxu0
    %v1646 = vpop.f32.mrb[0].mxu0
    %1647 = vdwg.mxu0
    %1648 = vmatprep.subr.bf16.mxu0 %v1233
    %1649 = vmatpush1.bf16.msra.mxu0 %v1232
    %1650 = vmatprep.subr.bf16.mxu0 %v1237
    %1651 = vmatpush1.bf16.msra.mxu0 %v1236
    %1652 = vmatprep.subr.bf16.mxu0 %v1241
    %1653 = vmatpush1.bf16.msra.mxu0 %v1240
    %1654 = vmatprep.subr.bf16.mxu0 %v1245
    %1655 = vmatpush1.bf16.msra.mxu0 %v1244
    %1656 = vmatprep.subr.bf16.mxu0 %v1249
    %1657 = vmatpush1.bf16.msra.mxu0 %v1248
    %1658 = vmatprep.subr.bf16.mxu0 %v1253
    %1659 = vmatpush1.bf16.msra.mxu0 %v1252
    %1660 = vmatprep.subr.bf16.mxu0 %v1257
    %1661 = vmatpush1.bf16.msra.mxu0 %v1256
    %1662 = vmatprep.subr.bf16.mxu0 %v1261
    %1663 = vmatpush1.bf16.msra.mxu0 %v1260
    %1664 = vmatprep.subr.bf16.mxu0 0
    %1665 = vmatpush1.bf16.msra.mxu0 0
    %1666 = vmatprep.subr.bf16.mxu0 0
    %1667 = vmatpush1.bf16.msra.mxu0 0
    %1668 = vmatprep.subr.bf16.mxu0 0
    %1669 = vmatpush1.bf16.msra.mxu0 0
    %1670 = vmatprep.subr.bf16.mxu0 0
    %1671 = vmatpush1.bf16.msra.mxu0 0
    %1672 = vmatprep.subr.bf16.mxu0 0
    %1673 = vmatpush1.bf16.msra.mxu0 0
    %1674 = vmatprep.subr.bf16.mxu0 0
    %1675 = vmatpush1.bf16.msra.mxu0 0
    %1676 = vmatprep.subr.bf16.mxu0 0
    %1677 = vmatpush1.bf16.msra.mxu0 0
    %1678 = vmatprep.subr.bf16.mxu0 0
    %1679 = vmatpush1.bf16.msra.mxu0 0
    %1680 = vmatprep.mubr.bf16.mxu0 0
    %1681 = vmatmul.mubr.bf16.gmra.mrb[0].mxu0 %v1606
    %v1682 = vpop.f32.mrb[0].mxu0
    %v1683 = vadd.f32 0.0, %v1682
    %v1684 = vpop.f32.mrb[0].mxu0
    %v1685 = vadd.f32 0.0, %v1684
    %v1686 = vpop.f32.mrb[0].mxu0
    %v1687 = vpop.f32.mrb[0].mxu0
    %1688 = vdwg.mxu0
    %v1689 = vadd.f32 %v1559, %v1642
    %v1690 = vadd.f32 %v1561, %v1644
    %v1691 = vadd.f32 %v1600, %v1683
    %v1692 = vadd.f32 %v1602, %v1685
    %v1693 = vadd.f32 %v1689, %v508
    %v1694 = vadd.f32 %v1690, %v512
    %v1695 = vadd.f32 %v1691, %v516
    %v1696 = vadd.f32 %v1692, %v520
    %v1697 = vxor.u32 %v1693, 2147483648
    %v1698 = vxor.u32 %v1694, 2147483648
    %v1699 = vxor.u32 %v1695, 2147483648
    %v1700 = vmul.f32 %v1697, 1.442695
    %v1701 = vpow.pop %v1700
    %v1702 = vmul.f32 %v1698, 1.442695
    %v1703 = vpow.pop %v1702
    %v1704 = vmul.f32 %v1699, 1.442695
    %v1705 = vpow.pop %v1704
    %v1706 = vadd.f32 %v1701, 1.0
    %v1707 = vadd.f32 %v1703, 1.0
    %v1708 = vadd.f32 %v1705, 1.0
    %v1709 = vrcp.pop %v1706
    %v1710 = vmul.f32 1.0, %v1709
    %v1711 = vrcp.pop %v1707
    %v1712 = vmul.f32 1.0, %v1711
    %v1713 = vrcp.pop %v1708
    %v1714 = vmul.f32 1.0, %v1713
    %v1715 = vtanh.pop %v1696
    %v1716 = vmul.f32 %v1712, %v1405
    %v1717 = vmul.f32 %v1710, %v1715
    %v1718 = vadd.f32 %v1716, %v1717
    %v1719 = vtanh.pop %v1718
    %v1720 = vmul.f32 %v1714, %v1719
    %s1721 = scalar_lea.vmem [#allocation2], 64
    %v1722 = vld [vmem:[%s1721] sm:$0xff]
    %v1723 = vld [vmem:[%s1721 + $0x8] sm:$0xff]
    %v1724 = vld [vmem:[%s1721 + $0x10] sm:$0xff]
    %v1725 = vld [vmem:[%s1721 + $0x18] sm:$0xff]
    %v1726 = vadd.f32 %v1722, %v1477
    %v1727 = vadd.f32 %v1723, %v1479
    %v1728 = vadd.f32 %v1724, %v1518
    %v1729 = vadd.f32 %v1725, %v1520
    %v1730 = vxor.u32 %v1726, 2147483648
    %v1731 = vxor.u32 %v1727, 2147483648
    %v1732 = vxor.u32 %v1728, 2147483648
    %v1733 = vmul.f32 %v1730, 1.442695
    %v1734 = vpow.pop %v1733
    %v1735 = vmul.f32 %v1731, 1.442695
    %v1736 = vpow.pop %v1735
    %v1737 = vmul.f32 %v1732, 1.442695
    %v1738 = vpow.pop %v1737
    %v1739 = vadd.f32 %v1734, 1.0
    %v1740 = vadd.f32 %v1736, 1.0
    %v1741 = vadd.f32 %v1738, 1.0
    %v1742 = vrcp.pop %v1739
    %v1743 = vmul.f32 1.0, %v1742
    %v1744 = vrcp.pop %v1740
    %v1745 = vmul.f32 1.0, %v1744
    %v1746 = vrcp.pop %v1741
    %v1747 = vmul.f32 1.0, %v1746
    %v1748 = vtanh.pop %v1729
    %v1749 = vmul.f32 %v1745, %v1438
    %v1750 = vmul.f32 %v1743, %v1748
    %v1751 = vadd.f32 %v1749, %v1750
    %v1752 = vtanh.pop %v1751
    %v1753 = vmul.f32 %v1747, %v1752
    %v1754 = vpack.c.bf16 %v1753, %v1753
    %1755 = vmatprep.subr.bf16.mxu0 %v843
    %1756 = vmatpush1.bf16.msra.mxu0 %v842
    %1757 = vmatprep.subr.bf16.mxu0 %v851
    %1758 = vmatpush1.bf16.msra.mxu0 %v850
    %1759 = vmatprep.subr.bf16.mxu0 %v859
    %1760 = vmatpush1.bf16.msra.mxu0 %v858
    %1761 = vmatprep.subr.bf16.mxu0 %v867
    %1762 = vmatpush1.bf16.msra.mxu0 %v866
    %1763 = vmatprep.subr.bf16.mxu0 %v875
    %1764 = vmatpush1.bf16.msra.mxu0 %v874
    %1765 = vmatprep.subr.bf16.mxu0 %v883
    %1766 = vmatpush1.bf16.msra.mxu0 %v882
    %1767 = vmatprep.subr.bf16.mxu0 %v891
    %1768 = vmatpush1.bf16.msra.mxu0 %v890
    %1769 = vmatprep.subr.bf16.mxu0 %v899
    %1770 = vmatpush1.bf16.msra.mxu0 %v898
    %1771 = vmatprep.subr.bf16.mxu0 0
    %1772 = vmatpush1.bf16.msra.mxu0 0
    %1773 = vmatprep.subr.bf16.mxu0 0
    %1774 = vmatpush1.bf16.msra.mxu0 0
    %1775 = vmatprep.subr.bf16.mxu0 0
    %1776 = vmatpush1.bf16.msra.mxu0 0
    %1777 = vmatprep.subr.bf16.mxu0 0
    %1778 = vmatpush1.bf16.msra.mxu0 0
    %1779 = vmatprep.subr.bf16.mxu0 0
    %1780 = vmatpush1.bf16.msra.mxu0 0
    %1781 = vmatprep.subr.bf16.mxu0 0
    %1782 = vmatpush1.bf16.msra.mxu0 0
    %1783 = vmatprep.subr.bf16.mxu0 0
    %1784 = vmatpush1.bf16.msra.mxu0 0
    %1785 = vmatprep.subr.bf16.mxu0 0
    %1786 = vmatpush1.bf16.msra.mxu0 0
    %1787 = vmatprep.mubr.bf16.mxu0 0
    %1788 = vmatmul.mubr.bf16.gmra.mrb[0].mxu0 %v1754
    %v1789 = vpop.f32.mrb[0].mxu0
    %v1790 = vadd.f32 0.0, %v1789
    %v1791 = vpop.f32.mrb[0].mxu0
    %v1792 = vadd.f32 0.0, %v1791
    %v1793 = vpop.f32.mrb[0].mxu0
    %v1794 = vpop.f32.mrb[0].mxu0
    %1795 = vdwg.mxu0
    %1796 = vmatprep.subr.bf16.mxu0 %v845
    %1797 = vmatpush1.bf16.msra.mxu0 %v844
    %1798 = vmatprep.subr.bf16.mxu0 %v853
    %1799 = vmatpush1.bf16.msra.mxu0 %v852
    %1800 = vmatprep.subr.bf16.mxu0 %v861
    %1801 = vmatpush1.bf16.msra.mxu0 %v860
    %1802 = vmatprep.subr.bf16.mxu0 %v869
    %1803 = vmatpush1.bf16.msra.mxu0 %v868
    %1804 = vmatprep.subr.bf16.mxu0 %v877
    %1805 = vmatpush1.bf16.msra.mxu0 %v876
    %1806 = vmatprep.subr.bf16.mxu0 %v885
    %1807 = vmatpush1.bf16.msra.mxu0 %v884
    %1808 = vmatprep.subr.bf16.mxu0 %v893
    %1809 = vmatpush1.bf16.msra.mxu0 %v892
    %1810 = vmatprep.subr.bf16.mxu0 %v901
    %1811 = vmatpush1.bf16.msra.mxu0 %v900
    %1812 = vmatprep.subr.bf16.mxu0 0
    %1813 = vmatpush1.bf16.msra.mxu0 0
    %1814 = vmatprep.subr.bf16.mxu0 0
    %1815 = vmatpush1.bf16.msra.mxu0 0
    %1816 = vmatprep.subr.bf16.mxu0 0
    %1817 = vmatpush1.bf16.msra.mxu0 0
    %1818 = vmatprep.subr.bf16.mxu0 0
    %1819 = vmatpush1.bf16.msra.mxu0 0
    %1820 = vmatprep.subr.bf16.mxu0 0
    %1821 = vmatpush1.bf16.msra.mxu0 0
    %1822 = vmatprep.subr.bf16.mxu0 0
    %1823 = vmatpush1.bf16.msra.mxu0 0
    %1824 = vmatprep.subr.bf16.mxu0 0
    %1825 = vmatpush1.bf16.msra.mxu0 0
    %1826 = vmatprep.subr.bf16.mxu0 0
    %1827 = vmatpush1.bf16.msra.mxu0 0
    %1828 = vmatprep.mubr.bf16.mxu0 0
    %1829 = vmatmul.mubr.bf16.gmra.mrb[0].mxu0 %v1754
    %v1830 = vpop.f32.mrb[0].mxu0
    %v1831 = vadd.f32 0.0, %v1830
    %v1832 = vpop.f32.mrb[0].mxu0
    %v1833 = vadd.f32 0.0, %v1832
    %v1834 = vpop.f32.mrb[0].mxu0
    %v1835 = vpop.f32.mrb[0].mxu0
    %1836 = vdwg.mxu0
    %1837 = vmatprep.subr.bf16.mxu0 %v847
    %1838 = vmatpush1.bf16.msra.mxu0 %v846
    %1839 = vmatprep.subr.bf16.mxu0 %v855
    %1840 = vmatpush1.bf16.msra.mxu0 %v854
    %1841 = vmatprep.subr.bf16.mxu0 %v863
    %1842 = vmatpush1.bf16.msra.mxu0 %v862
    %1843 = vmatprep.subr.bf16.mxu0 %v871
    %1844 = vmatpush1.bf16.msra.mxu0 %v870
    %1845 = vmatprep.subr.bf16.mxu0 %v879
    %1846 = vmatpush1.bf16.msra.mxu0 %v878
    %1847 = vmatprep.subr.bf16.mxu0 %v887
    %1848 = vmatpush1.bf16.msra.mxu0 %v886
    %1849 = vmatprep.subr.bf16.mxu0 %v895
    %1850 = vmatpush1.bf16.msra.mxu0 %v894
    %1851 = vmatprep.subr.bf16.mxu0 %v903
    %1852 = vmatpush1.bf16.msra.mxu0 %v902
    %1853 = vmatprep.subr.bf16.mxu0 0
    %1854 = vmatpush1.bf16.msra.mxu0 0
    %1855 = vmatprep.subr.bf16.mxu0 0
    %1856 = vmatpush1.bf16.msra.mxu0 0
    %1857 = vmatprep.subr.bf16.mxu0 0
    %1858 = vmatpush1.bf16.msra.mxu0 0
    %1859 = vmatprep.subr.bf16.mxu0 0
    %1860 = vmatpush1.bf16.msra.mxu0 0
    %1861 = vmatprep.subr.bf16.mxu0 0
    %1862 = vmatpush1.bf16.msra.mxu0 0
    %1863 = vmatprep.subr.bf16.mxu0 0
    %1864 = vmatpush1.bf16.msra.mxu0 0
    %1865 = vmatprep.subr.bf16.mxu0 0
    %1866 = vmatpush1.bf16.msra.mxu0 0
    %1867 = vmatprep.subr.bf16.mxu0 0
    %1868 = vmatpush1.bf16.msra.mxu0 0
    %1869 = vmatprep.mubr.bf16.mxu0 0
    %1870 = vmatmul.mubr.bf16.gmra.mrb[0].mxu0 %v1754
    %v1871 = vpop.f32.mrb[0].mxu0
    %v1872 = vadd.f32 0.0, %v1871
    %v1873 = vpop.f32.mrb[0].mxu0
    %v1874 = vadd.f32 0.0, %v1873
    %v1875 = vpop.f32.mrb[0].mxu0
    %v1876 = vpop.f32.mrb[0].mxu0
    %1877 = vdwg.mxu0
    %1878 = vmatprep.subr.bf16.mxu0 %v849
    %1879 = vmatpush1.bf16.msra.mxu0 %v848
    %1880 = vmatprep.subr.bf16.mxu0 %v857
    %1881 = vmatpush1.bf16.msra.mxu0 %v856
    %1882 = vmatprep.subr.bf16.mxu0 %v865
    %1883 = vmatpush1.bf16.msra.mxu0 %v864
    %1884 = vmatprep.subr.bf16.mxu0 %v873
    %1885 = vmatpush1.bf16.msra.mxu0 %v872
    %1886 = vmatprep.subr.bf16.mxu0 %v881
    %1887 = vmatpush1.bf16.msra.mxu0 %v880
    %1888 = vmatprep.subr.bf16.mxu0 %v889
    %1889 = vmatpush1.bf16.msra.mxu0 %v888
    %1890 = vmatprep.subr.bf16.mxu0 %v897
    %1891 = vmatpush1.bf16.msra.mxu0 %v896
    %1892 = vmatprep.subr.bf16.mxu0 %v905
    %1893 = vmatpush1.bf16.msra.mxu0 %v904
    %1894 = vmatprep.subr.bf16.mxu0 0
    %1895 = vmatpush1.bf16.msra.mxu0 0
    %1896 = vmatprep.subr.bf16.mxu0 0
    %1897 = vmatpush1.bf16.msra.mxu0 0
    %1898 = vmatprep.subr.bf16.mxu0 0
    %1899 = vmatpush1.bf16.msra.mxu0 0
    %1900 = vmatprep.subr.bf16.mxu0 0
    %1901 = vmatpush1.bf16.msra.mxu0 0
    %1902 = vmatprep.subr.bf16.mxu0 0
    %1903 = vmatpush1.bf16.msra.mxu0 0
    %1904 = vmatprep.subr.bf16.mxu0 0
    %1905 = vmatpush1.bf16.msra.mxu0 0
    %1906 = vmatprep.subr.bf16.mxu0 0
    %1907 = vmatpush1.bf16.msra.mxu0 0
    %1908 = vmatprep.subr.bf16.mxu0 0
    %1909 = vmatpush1.bf16.msra.mxu0 0
    %1910 = vmatprep.mubr.bf16.mxu0 0
    %1911 = vmatmul.mubr.bf16.gmra.mrb[0].mxu0 %v1754
    %v1912 = vpop.f32.mrb[0].mxu0
    %v1913 = vadd.f32 0.0, %v1912
    %v1914 = vpop.f32.mrb[0].mxu0
    %v1915 = vadd.f32 0.0, %v1914
    %v1916 = vpop.f32.mrb[0].mxu0
    %v1917 = vpop.f32.mrb[0].mxu0
    %1918 = vdwg.mxu0
    %v1919 = vpack.c.bf16 %v1720, %v1720
    %1920 = vmatprep.subr.bf16.mxu0 %v1231
    %1921 = vmatpush1.bf16.msra.mxu0 %v1230
    %1922 = vmatprep.subr.bf16.mxu0 %v1235
    %1923 = vmatpush1.bf16.msra.mxu0 %v1234
    %1924 = vmatprep.subr.bf16.mxu0 %v1239
    %1925 = vmatpush1.bf16.msra.mxu0 %v1238
    %1926 = vmatprep.subr.bf16.mxu0 %v1243
    %1927 = vmatpush1.bf16.msra.mxu0 %v1242
    %1928 = vmatprep.subr.bf16.mxu0 %v1247
    %1929 = vmatpush1.bf16.msra.mxu0 %v1246
    %1930 = vmatprep.subr.bf16.mxu0 %v1251
    %1931 = vmatpush1.bf16.msra.mxu0 %v1250
    %1932 = vmatprep.subr.bf16.mxu0 %v1255
    %1933 = vmatpush1.bf16.msra.mxu0 %v1254
    %1934 = vmatprep.subr.bf16.mxu0 %v1259
    %1935 = vmatpush1.bf16.msra.mxu0 %v1258
    %1936 = vmatprep.subr.bf16.mxu0 0
    %1937 = vmatpush1.bf16.msra.mxu0 0
    %1938 = vmatprep.subr.bf16.mxu0 0
    %1939 = vmatpush1.bf16.msra.mxu0 0
    %1940 = vmatprep.subr.bf16.mxu0 0
    %1941 = vmatpush1.bf16.msra.mxu0 0
    %1942 = vmatprep.subr.bf16.mxu0 0
    %1943 = vmatpush1.bf16.msra.mxu0 0
    %1944 = vmatprep.subr.bf16.mxu0 0
    %1945 = vmatpush1.bf16.msra.mxu0 0
    %1946 = vmatprep.subr.bf16.mxu0 0
    %1947 = vmatpush1.bf16.msra.mxu0 0
    %1948 = vmatprep.subr.bf16.mxu0 0
    %1949 = vmatpush1.bf16.msra.mxu0 0
    %1950 = vmatprep.subr.bf16.mxu0 0
    %1951 = vmatpush1.bf16.msra.mxu0 0
    %1952 = vmatprep.mubr.bf16.mxu0 0
    %1953 = vmatmul.mubr.bf16.gmra.mrb[0].mxu0 %v1919
    %v1954 = vpop.f32.mrb[0].mxu0
    %v1955 = vadd.f32 0.0, %v1954
    %v1956 = vpop.f32.mrb[0].mxu0
    %v1957 = vadd.f32 0.0, %v1956
    %v1958 = vpop.f32.mrb[0].mxu0
    %v1959 = vpop.f32.mrb[0].mxu0
    %1960 = vdwg.mxu0
    %1961 = vmatprep.subr.bf16.mxu0 %v1233
    %1962 = vmatpush1.bf16.msra.mxu0 %v1232
    %1963 = vmatprep.subr.bf16.mxu0 %v1237
    %1964 = vmatpush1.bf16.msra.mxu0 %v1236
    %1965 = vmatprep.subr.bf16.mxu0 %v1241
    %1966 = vmatpush1.bf16.msra.mxu0 %v1240
    %1967 = vmatprep.subr.bf16.mxu0 %v1245
    %1968 = vmatpush1.bf16.msra.mxu0 %v1244
    %1969 = vmatprep.subr.bf16.mxu0 %v1249
    %1970 = vmatpush1.bf16.msra.mxu0 %v1248
    %1971 = vmatprep.subr.bf16.mxu0 %v1253
    %1972 = vmatpush1.bf16.msra.mxu0 %v1252
    %1973 = vmatprep.subr.bf16.mxu0 %v1257
    %1974 = vmatpush1.bf16.msra.mxu0 %v1256
    %1975 = vmatprep.subr.bf16.mxu0 %v1261
    %1976 = vmatpush1.bf16.msra.mxu0 %v1260
    %1977 = vmatprep.subr.bf16.mxu0 0
    %1978 = vmatpush1.bf16.msra.mxu0 0
    %1979 = vmatprep.subr.bf16.mxu0 0
    %1980 = vmatpush1.bf16.msra.mxu0 0
    %1981 = vmatprep.subr.bf16.mxu0 0
    %1982 = vmatpush1.bf16.msra.mxu0 0
    %1983 = vmatprep.subr.bf16.mxu0 0
    %1984 = vmatpush1.bf16.msra.mxu0 0
    %1985 = vmatprep.subr.bf16.mxu0 0
    %1986 = vmatpush1.bf16.msra.mxu0 0
    %1987 = vmatprep.subr.bf16.mxu0 0
    %1988 = vmatpush1.bf16.msra.mxu0 0
    %1989 = vmatprep.subr.bf16.mxu0 0
    %1990 = vmatpush1.bf16.msra.mxu0 0
    %1991 = vmatprep.subr.bf16.mxu0 0
    %1992 = vmatpush1.bf16.msra.mxu0 0
    %1993 = vmatprep.mubr.bf16.mxu0 0
    %1994 = vmatmul.mubr.bf16.gmra.mrb[0].mxu0 %v1919
    %v1995 = vpop.f32.mrb[0].mxu0
    %v1996 = vadd.f32 0.0, %v1995
    %v1997 = vpop.f32.mrb[0].mxu0
    %v1998 = vadd.f32 0.0, %v1997
    %v1999 = vpop.f32.mrb[0].mxu0
    %v2000 = vpop.f32.mrb[0].mxu0
    %2001 = vdwg.mxu0
    %v2002 = vadd.f32 %v1872, %v1955
    %v2003 = vadd.f32 %v1874, %v1957
    %v2004 = vadd.f32 %v1913, %v1996
    %v2005 = vadd.f32 %v1915, %v1998
    %v2006 = vadd.f32 %v2002, %v508
    %v2007 = vadd.f32 %v2003, %v512
    %v2008 = vadd.f32 %v2004, %v516
    %v2009 = vadd.f32 %v2005, %v520
    %v2010 = vxor.u32 %v2006, 2147483648
    %v2011 = vxor.u32 %v2007, 2147483648
    %v2012 = vxor.u32 %v2008, 2147483648
    %v2013 = vmul.f32 %v2010, 1.442695
    %v2014 = vpow.pop %v2013
    %v2015 = vmul.f32 %v2011, 1.442695
    %v2016 = vpow.pop %v2015
    %v2017 = vmul.f32 %v2012, 1.442695
    %v2018 = vpow.pop %v2017
    %v2019 = vadd.f32 %v2014, 1.0
    %v2020 = vadd.f32 %v2016, 1.0
    %v2021 = vadd.f32 %v2018, 1.0
    %v2022 = vrcp.pop %v2019
    %v2023 = vmul.f32 1.0, %v2022
    %v2024 = vrcp.pop %v2020
    %v2025 = vmul.f32 1.0, %v2024
    %v2026 = vrcp.pop %v2021
    %v2027 = vmul.f32 1.0, %v2026
    %v2028 = vtanh.pop %v2009
    %v2029 = vmul.f32 %v2025, %v1718
    %v2030 = vmul.f32 %v2023, %v2028
    %v2031 = vadd.f32 %v2029, %v2030
    %v2032 = vtanh.pop %v2031
    %v2033 = vmul.f32 %v2027, %v2032
    %s2034 = scalar_lea.vmem [#allocation2], 96
    %v2035 = vld [vmem:[%s2034] sm:$0xff]
    %v2036 = vld [vmem:[%s2034 + $0x8] sm:$0xff]
    %v2037 = vld [vmem:[%s2034 + $0x10] sm:$0xff]
    %v2038 = vld [vmem:[%s2034 + $0x18] sm:$0xff]
    %v2039 = vadd.f32 %v2035, %v1790
    %v2040 = vadd.f32 %v2036, %v1792
    %v2041 = vadd.f32 %v2037, %v1831
    %v2042 = vadd.f32 %v2038, %v1833
    %v2043 = vxor.u32 %v2039, 2147483648
    %v2044 = vxor.u32 %v2040, 2147483648
    %v2045 = vxor.u32 %v2041, 2147483648
    %v2046 = vmul.f32 %v2043, 1.442695
    %v2047 = vpow.pop %v2046
    %v2048 = vmul.f32 %v2044, 1.442695
    %v2049 = vpow.pop %v2048
    %v2050 = vmul.f32 %v2045, 1.442695
    %v2051 = vpow.pop %v2050
    %v2052 = vadd.f32 %v2047, 1.0
    %v2053 = vadd.f32 %v2049, 1.0
    %v2054 = vadd.f32 %v2051, 1.0
    %v2055 = vrcp.pop %v2052
    %v2056 = vmul.f32 1.0, %v2055
    %v2057 = vrcp.pop %v2053
    %v2058 = vmul.f32 1.0, %v2057
    %v2059 = vrcp.pop %v2054
    %v2060 = vmul.f32 1.0, %v2059
    %v2061 = vtanh.pop %v2042
    %v2062 = vmul.f32 %v2058, %v1751
    %v2063 = vmul.f32 %v2056, %v2061
    %v2064 = vadd.f32 %v2062, %v2063
    %v2065 = vtanh.pop %v2064
    %v2066 = vmul.f32 %v2060, %v2065
    %v2067 = vpack.c.bf16 %v2066, %v2066
    %2068 = vmatprep.subr.bf16.mxu0 %v843
    %2069 = vmatpush1.bf16.msra.mxu0 %v842
    %2070 = vmatprep.subr.bf16.mxu0 %v851
    %2071 = vmatpush1.bf16.msra.mxu0 %v850
    %2072 = vmatprep.subr.bf16.mxu0 %v859
    %2073 = vmatpush1.bf16.msra.mxu0 %v858
    %2074 = vmatprep.subr.bf16.mxu0 %v867
    %2075 = vmatpush1.bf16.msra.mxu0 %v866
    %2076 = vmatprep.subr.bf16.mxu0 %v875
    %2077 = vmatpush1.bf16.msra.mxu0 %v874
    %2078 = vmatprep.subr.bf16.mxu0 %v883
    %2079 = vmatpush1.bf16.msra.mxu0 %v882
    %2080 = vmatprep.subr.bf16.mxu0 %v891
    %2081 = vmatpush1.bf16.msra.mxu0 %v890
    %2082 = vmatprep.subr.bf16.mxu0 %v899
    %2083 = vmatpush1.bf16.msra.mxu0 %v898
    %2084 = vmatprep.subr.bf16.mxu0 0
    %2085 = vmatpush1.bf16.msra.mxu0 0
    %2086 = vmatprep.subr.bf16.mxu0 0
    %2087 = vmatpush1.bf16.msra.mxu0 0
    %2088 = vmatprep.subr.bf16.mxu0 0
    %2089 = vmatpush1.bf16.msra.mxu0 0
    %2090 = vmatprep.subr.bf16.mxu0 0
    %2091 = vmatpush1.bf16.msra.mxu0 0
    %2092 = vmatprep.subr.bf16.mxu0 0
    %2093 = vmatpush1.bf16.msra.mxu0 0
    %2094 = vmatprep.subr.bf16.mxu0 0
    %2095 = vmatpush1.bf16.msra.mxu0 0
    %2096 = vmatprep.subr.bf16.mxu0 0
    %2097 = vmatpush1.bf16.msra.mxu0 0
    %2098 = vmatprep.subr.bf16.mxu0 0
    %2099 = vmatpush1.bf16.msra.mxu0 0
    %2100 = vmatprep.mubr.bf16.mxu0 0
    %2101 = vmatmul.mubr.bf16.gmra.mrb[0].mxu0 %v2067
    %v2102 = vpop.f32.mrb[0].mxu0
    %v2103 = vadd.f32 0.0, %v2102
    %v2104 = vpop.f32.mrb[0].mxu0
    %v2105 = vadd.f32 0.0, %v2104
    %v2106 = vpop.f32.mrb[0].mxu0
    %v2107 = vpop.f32.mrb[0].mxu0
    %2108 = vdwg.mxu0
    %2109 = vmatprep.subr.bf16.mxu0 %v845
    %2110 = vmatpush1.bf16.msra.mxu0 %v844
    %2111 = vmatprep.subr.bf16.mxu0 %v853
    %2112 = vmatpush1.bf16.msra.mxu0 %v852
    %2113 = vmatprep.subr.bf16.mxu0 %v861
    %2114 = vmatpush1.bf16.msra.mxu0 %v860
    %2115 = vmatprep.subr.bf16.mxu0 %v869
    %2116 = vmatpush1.bf16.msra.mxu0 %v868
    %2117 = vmatprep.subr.bf16.mxu0 %v877
    %2118 = vmatpush1.bf16.msra.mxu0 %v876
    %2119 = vmatprep.subr.bf16.mxu0 %v885
    %2120 = vmatpush1.bf16.msra.mxu0 %v884
    %2121 = vmatprep.subr.bf16.mxu0 %v893
    %2122 = vmatpush1.bf16.msra.mxu0 %v892
    %2123 = vmatprep.subr.bf16.mxu0 %v901
    %2124 = vmatpush1.bf16.msra.mxu0 %v900
    %2125 = vmatprep.subr.bf16.mxu0 0
    %2126 = vmatpush1.bf16.msra.mxu0 0
    %2127 = vmatprep.subr.bf16.mxu0 0
    %2128 = vmatpush1.bf16.msra.mxu0 0
    %2129 = vmatprep.subr.bf16.mxu0 0
    %2130 = vmatpush1.bf16.msra.mxu0 0
    %2131 = vmatprep.subr.bf16.mxu0 0
    %2132 = vmatpush1.bf16.msra.mxu0 0
    %2133 = vmatprep.subr.bf16.mxu0 0
    %2134 = vmatpush1.bf16.msra.mxu0 0
    %2135 = vmatprep.subr.bf16.mxu0 0
    %2136 = vmatpush1.bf16.msra.mxu0 0
    %2137 = vmatprep.subr.bf16.mxu0 0
    %2138 = vmatpush1.bf16.msra.mxu0 0
    %2139 = vmatprep.subr.bf16.mxu0 0
    %2140 = vmatpush1.bf16.msra.mxu0 0
    %2141 = vmatprep.mubr.bf16.mxu0 0
    %2142 = vmatmul.mubr.bf16.gmra.mrb[0].mxu0 %v2067
    %v2143 = vpop.f32.mrb[0].mxu0
    %v2144 = vadd.f32 0.0, %v2143
    %v2145 = vpop.f32.mrb[0].mxu0
    %v2146 = vadd.f32 0.0, %v2145
    %v2147 = vpop.f32.mrb[0].mxu0
    %v2148 = vpop.f32.mrb[0].mxu0
    %2149 = vdwg.mxu0
    %2150 = vmatprep.subr.bf16.mxu0 %v847
    %2151 = vmatpush1.bf16.msra.mxu0 %v846
    %2152 = vmatprep.subr.bf16.mxu0 %v855
    %2153 = vmatpush1.bf16.msra.mxu0 %v854
    %2154 = vmatprep.subr.bf16.mxu0 %v863
    %2155 = vmatpush1.bf16.msra.mxu0 %v862
    %2156 = vmatprep.subr.bf16.mxu0 %v871
    %2157 = vmatpush1.bf16.msra.mxu0 %v870
    %2158 = vmatprep.subr.bf16.mxu0 %v879
    %2159 = vmatpush1.bf16.msra.mxu0 %v878
    %2160 = vmatprep.subr.bf16.mxu0 %v887
    %2161 = vmatpush1.bf16.msra.mxu0 %v886
    %2162 = vmatprep.subr.bf16.mxu0 %v895
    %2163 = vmatpush1.bf16.msra.mxu0 %v894
    %2164 = vmatprep.subr.bf16.mxu0 %v903
    %2165 = vmatpush1.bf16.msra.mxu0 %v902
    %2166 = vmatprep.subr.bf16.mxu0 0
    %2167 = vmatpush1.bf16.msra.mxu0 0
    %2168 = vmatprep.subr.bf16.mxu0 0
    %2169 = vmatpush1.bf16.msra.mxu0 0
    %2170 = vmatprep.subr.bf16.mxu0 0
    %2171 = vmatpush1.bf16.msra.mxu0 0
    %2172 = vmatprep.subr.bf16.mxu0 0
    %2173 = vmatpush1.bf16.msra.mxu0 0
    %2174 = vmatprep.subr.bf16.mxu0 0
    %2175 = vmatpush1.bf16.msra.mxu0 0
    %2176 = vmatprep.subr.bf16.mxu0 0
    %2177 = vmatpush1.bf16.msra.mxu0 0
    %2178 = vmatprep.subr.bf16.mxu0 0
    %2179 = vmatpush1.bf16.msra.mxu0 0
    %2180 = vmatprep.subr.bf16.mxu0 0
    %2181 = vmatpush1.bf16.msra.mxu0 0
    %2182 = vmatprep.mubr.bf16.mxu0 0
    %2183 = vmatmul.mubr.bf16.gmra.mrb[0].mxu0 %v2067
    %v2184 = vpop.f32.mrb[0].mxu0
    %v2185 = vadd.f32 0.0, %v2184
    %v2186 = vpop.f32.mrb[0].mxu0
    %v2187 = vadd.f32 0.0, %v2186
    %v2188 = vpop.f32.mrb[0].mxu0
    %v2189 = vpop.f32.mrb[0].mxu0
    %2190 = vdwg.mxu0
    %2191 = vmatprep.subr.bf16.mxu0 %v849
    %2192 = vmatpush1.bf16.msra.mxu0 %v848
    %2193 = vmatprep.subr.bf16.mxu0 %v857
    %2194 = vmatpush1.bf16.msra.mxu0 %v856
    %2195 = vmatprep.subr.bf16.mxu0 %v865
    %2196 = vmatpush1.bf16.msra.mxu0 %v864
    %2197 = vmatprep.subr.bf16.mxu0 %v873
    %2198 = vmatpush1.bf16.msra.mxu0 %v872
    %2199 = vmatprep.subr.bf16.mxu0 %v881
    %2200 = vmatpush1.bf16.msra.mxu0 %v880
    %2201 = vmatprep.subr.bf16.mxu0 %v889
    %2202 = vmatpush1.bf16.msra.mxu0 %v888
    %2203 = vmatprep.subr.bf16.mxu0 %v897
    %2204 = vmatpush1.bf16.msra.mxu0 %v896
    %2205 = vmatprep.subr.bf16.mxu0 %v905
    %2206 = vmatpush1.bf16.msra.mxu0 %v904
    %2207 = vmatprep.subr.bf16.mxu0 0
    %2208 = vmatpush1.bf16.msra.mxu0 0
    %2209 = vmatprep.subr.bf16.mxu0 0
    %2210 = vmatpush1.bf16.msra.mxu0 0
    %2211 = vmatprep.subr.bf16.mxu0 0
    %2212 = vmatpush1.bf16.msra.mxu0 0
    %2213 = vmatprep.subr.bf16.mxu0 0
    %2214 = vmatpush1.bf16.msra.mxu0 0
    %2215 = vmatprep.subr.bf16.mxu0 0
    %2216 = vmatpush1.bf16.msra.mxu0 0
    %2217 = vmatprep.subr.bf16.mxu0 0
    %2218 = vmatpush1.bf16.msra.mxu0 0
    %2219 = vmatprep.subr.bf16.mxu0 0
    %2220 = vmatpush1.bf16.msra.mxu0 0
    %2221 = vmatprep.subr.bf16.mxu0 0
    %2222 = vmatpush1.bf16.msra.mxu0 0
    %2223 = vmatprep.mubr.bf16.mxu0 0
    %2224 = vmatmul.mubr.bf16.gmra.mrb[0].mxu0 %v2067
    %v2225 = vpop.f32.mrb[0].mxu0
    %v2226 = vadd.f32 0.0, %v2225
    %v2227 = vpop.f32.mrb[0].mxu0
    %v2228 = vadd.f32 0.0, %v2227
    %v2229 = vpop.f32.mrb[0].mxu0
    %v2230 = vpop.f32.mrb[0].mxu0
    %2231 = vdwg.mxu0
    %v2232 = vpack.c.bf16 %v2033, %v2033
    %2233 = vmatprep.subr.bf16.mxu0 %v1231
    %2234 = vmatpush1.bf16.msra.mxu0 %v1230
    %2235 = vmatprep.subr.bf16.mxu0 %v1235
    %2236 = vmatpush1.bf16.msra.mxu0 %v1234
    %2237 = vmatprep.subr.bf16.mxu0 %v1239
    %2238 = vmatpush1.bf16.msra.mxu0 %v1238
    %2239 = vmatprep.subr.bf16.mxu0 %v1243
    %2240 = vmatpush1.bf16.msra.mxu0 %v1242
    %2241 = vmatprep.subr.bf16.mxu0 %v1247
    %2242 = vmatpush1.bf16.msra.mxu0 %v1246
    %2243 = vmatprep.subr.bf16.mxu0 %v1251
    %2244 = vmatpush1.bf16.msra.mxu0 %v1250
    %2245 = vmatprep.subr.bf16.mxu0 %v1255
    %2246 = vmatpush1.bf16.msra.mxu0 %v1254
    %2247 = vmatprep.subr.bf16.mxu0 %v1259
    %2248 = vmatpush1.bf16.msra.mxu0 %v1258
    %2249 = vmatprep.subr.bf16.mxu0 0
    %2250 = vmatpush1.bf16.msra.mxu0 0
    %2251 = vmatprep.subr.bf16.mxu0 0
    %2252 = vmatpush1.bf16.msra.mxu0 0
    %2253 = vmatprep.subr.bf16.mxu0 0
    %2254 = vmatpush1.bf16.msra.mxu0 0
    %2255 = vmatprep.subr.bf16.mxu0 0
    %2256 = vmatpush1.bf16.msra.mxu0 0
    %2257 = vmatprep.subr.bf16.mxu0 0
    %2258 = vmatpush1.bf16.msra.mxu0 0
    %2259 = vmatprep.subr.bf16.mxu0 0
    %2260 = vmatpush1.bf16.msra.mxu0 0
    %2261 = vmatprep.subr.bf16.mxu0 0
    %2262 = vmatpush1.bf16.msra.mxu0 0
    %2263 = vmatprep.subr.bf16.mxu0 0
    %2264 = vmatpush1.bf16.msra.mxu0 0
    %2265 = vmatprep.mubr.bf16.mxu0 0
    %2266 = vmatmul.mubr.bf16.gmra.mrb[0].mxu0 %v2232
    %v2267 = vpop.f32.mrb[0].mxu0
    %v2268 = vadd.f32 0.0, %v2267
    %v2269 = vpop.f32.mrb[0].mxu0
    %v2270 = vadd.f32 0.0, %v2269
    %v2271 = vpop.f32.mrb[0].mxu0
    %v2272 = vpop.f32.mrb[0].mxu0
    %2273 = vdwg.mxu0
    %2274 = vmatprep.subr.bf16.mxu0 %v1233
    %2275 = vmatpush1.bf16.msra.mxu0 %v1232
    %2276 = vmatprep.subr.bf16.mxu0 %v1237
    %2277 = vmatpush1.bf16.msra.mxu0 %v1236
    %2278 = vmatprep.subr.bf16.mxu0 %v1241
    %2279 = vmatpush1.bf16.msra.mxu0 %v1240
    %2280 = vmatprep.subr.bf16.mxu0 %v1245
    %2281 = vmatpush1.bf16.msra.mxu0 %v1244
    %2282 = vmatprep.subr.bf16.mxu0 %v1249
    %2283 = vmatpush1.bf16.msra.mxu0 %v1248
    %2284 = vmatprep.subr.bf16.mxu0 %v1253
    %2285 = vmatpush1.bf16.msra.mxu0 %v1252
    %2286 = vmatprep.subr.bf16.mxu0 %v1257
    %2287 = vmatpush1.bf16.msra.mxu0 %v1256
    %2288 = vmatprep.subr.bf16.mxu0 %v1261
    %2289 = vmatpush1.bf16.msra.mxu0 %v1260
    %2290 = vmatprep.subr.bf16.mxu0 0
    %2291 = vmatpush1.bf16.msra.mxu0 0
    %2292 = vmatprep.subr.bf16.mxu0 0
    %2293 = vmatpush1.bf16.msra.mxu0 0
    %2294 = vmatprep.subr.bf16.mxu0 0
    %2295 = vmatpush1.bf16.msra.mxu0 0
    %2296 = vmatprep.subr.bf16.mxu0 0
    %2297 = vmatpush1.bf16.msra.mxu0 0
    %2298 = vmatprep.subr.bf16.mxu0 0
    %2299 = vmatpush1.bf16.msra.mxu0 0
    %2300 = vmatprep.subr.bf16.mxu0 0
    %2301 = vmatpush1.bf16.msra.mxu0 0
    %2302 = vmatprep.subr.bf16.mxu0 0
    %2303 = vmatpush1.bf16.msra.mxu0 0
    %2304 = vmatprep.subr.bf16.mxu0 0
    %2305 = vmatpush1.bf16.msra.mxu0 0
    %2306 = vmatprep.mubr.bf16.mxu0 0
    %2307 = vmatmul.mubr.bf16.gmra.mrb[0].mxu0 %v2232
    %v2308 = vpop.f32.mrb[0].mxu0
    %v2309 = vadd.f32 0.0, %v2308
    %v2310 = vpop.f32.mrb[0].mxu0
    %v2311 = vadd.f32 0.0, %v2310
    %v2312 = vpop.f32.mrb[0].mxu0
    %v2313 = vpop.f32.mrb[0].mxu0
    %2314 = vdwg.mxu0
    %v2315 = vadd.f32 %v2185, %v2268
    %v2316 = vadd.f32 %v2187, %v2270
    %v2317 = vadd.f32 %v2226, %v2309
    %v2318 = vadd.f32 %v2228, %v2311
    %v2319 = vadd.f32 %v2315, %v508
    %v2320 = vadd.f32 %v2316, %v512
    %v2321 = vadd.f32 %v2317, %v516
    %v2322 = vadd.f32 %v2318, %v520
    %v2323 = vxor.u32 %v2319, 2147483648
    %v2324 = vxor.u32 %v2320, 2147483648
    %v2325 = vxor.u32 %v2321, 2147483648
    %v2326 = vmul.f32 %v2323, 1.442695
    %v2327 = vpow.pop %v2326
    %v2328 = vmul.f32 %v2324, 1.442695
    %v2329 = vpow.pop %v2328
    %v2330 = vmul.f32 %v2325, 1.442695
    %v2331 = vpow.pop %v2330
    %v2332 = vadd.f32 %v2327, 1.0
    %v2333 = vadd.f32 %v2329, 1.0
    %v2334 = vadd.f32 %v2331, 1.0
    %v2335 = vrcp.pop %v2332
    %v2336 = vmul.f32 1.0, %v2335
    %v2337 = vrcp.pop %v2333
    %v2338 = vmul.f32 1.0, %v2337
    %v2339 = vrcp.pop %v2334
    %v2340 = vmul.f32 1.0, %v2339
    %v2341 = vtanh.pop %v2322
    %v2342 = vmul.f32 %v2338, %v2031
    %v2343 = vmul.f32 %v2336, %v2341
    %v2344 = vadd.f32 %v2342, %v2343
    %v2345 = vtanh.pop %v2344
    %v2346 = vmul.f32 %v2340, %v2345
    %s2347 = scalar_lea.vmem [#allocation2], 128
    %v2348 = vld [vmem:[%s2347] sm:$0xff]
    %v2349 = vld [vmem:[%s2347 + $0x8] sm:$0xff]
    %v2350 = vld [vmem:[%s2347 + $0x10] sm:$0xff]
    %v2351 = vld [vmem:[%s2347 + $0x18] sm:$0xff]
    %v2352 = vadd.f32 %v2348, %v2103
    %v2353 = vadd.f32 %v2349, %v2105
    %v2354 = vadd.f32 %v2350, %v2144
    %v2355 = vadd.f32 %v2351, %v2146
    %v2356 = vxor.u32 %v2352, 2147483648
    %v2357 = vxor.u32 %v2353, 2147483648
    %v2358 = vxor.u32 %v2354, 2147483648
    %v2359 = vmul.f32 %v2356, 1.442695
    %v2360 = vpow.pop %v2359
    %v2361 = vmul.f32 %v2357, 1.442695
    %v2362 = vpow.pop %v2361
    %v2363 = vmul.f32 %v2358, 1.442695
    %v2364 = vpow.pop %v2363
    %v2365 = vadd.f32 %v2360, 1.0
    %v2366 = vadd.f32 %v2362, 1.0
    %v2367 = vadd.f32 %v2364, 1.0
    %v2368 = vrcp.pop %v2365
    %v2369 = vmul.f32 1.0, %v2368
    %v2370 = vrcp.pop %v2366
    %v2371 = vmul.f32 1.0, %v2370
    %v2372 = vrcp.pop %v2367
    %v2373 = vmul.f32 1.0, %v2372
    %v2374 = vtanh.pop %v2355
    %v2375 = vmul.f32 %v2371, %v2064
    %v2376 = vmul.f32 %v2369, %v2374
    %v2377 = vadd.f32 %v2375, %v2376
    %v2378 = vtanh.pop %v2377
    %v2379 = vmul.f32 %v2373, %v2378
    %v2380 = vpack.c.bf16 %v2379, %v2379
    %2381 = vmatprep.subr.bf16.mxu0 %v843
    %2382 = vmatpush1.bf16.msra.mxu0 %v842
    %2383 = vmatprep.subr.bf16.mxu0 %v851
    %2384 = vmatpush1.bf16.msra.mxu0 %v850
    %2385 = vmatprep.subr.bf16.mxu0 %v859
    %2386 = vmatpush1.bf16.msra.mxu0 %v858
    %2387 = vmatprep.subr.bf16.mxu0 %v867
    %2388 = vmatpush1.bf16.msra.mxu0 %v866
    %2389 = vmatprep.subr.bf16.mxu0 %v875
    %2390 = vmatpush1.bf16.msra.mxu0 %v874
    %2391 = vmatprep.subr.bf16.mxu0 %v883
    %2392 = vmatpush1.bf16.msra.mxu0 %v882
    %2393 = vmatprep.subr.bf16.mxu0 %v891
    %2394 = vmatpush1.bf16.msra.mxu0 %v890
    %2395 = vmatprep.subr.bf16.mxu0 %v899
    %2396 = vmatpush1.bf16.msra.mxu0 %v898
    %2397 = vmatprep.subr.bf16.mxu0 0
    %2398 = vmatpush1.bf16.msra.mxu0 0
    %2399 = vmatprep.subr.bf16.mxu0 0
    %2400 = vmatpush1.bf16.msra.mxu0 0
    %2401 = vmatprep.subr.bf16.mxu0 0
    %2402 = vmatpush1.bf16.msra.mxu0 0
    %2403 = vmatprep.subr.bf16.mxu0 0
    %2404 = vmatpush1.bf16.msra.mxu0 0
    %2405 = vmatprep.subr.bf16.mxu0 0
    %2406 = vmatpush1.bf16.msra.mxu0 0
    %2407 = vmatprep.subr.bf16.mxu0 0
    %2408 = vmatpush1.bf16.msra.mxu0 0
    %2409 = vmatprep.subr.bf16.mxu0 0
    %2410 = vmatpush1.bf16.msra.mxu0 0
    %2411 = vmatprep.subr.bf16.mxu0 0
    %2412 = vmatpush1.bf16.msra.mxu0 0
    %2413 = vmatprep.mubr.bf16.mxu0 0
    %2414 = vmatmul.mubr.bf16.gmra.mrb[0].mxu0 %v2380
    %v2415 = vpop.f32.mrb[0].mxu0
    %v2416 = vadd.f32 0.0, %v2415
    %v2417 = vpop.f32.mrb[0].mxu0
    %v2418 = vadd.f32 0.0, %v2417
    %v2419 = vpop.f32.mrb[0].mxu0
    %v2420 = vpop.f32.mrb[0].mxu0
    %2421 = vdwg.mxu0
    %2422 = vmatprep.subr.bf16.mxu0 %v845
    %2423 = vmatpush1.bf16.msra.mxu0 %v844
    %2424 = vmatprep.subr.bf16.mxu0 %v853
    %2425 = vmatpush1.bf16.msra.mxu0 %v852
    %2426 = vmatprep.subr.bf16.mxu0 %v861
    %2427 = vmatpush1.bf16.msra.mxu0 %v860
    %2428 = vmatprep.subr.bf16.mxu0 %v869
    %2429 = vmatpush1.bf16.msra.mxu0 %v868
    %2430 = vmatprep.subr.bf16.mxu0 %v877
    %2431 = vmatpush1.bf16.msra.mxu0 %v876
    %2432 = vmatprep.subr.bf16.mxu0 %v885
    %2433 = vmatpush1.bf16.msra.mxu0 %v884
    %2434 = vmatprep.subr.bf16.mxu0 %v893
    %2435 = vmatpush1.bf16.msra.mxu0 %v892
    %2436 = vmatprep.subr.bf16.mxu0 %v901
    %2437 = vmatpush1.bf16.msra.mxu0 %v900
    %2438 = vmatprep.subr.bf16.mxu0 0
    %2439 = vmatpush1.bf16.msra.mxu0 0
    %2440 = vmatprep.subr.bf16.mxu0 0
    %2441 = vmatpush1.bf16.msra.mxu0 0
    %2442 = vmatprep.subr.bf16.mxu0 0
    %2443 = vmatpush1.bf16.msra.mxu0 0
    %2444 = vmatprep.subr.bf16.mxu0 0
    %2445 = vmatpush1.bf16.msra.mxu0 0
    %2446 = vmatprep.subr.bf16.mxu0 0
    %2447 = vmatpush1.bf16.msra.mxu0 0
    %2448 = vmatprep.subr.bf16.mxu0 0
    %2449 = vmatpush1.bf16.msra.mxu0 0
    %2450 = vmatprep.subr.bf16.mxu0 0
    %2451 = vmatpush1.bf16.msra.mxu0 0
    %2452 = vmatprep.subr.bf16.mxu0 0
    %2453 = vmatpush1.bf16.msra.mxu0 0
    %2454 = vmatprep.mubr.bf16.mxu0 0
    %2455 = vmatmul.mubr.bf16.gmra.mrb[0].mxu0 %v2380
    %v2456 = vpop.f32.mrb[0].mxu0
    %v2457 = vadd.f32 0.0, %v2456
    %v2458 = vpop.f32.mrb[0].mxu0
    %v2459 = vadd.f32 0.0, %v2458
    %v2460 = vpop.f32.mrb[0].mxu0
    %v2461 = vpop.f32.mrb[0].mxu0
    %2462 = vdwg.mxu0
    %2463 = vmatprep.subr.bf16.mxu0 %v847
    %2464 = vmatpush1.bf16.msra.mxu0 %v846
    %2465 = vmatprep.subr.bf16.mxu0 %v855
    %2466 = vmatpush1.bf16.msra.mxu0 %v854
    %2467 = vmatprep.subr.bf16.mxu0 %v863
    %2468 = vmatpush1.bf16.msra.mxu0 %v862
    %2469 = vmatprep.subr.bf16.mxu0 %v871
    %2470 = vmatpush1.bf16.msra.mxu0 %v870
    %2471 = vmatprep.subr.bf16.mxu0 %v879
    %2472 = vmatpush1.bf16.msra.mxu0 %v878
    %2473 = vmatprep.subr.bf16.mxu0 %v887
    %2474 = vmatpush1.bf16.msra.mxu0 %v886
    %2475 = vmatprep.subr.bf16.mxu0 %v895
    %2476 = vmatpush1.bf16.msra.mxu0 %v894
    %2477 = vmatprep.subr.bf16.mxu0 %v903
    %2478 = vmatpush1.bf16.msra.mxu0 %v902
    %2479 = vmatprep.subr.bf16.mxu0 0
    %2480 = vmatpush1.bf16.msra.mxu0 0
    %2481 = vmatprep.subr.bf16.mxu0 0
    %2482 = vmatpush1.bf16.msra.mxu0 0
    %2483 = vmatprep.subr.bf16.mxu0 0
    %2484 = vmatpush1.bf16.msra.mxu0 0
    %2485 = vmatprep.subr.bf16.mxu0 0
    %2486 = vmatpush1.bf16.msra.mxu0 0
    %2487 = vmatprep.subr.bf16.mxu0 0
    %2488 = vmatpush1.bf16.msra.mxu0 0
    %2489 = vmatprep.subr.bf16.mxu0 0
    %2490 = vmatpush1.bf16.msra.mxu0 0
    %2491 = vmatprep.subr.bf16.mxu0 0
    %2492 = vmatpush1.bf16.msra.mxu0 0
    %2493 = vmatprep.subr.bf16.mxu0 0
    %2494 = vmatpush1.bf16.msra.mxu0 0
    %2495 = vmatprep.mubr.bf16.mxu0 0
    %2496 = vmatmul.mubr.bf16.gmra.mrb[0].mxu0 %v2380
    %v2497 = vpop.f32.mrb[0].mxu0
    %v2498 = vadd.f32 0.0, %v2497
    %v2499 = vpop.f32.mrb[0].mxu0
    %v2500 = vadd.f32 0.0, %v2499
    %v2501 = vpop.f32.mrb[0].mxu0
    %v2502 = vpop.f32.mrb[0].mxu0
    %2503 = vdwg.mxu0
    %2504 = vmatprep.subr.bf16.mxu0 %v849
    %2505 = vmatpush1.bf16.msra.mxu0 %v848
    %2506 = vmatprep.subr.bf16.mxu0 %v857
    %2507 = vmatpush1.bf16.msra.mxu0 %v856
    %2508 = vmatprep.subr.bf16.mxu0 %v865
    %2509 = vmatpush1.bf16.msra.mxu0 %v864
    %2510 = vmatprep.subr.bf16.mxu0 %v873
    %2511 = vmatpush1.bf16.msra.mxu0 %v872
    %2512 = vmatprep.subr.bf16.mxu0 %v881
    %2513 = vmatpush1.bf16.msra.mxu0 %v880
    %2514 = vmatprep.subr.bf16.mxu0 %v889
    %2515 = vmatpush1.bf16.msra.mxu0 %v888
    %2516 = vmatprep.subr.bf16.mxu0 %v897
    %2517 = vmatpush1.bf16.msra.mxu0 %v896
    %2518 = vmatprep.subr.bf16.mxu0 %v905
    %2519 = vmatpush1.bf16.msra.mxu0 %v904
    %2520 = vmatprep.subr.bf16.mxu0 0
    %2521 = vmatpush1.bf16.msra.mxu0 0
    %2522 = vmatprep.subr.bf16.mxu0 0
    %2523 = vmatpush1.bf16.msra.mxu0 0
    %2524 = vmatprep.subr.bf16.mxu0 0
    %2525 = vmatpush1.bf16.msra.mxu0 0
    %2526 = vmatprep.subr.bf16.mxu0 0
    %2527 = vmatpush1.bf16.msra.mxu0 0
    %2528 = vmatprep.subr.bf16.mxu0 0
    %2529 = vmatpush1.bf16.msra.mxu0 0
    %2530 = vmatprep.subr.bf16.mxu0 0
    %2531 = vmatpush1.bf16.msra.mxu0 0
    %2532 = vmatprep.subr.bf16.mxu0 0
    %2533 = vmatpush1.bf16.msra.mxu0 0
    %2534 = vmatprep.subr.bf16.mxu0 0
    %2535 = vmatpush1.bf16.msra.mxu0 0
    %2536 = vmatprep.mubr.bf16.mxu0 0
    %2537 = vmatmul.mubr.bf16.gmra.mrb[0].mxu0 %v2380
    %v2538 = vpop.f32.mrb[0].mxu0
    %v2539 = vadd.f32 0.0, %v2538
    %v2540 = vpop.f32.mrb[0].mxu0
    %v2541 = vadd.f32 0.0, %v2540
    %v2542 = vpop.f32.mrb[0].mxu0
    %v2543 = vpop.f32.mrb[0].mxu0
    %2544 = vdwg.mxu0
    %v2545 = vpack.c.bf16 %v2346, %v2346
    %2546 = vmatprep.subr.bf16.mxu0 %v1231
    %2547 = vmatpush1.bf16.msra.mxu0 %v1230
    %2548 = vmatprep.subr.bf16.mxu0 %v1235
    %2549 = vmatpush1.bf16.msra.mxu0 %v1234
    %2550 = vmatprep.subr.bf16.mxu0 %v1239
    %2551 = vmatpush1.bf16.msra.mxu0 %v1238
    %2552 = vmatprep.subr.bf16.mxu0 %v1243
    %2553 = vmatpush1.bf16.msra.mxu0 %v1242
    %2554 = vmatprep.subr.bf16.mxu0 %v1247
    %2555 = vmatpush1.bf16.msra.mxu0 %v1246
    %2556 = vmatprep.subr.bf16.mxu0 %v1251
    %2557 = vmatpush1.bf16.msra.mxu0 %v1250
    %2558 = vmatprep.subr.bf16.mxu0 %v1255
    %2559 = vmatpush1.bf16.msra.mxu0 %v1254
    %2560 = vmatprep.subr.bf16.mxu0 %v1259
    %2561 = vmatpush1.bf16.msra.mxu0 %v1258
    %2562 = vmatprep.subr.bf16.mxu0 0
    %2563 = vmatpush1.bf16.msra.mxu0 0
    %2564 = vmatprep.subr.bf16.mxu0 0
    %2565 = vmatpush1.bf16.msra.mxu0 0
    %2566 = vmatprep.subr.bf16.mxu0 0
    %2567 = vmatpush1.bf16.msra.mxu0 0
    %2568 = vmatprep.subr.bf16.mxu0 0
    %2569 = vmatpush1.bf16.msra.mxu0 0
    %2570 = vmatprep.subr.bf16.mxu0 0
    %2571 = vmatpush1.bf16.msra.mxu0 0
    %2572 = vmatprep.subr.bf16.mxu0 0
    %2573 = vmatpush1.bf16.msra.mxu0 0
    %2574 = vmatprep.subr.bf16.mxu0 0
    %2575 = vmatpush1.bf16.msra.mxu0 0
    %2576 = vmatprep.subr.bf16.mxu0 0
    %2577 = vmatpush1.bf16.msra.mxu0 0
    %2578 = vmatprep.mubr.bf16.mxu0 0
    %2579 = vmatmul.mubr.bf16.gmra.mrb[0].mxu0 %v2545
    %v2580 = vpop.f32.mrb[0].mxu0
    %v2581 = vadd.f32 0.0, %v2580
    %v2582 = vpop.f32.mrb[0].mxu0
    %v2583 = vadd.f32 0.0, %v2582
    %v2584 = vpop.f32.mrb[0].mxu0
    %v2585 = vpop.f32.mrb[0].mxu0
    %2586 = vdwg.mxu0
    %2587 = vmatprep.subr.bf16.mxu0 %v1233
    %2588 = vmatpush1.bf16.msra.mxu0 %v1232
    %2589 = vmatprep.subr.bf16.mxu0 %v1237
    %2590 = vmatpush1.bf16.msra.mxu0 %v1236
    %2591 = vmatprep.subr.bf16.mxu0 %v1241
    %2592 = vmatpush1.bf16.msra.mxu0 %v1240
    %2593 = vmatprep.subr.bf16.mxu0 %v1245
    %2594 = vmatpush1.bf16.msra.mxu0 %v1244
    %2595 = vmatprep.subr.bf16.mxu0 %v1249
    %2596 = vmatpush1.bf16.msra.mxu0 %v1248
    %2597 = vmatprep.subr.bf16.mxu0 %v1253
    %2598 = vmatpush1.bf16.msra.mxu0 %v1252
    %2599 = vmatprep.subr.bf16.mxu0 %v1257
    %2600 = vmatpush1.bf16.msra.mxu0 %v1256
    %2601 = vmatprep.subr.bf16.mxu0 %v1261
    %2602 = vmatpush1.bf16.msra.mxu0 %v1260
    %2603 = vmatprep.subr.bf16.mxu0 0
    %2604 = vmatpush1.bf16.msra.mxu0 0
    %2605 = vmatprep.subr.bf16.mxu0 0
    %2606 = vmatpush1.bf16.msra.mxu0 0
    %2607 = vmatprep.subr.bf16.mxu0 0
    %2608 = vmatpush1.bf16.msra.mxu0 0
    %2609 = vmatprep.subr.bf16.mxu0 0
    %2610 = vmatpush1.bf16.msra.mxu0 0
    %2611 = vmatprep.subr.bf16.mxu0 0
    %2612 = vmatpush1.bf16.msra.mxu0 0
    %2613 = vmatprep.subr.bf16.mxu0 0
    %2614 = vmatpush1.bf16.msra.mxu0 0
    %2615 = vmatprep.subr.bf16.mxu0 0
    %2616 = vmatpush1.bf16.msra.mxu0 0
    %2617 = vmatprep.subr.bf16.mxu0 0
    %2618 = vmatpush1.bf16.msra.mxu0 0
    %2619 = vmatprep.mubr.bf16.mxu0 0
    %2620 = vmatmul.mubr.bf16.gmra.mrb[0].mxu0 %v2545
    %v2621 = vpop.f32.mrb[0].mxu0
    %v2622 = vadd.f32 0.0, %v2621
    %v2623 = vpop.f32.mrb[0].mxu0
    %v2624 = vadd.f32 0.0, %v2623
    %v2625 = vpop.f32.mrb[0].mxu0
    %v2626 = vpop.f32.mrb[0].mxu0
    %2627 = vdwg.mxu0
    %v2628 = vadd.f32 %v2498, %v2581
    %v2629 = vadd.f32 %v2500, %v2583
    %v2630 = vadd.f32 %v2539, %v2622
    %v2631 = vadd.f32 %v2541, %v2624
    %v2632 = vadd.f32 %v2628, %v508
    %v2633 = vadd.f32 %v2629, %v512
    %v2634 = vadd.f32 %v2630, %v516
    %v2635 = vadd.f32 %v2631, %v520
    %v2636 = vxor.u32 %v2632, 2147483648
    %v2637 = vxor.u32 %v2633, 2147483648
    %v2638 = vxor.u32 %v2634, 2147483648
    %v2639 = vmul.f32 %v2636, 1.442695
    %v2640 = vpow.pop %v2639
    %v2641 = vmul.f32 %v2637, 1.442695
    %v2642 = vpow.pop %v2641
    %v2643 = vmul.f32 %v2638, 1.442695
    %v2644 = vpow.pop %v2643
    %v2645 = vadd.f32 %v2640, 1.0
    %v2646 = vadd.f32 %v2642, 1.0
    %v2647 = vadd.f32 %v2644, 1.0
    %v2648 = vrcp.pop %v2645
    %v2649 = vmul.f32 1.0, %v2648
    %v2650 = vrcp.pop %v2646
    %v2651 = vmul.f32 1.0, %v2650
    %v2652 = vrcp.pop %v2647
    %v2653 = vmul.f32 1.0, %v2652
    %v2654 = vtanh.pop %v2635
    %v2655 = vmul.f32 %v2651, %v2344
    %v2656 = vmul.f32 %v2649, %v2654
    %v2657 = vadd.f32 %v2655, %v2656
    %v2658 = vtanh.pop %v2657
    %v2659 = vmul.f32 %v2653, %v2658
    %s2660 = scalar_lea.vmem [#allocation2], 160
    %v2661 = vld [vmem:[%s2660] sm:$0xff]
    %v2662 = vld [vmem:[%s2660 + $0x8] sm:$0xff]
    %v2663 = vld [vmem:[%s2660 + $0x10] sm:$0xff]
    %v2664 = vld [vmem:[%s2660 + $0x18] sm:$0xff]
    %v2665 = vadd.f32 %v2661, %v2416
    %v2666 = vadd.f32 %v2662, %v2418
    %v2667 = vadd.f32 %v2663, %v2457
    %v2668 = vadd.f32 %v2664, %v2459
    %v2669 = vxor.u32 %v2665, 2147483648
    %v2670 = vxor.u32 %v2666, 2147483648
    %v2671 = vxor.u32 %v2667, 2147483648
    %v2672 = vmul.f32 %v2669, 1.442695
    %v2673 = vpow.pop %v2672
    %v2674 = vmul.f32 %v2670, 1.442695
    %v2675 = vpow.pop %v2674
    %v2676 = vmul.f32 %v2671, 1.442695
    %v2677 = vpow.pop %v2676
    %v2678 = vadd.f32 %v2673, 1.0
    %v2679 = vadd.f32 %v2675, 1.0
    %v2680 = vadd.f32 %v2677, 1.0
    %v2681 = vrcp.pop %v2678
    %v2682 = vmul.f32 1.0, %v2681
    %v2683 = vrcp.pop %v2679
    %v2684 = vmul.f32 1.0, %v2683
    %v2685 = vrcp.pop %v2680
    %v2686 = vmul.f32 1.0, %v2685
    %v2687 = vtanh.pop %v2668
    %v2688 = vmul.f32 %v2684, %v2377
    %v2689 = vmul.f32 %v2682, %v2687
    %v2690 = vadd.f32 %v2688, %v2689
    %v2691 = vtanh.pop %v2690
    %v2692 = vmul.f32 %v2686, %v2691
    %v2693 = vpack.c.bf16 %v2692, %v2692
    %2694 = vmatprep.subr.bf16.mxu0 %v843
    %2695 = vmatpush1.bf16.msra.mxu0 %v842
    %2696 = vmatprep.subr.bf16.mxu0 %v851
    %2697 = vmatpush1.bf16.msra.mxu0 %v850
    %2698 = vmatprep.subr.bf16.mxu0 %v859
    %2699 = vmatpush1.bf16.msra.mxu0 %v858
    %2700 = vmatprep.subr.bf16.mxu0 %v867
    %2701 = vmatpush1.bf16.msra.mxu0 %v866
    %2702 = vmatprep.subr.bf16.mxu0 %v875
    %2703 = vmatpush1.bf16.msra.mxu0 %v874
    %2704 = vmatprep.subr.bf16.mxu0 %v883
    %2705 = vmatpush1.bf16.msra.mxu0 %v882
    %2706 = vmatprep.subr.bf16.mxu0 %v891
    %2707 = vmatpush1.bf16.msra.mxu0 %v890
    %2708 = vmatprep.subr.bf16.mxu0 %v899
    %2709 = vmatpush1.bf16.msra.mxu0 %v898
    %2710 = vmatprep.subr.bf16.mxu0 0
    %2711 = vmatpush1.bf16.msra.mxu0 0
    %2712 = vmatprep.subr.bf16.mxu0 0
    %2713 = vmatpush1.bf16.msra.mxu0 0
    %2714 = vmatprep.subr.bf16.mxu0 0
    %2715 = vmatpush1.bf16.msra.mxu0 0
    %2716 = vmatprep.subr.bf16.mxu0 0
    %2717 = vmatpush1.bf16.msra.mxu0 0
    %2718 = vmatprep.subr.bf16.mxu0 0
    %2719 = vmatpush1.bf16.msra.mxu0 0
    %2720 = vmatprep.subr.bf16.mxu0 0
    %2721 = vmatpush1.bf16.msra.mxu0 0
    %2722 = vmatprep.subr.bf16.mxu0 0
    %2723 = vmatpush1.bf16.msra.mxu0 0
    %2724 = vmatprep.subr.bf16.mxu0 0
    %2725 = vmatpush1.bf16.msra.mxu0 0
    %2726 = vmatprep.mubr.bf16.mxu0 0
    %2727 = vmatmul.mubr.bf16.gmra.mrb[0].mxu0 %v2693
    %v2728 = vpop.f32.mrb[0].mxu0
    %v2729 = vadd.f32 0.0, %v2728
    %v2730 = vpop.f32.mrb[0].mxu0
    %v2731 = vadd.f32 0.0, %v2730
    %v2732 = vpop.f32.mrb[0].mxu0
    %v2733 = vpop.f32.mrb[0].mxu0
    %2734 = vdwg.mxu0
    %2735 = vmatprep.subr.bf16.mxu0 %v845
    %2736 = vmatpush1.bf16.msra.mxu0 %v844
    %2737 = vmatprep.subr.bf16.mxu0 %v853
    %2738 = vmatpush1.bf16.msra.mxu0 %v852
    %2739 = vmatprep.subr.bf16.mxu0 %v861
    %2740 = vmatpush1.bf16.msra.mxu0 %v860
    %2741 = vmatprep.subr.bf16.mxu0 %v869
    %2742 = vmatpush1.bf16.msra.mxu0 %v868
    %2743 = vmatprep.subr.bf16.mxu0 %v877
    %2744 = vmatpush1.bf16.msra.mxu0 %v876
    %2745 = vmatprep.subr.bf16.mxu0 %v885
    %2746 = vmatpush1.bf16.msra.mxu0 %v884
    %2747 = vmatprep.subr.bf16.mxu0 %v893
    %2748 = vmatpush1.bf16.msra.mxu0 %v892
    %2749 = vmatprep.subr.bf16.mxu0 %v901
    %2750 = vmatpush1.bf16.msra.mxu0 %v900
    %2751 = vmatprep.subr.bf16.mxu0 0
    %2752 = vmatpush1.bf16.msra.mxu0 0
    %2753 = vmatprep.subr.bf16.mxu0 0
    %2754 = vmatpush1.bf16.msra.mxu0 0
    %2755 = vmatprep.subr.bf16.mxu0 0
    %2756 = vmatpush1.bf16.msra.mxu0 0
    %2757 = vmatprep.subr.bf16.mxu0 0
    %2758 = vmatpush1.bf16.msra.mxu0 0
    %2759 = vmatprep.subr.bf16.mxu0 0
    %2760 = vmatpush1.bf16.msra.mxu0 0
    %2761 = vmatprep.subr.bf16.mxu0 0
    %2762 = vmatpush1.bf16.msra.mxu0 0
    %2763 = vmatprep.subr.bf16.mxu0 0
    %2764 = vmatpush1.bf16.msra.mxu0 0
    %2765 = vmatprep.subr.bf16.mxu0 0
    %2766 = vmatpush1.bf16.msra.mxu0 0
    %2767 = vmatprep.mubr.bf16.mxu0 0
    %2768 = vmatmul.mubr.bf16.gmra.mrb[0].mxu0 %v2693
    %v2769 = vpop.f32.mrb[0].mxu0
    %v2770 = vadd.f32 0.0, %v2769
    %v2771 = vpop.f32.mrb[0].mxu0
    %v2772 = vadd.f32 0.0, %v2771
    %v2773 = vpop.f32.mrb[0].mxu0
    %v2774 = vpop.f32.mrb[0].mxu0
    %2775 = vdwg.mxu0
    %2776 = vmatprep.subr.bf16.mxu0 %v847
    %2777 = vmatpush1.bf16.msra.mxu0 %v846
    %2778 = vmatprep.subr.bf16.mxu0 %v855
    %2779 = vmatpush1.bf16.msra.mxu0 %v854
    %2780 = vmatprep.subr.bf16.mxu0 %v863
    %2781 = vmatpush1.bf16.msra.mxu0 %v862
    %2782 = vmatprep.subr.bf16.mxu0 %v871
    %2783 = vmatpush1.bf16.msra.mxu0 %v870
    %2784 = vmatprep.subr.bf16.mxu0 %v879
    %2785 = vmatpush1.bf16.msra.mxu0 %v878
    %2786 = vmatprep.subr.bf16.mxu0 %v887
    %2787 = vmatpush1.bf16.msra.mxu0 %v886
    %2788 = vmatprep.subr.bf16.mxu0 %v895
    %2789 = vmatpush1.bf16.msra.mxu0 %v894
    %2790 = vmatprep.subr.bf16.mxu0 %v903
    %2791 = vmatpush1.bf16.msra.mxu0 %v902
    %2792 = vmatprep.subr.bf16.mxu0 0
    %2793 = vmatpush1.bf16.msra.mxu0 0
    %2794 = vmatprep.subr.bf16.mxu0 0
    %2795 = vmatpush1.bf16.msra.mxu0 0
    %2796 = vmatprep.subr.bf16.mxu0 0
    %2797 = vmatpush1.bf16.msra.mxu0 0
    %2798 = vmatprep.subr.bf16.mxu0 0
    %2799 = vmatpush1.bf16.msra.mxu0 0
    %2800 = vmatprep.subr.bf16.mxu0 0
    %2801 = vmatpush1.bf16.msra.mxu0 0
    %2802 = vmatprep.subr.bf16.mxu0 0
    %2803 = vmatpush1.bf16.msra.mxu0 0
    %2804 = vmatprep.subr.bf16.mxu0 0
    %2805 = vmatpush1.bf16.msra.mxu0 0
    %2806 = vmatprep.subr.bf16.mxu0 0
    %2807 = vmatpush1.bf16.msra.mxu0 0
    %2808 = vmatprep.mubr.bf16.mxu0 0
    %2809 = vmatmul.mubr.bf16.gmra.mrb[0].mxu0 %v2693
    %v2810 = vpop.f32.mrb[0].mxu0
    %v2811 = vadd.f32 0.0, %v2810
    %v2812 = vpop.f32.mrb[0].mxu0
    %v2813 = vadd.f32 0.0, %v2812
    %v2814 = vpop.f32.mrb[0].mxu0
    %v2815 = vpop.f32.mrb[0].mxu0
    %2816 = vdwg.mxu0
    %2817 = vmatprep.subr.bf16.mxu0 %v849
    %2818 = vmatpush1.bf16.msra.mxu0 %v848
    %2819 = vmatprep.subr.bf16.mxu0 %v857
    %2820 = vmatpush1.bf16.msra.mxu0 %v856
    %2821 = vmatprep.subr.bf16.mxu0 %v865
    %2822 = vmatpush1.bf16.msra.mxu0 %v864
    %2823 = vmatprep.subr.bf16.mxu0 %v873
    %2824 = vmatpush1.bf16.msra.mxu0 %v872
    %2825 = vmatprep.subr.bf16.mxu0 %v881
    %2826 = vmatpush1.bf16.msra.mxu0 %v880
    %2827 = vmatprep.subr.bf16.mxu0 %v889
    %2828 = vmatpush1.bf16.msra.mxu0 %v888
    %2829 = vmatprep.subr.bf16.mxu0 %v897
    %2830 = vmatpush1.bf16.msra.mxu0 %v896
    %2831 = vmatprep.subr.bf16.mxu0 %v905
    %2832 = vmatpush1.bf16.msra.mxu0 %v904
    %2833 = vmatprep.subr.bf16.mxu0 0
    %2834 = vmatpush1.bf16.msra.mxu0 0
    %2835 = vmatprep.subr.bf16.mxu0 0
    %2836 = vmatpush1.bf16.msra.mxu0 0
    %2837 = vmatprep.subr.bf16.mxu0 0
    %2838 = vmatpush1.bf16.msra.mxu0 0
    %2839 = vmatprep.subr.bf16.mxu0 0
    %2840 = vmatpush1.bf16.msra.mxu0 0
    %2841 = vmatprep.subr.bf16.mxu0 0
    %2842 = vmatpush1.bf16.msra.mxu0 0
    %2843 = vmatprep.subr.bf16.mxu0 0
    %2844 = vmatpush1.bf16.msra.mxu0 0
    %2845 = vmatprep.subr.bf16.mxu0 0
    %2846 = vmatpush1.bf16.msra.mxu0 0
    %2847 = vmatprep.subr.bf16.mxu0 0
    %2848 = vmatpush1.bf16.msra.mxu0 0
    %2849 = vmatprep.mubr.bf16.mxu0 0
    %2850 = vmatmul.mubr.bf16.gmra.mrb[0].mxu0 %v2693
    %v2851 = vpop.f32.mrb[0].mxu0
    %v2852 = vadd.f32 0.0, %v2851
    %v2853 = vpop.f32.mrb[0].mxu0
    %v2854 = vadd.f32 0.0, %v2853
    %v2855 = vpop.f32.mrb[0].mxu0
    %v2856 = vpop.f32.mrb[0].mxu0
    %2857 = vdwg.mxu0
    %v2858 = vpack.c.bf16 %v2659, %v2659
    %2859 = vmatprep.subr.bf16.mxu0 %v1231
    %2860 = vmatpush1.bf16.msra.mxu0 %v1230
    %2861 = vmatprep.subr.bf16.mxu0 %v1235
    %2862 = vmatpush1.bf16.msra.mxu0 %v1234
    %2863 = vmatprep.subr.bf16.mxu0 %v1239
    %2864 = vmatpush1.bf16.msra.mxu0 %v1238
    %2865 = vmatprep.subr.bf16.mxu0 %v1243
    %2866 = vmatpush1.bf16.msra.mxu0 %v1242
    %2867 = vmatprep.subr.bf16.mxu0 %v1247
    %2868 = vmatpush1.bf16.msra.mxu0 %v1246
    %2869 = vmatprep.subr.bf16.mxu0 %v1251
    %2870 = vmatpush1.bf16.msra.mxu0 %v1250
    %2871 = vmatprep.subr.bf16.mxu0 %v1255
    %2872 = vmatpush1.bf16.msra.mxu0 %v1254
    %2873 = vmatprep.subr.bf16.mxu0 %v1259
    %2874 = vmatpush1.bf16.msra.mxu0 %v1258
    %2875 = vmatprep.subr.bf16.mxu0 0
    %2876 = vmatpush1.bf16.msra.mxu0 0
    %2877 = vmatprep.subr.bf16.mxu0 0
    %2878 = vmatpush1.bf16.msra.mxu0 0
    %2879 = vmatprep.subr.bf16.mxu0 0
    %2880 = vmatpush1.bf16.msra.mxu0 0
    %2881 = vmatprep.subr.bf16.mxu0 0
    %2882 = vmatpush1.bf16.msra.mxu0 0
    %2883 = vmatprep.subr.bf16.mxu0 0
    %2884 = vmatpush1.bf16.msra.mxu0 0
    %2885 = vmatprep.subr.bf16.mxu0 0
    %2886 = vmatpush1.bf16.msra.mxu0 0
    %2887 = vmatprep.subr.bf16.mxu0 0
    %2888 = vmatpush1.bf16.msra.mxu0 0
    %2889 = vmatprep.subr.bf16.mxu0 0
    %2890 = vmatpush1.bf16.msra.mxu0 0
    %2891 = vmatprep.mubr.bf16.mxu0 0
    %2892 = vmatmul.mubr.bf16.gmra.mrb[0].mxu0 %v2858
    %v2893 = vpop.f32.mrb[0].mxu0
    %v2894 = vadd.f32 0.0, %v2893
    %v2895 = vpop.f32.mrb[0].mxu0
    %v2896 = vadd.f32 0.0, %v2895
    %v2897 = vpop.f32.mrb[0].mxu0
    %v2898 = vpop.f32.mrb[0].mxu0
    %2899 = vdwg.mxu0
    %2900 = vmatprep.subr.bf16.mxu0 %v1233
    %2901 = vmatpush1.bf16.msra.mxu0 %v1232
    %2902 = vmatprep.subr.bf16.mxu0 %v1237
    %2903 = vmatpush1.bf16.msra.mxu0 %v1236
    %2904 = vmatprep.subr.bf16.mxu0 %v1241
    %2905 = vmatpush1.bf16.msra.mxu0 %v1240
    %2906 = vmatprep.subr.bf16.mxu0 %v1245
    %2907 = vmatpush1.bf16.msra.mxu0 %v1244
    %2908 = vmatprep.subr.bf16.mxu0 %v1249
    %2909 = vmatpush1.bf16.msra.mxu0 %v1248
    %2910 = vmatprep.subr.bf16.mxu0 %v1253
    %2911 = vmatpush1.bf16.msra.mxu0 %v1252
    %2912 = vmatprep.subr.bf16.mxu0 %v1257
    %2913 = vmatpush1.bf16.msra.mxu0 %v1256
    %2914 = vmatprep.subr.bf16.mxu0 %v1261
    %2915 = vmatpush1.bf16.msra.mxu0 %v1260
    %2916 = vmatprep.subr.bf16.mxu0 0
    %2917 = vmatpush1.bf16.msra.mxu0 0
    %2918 = vmatprep.subr.bf16.mxu0 0
    %2919 = vmatpush1.bf16.msra.mxu0 0
    %2920 = vmatprep.subr.bf16.mxu0 0
    %2921 = vmatpush1.bf16.msra.mxu0 0
    %2922 = vmatprep.subr.bf16.mxu0 0
    %2923 = vmatpush1.bf16.msra.mxu0 0
    %2924 = vmatprep.subr.bf16.mxu0 0
    %2925 = vmatpush1.bf16.msra.mxu0 0
    %2926 = vmatprep.subr.bf16.mxu0 0
    %2927 = vmatpush1.bf16.msra.mxu0 0
    %2928 = vmatprep.subr.bf16.mxu0 0
    %2929 = vmatpush1.bf16.msra.mxu0 0
    %2930 = vmatprep.subr.bf16.mxu0 0
    %2931 = vmatpush1.bf16.msra.mxu0 0
    %2932 = vmatprep.mubr.bf16.mxu0 0
    %2933 = vmatmul.mubr.bf16.gmra.mrb[0].mxu0 %v2858
    %v2934 = vpop.f32.mrb[0].mxu0
    %v2935 = vadd.f32 0.0, %v2934
    %v2936 = vpop.f32.mrb[0].mxu0
    %v2937 = vadd.f32 0.0, %v2936
    %v2938 = vpop.f32.mrb[0].mxu0
    %v2939 = vpop.f32.mrb[0].mxu0
    %2940 = vdwg.mxu0
    %v2941 = vadd.f32 %v2811, %v2894
    %v2942 = vadd.f32 %v2813, %v2896
    %v2943 = vadd.f32 %v2852, %v2935
    %v2944 = vadd.f32 %v2854, %v2937
    %v2945 = vadd.f32 %v2941, %v508
    %v2946 = vadd.f32 %v2942, %v512
    %v2947 = vadd.f32 %v2943, %v516
    %v2948 = vadd.f32 %v2944, %v520
    %v2949 = vxor.u32 %v2945, 2147483648
    %v2950 = vxor.u32 %v2946, 2147483648
    %v2951 = vxor.u32 %v2947, 2147483648
    %v2952 = vmul.f32 %v2949, 1.442695
    %v2953 = vpow.pop %v2952
    %v2954 = vmul.f32 %v2950, 1.442695
    %v2955 = vpow.pop %v2954
    %v2956 = vmul.f32 %v2951, 1.442695
    %v2957 = vpow.pop %v2956
    %v2958 = vadd.f32 %v2953, 1.0
    %v2959 = vadd.f32 %v2955, 1.0
    %v2960 = vadd.f32 %v2957, 1.0
    %v2961 = vrcp.pop %v2958
    %v2962 = vmul.f32 1.0, %v2961
    %v2963 = vrcp.pop %v2959
    %v2964 = vmul.f32 1.0, %v2963
    %v2965 = vrcp.pop %v2960
    %v2966 = vmul.f32 1.0, %v2965
    %v2967 = vtanh.pop %v2948
    %v2968 = vmul.f32 %v2964, %v2657
    %v2969 = vmul.f32 %v2962, %v2967
    %v2970 = vadd.f32 %v2968, %v2969
    %v2971 = vtanh.pop %v2970
    %v2972 = vmul.f32 %v2966, %v2971
    %s2973 = scalar_lea.vmem [#allocation2], 192
    %v2974 = vld [vmem:[%s2973] sm:$0xff]
    %v2975 = vld [vmem:[%s2973 + $0x8] sm:$0xff]
    %v2976 = vld [vmem:[%s2973 + $0x10] sm:$0xff]
    %v2977 = vld [vmem:[%s2973 + $0x18] sm:$0xff]
    %v2978 = vadd.f32 %v2974, %v2729
    %v2979 = vadd.f32 %v2975, %v2731
    %v2980 = vadd.f32 %v2976, %v2770
    %v2981 = vadd.f32 %v2977, %v2772
    %v2982 = vxor.u32 %v2978, 2147483648
    %v2983 = vxor.u32 %v2979, 2147483648
    %v2984 = vxor.u32 %v2980, 2147483648
    %v2985 = vmul.f32 %v2982, 1.442695
    %v2986 = vpow.pop %v2985
    %v2987 = vmul.f32 %v2983, 1.442695
    %v2988 = vpow.pop %v2987
    %v2989 = vmul.f32 %v2984, 1.442695
    %v2990 = vpow.pop %v2989
    %v2991 = vadd.f32 %v2986, 1.0
    %v2992 = vadd.f32 %v2988, 1.0
    %v2993 = vadd.f32 %v2990, 1.0
    %v2994 = vrcp.pop %v2991
    %v2995 = vmul.f32 1.0, %v2994
    %v2996 = vrcp.pop %v2992
    %v2997 = vmul.f32 1.0, %v2996
    %v2998 = vrcp.pop %v2993
    %v2999 = vmul.f32 1.0, %v2998
    %v3000 = vtanh.pop %v2981
    %v3001 = vmul.f32 %v2997, %v2690
    %v3002 = vmul.f32 %v2995, %v3000
    %v3003 = vadd.f32 %v3001, %v3002
    %v3004 = vtanh.pop %v3003
    %v3005 = vmul.f32 %v2999, %v3004
    %v3006 = vpack.c.bf16 %v3005, %v3005
    %3007 = vmatprep.subr.bf16.mxu0 %v843
    %3008 = vmatpush1.bf16.msra.mxu0 %v842
    %3009 = vmatprep.subr.bf16.mxu0 %v851
    %3010 = vmatpush1.bf16.msra.mxu0 %v850
    %3011 = vmatprep.subr.bf16.mxu0 %v859
    %3012 = vmatpush1.bf16.msra.mxu0 %v858
    %3013 = vmatprep.subr.bf16.mxu0 %v867
    %3014 = vmatpush1.bf16.msra.mxu0 %v866
    %3015 = vmatprep.subr.bf16.mxu0 %v875
    %3016 = vmatpush1.bf16.msra.mxu0 %v874
    %3017 = vmatprep.subr.bf16.mxu0 %v883
    %3018 = vmatpush1.bf16.msra.mxu0 %v882
    %3019 = vmatprep.subr.bf16.mxu0 %v891
    %3020 = vmatpush1.bf16.msra.mxu0 %v890
    %3021 = vmatprep.subr.bf16.mxu0 %v899
    %3022 = vmatpush1.bf16.msra.mxu0 %v898
    %3023 = vmatprep.subr.bf16.mxu0 0
    %3024 = vmatpush1.bf16.msra.mxu0 0
    %3025 = vmatprep.subr.bf16.mxu0 0
    %3026 = vmatpush1.bf16.msra.mxu0 0
    %3027 = vmatprep.subr.bf16.mxu0 0
    %3028 = vmatpush1.bf16.msra.mxu0 0
    %3029 = vmatprep.subr.bf16.mxu0 0
    %3030 = vmatpush1.bf16.msra.mxu0 0
    %3031 = vmatprep.subr.bf16.mxu0 0
    %3032 = vmatpush1.bf16.msra.mxu0 0
    %3033 = vmatprep.subr.bf16.mxu0 0
    %3034 = vmatpush1.bf16.msra.mxu0 0
    %3035 = vmatprep.subr.bf16.mxu0 0
    %3036 = vmatpush1.bf16.msra.mxu0 0
    %3037 = vmatprep.subr.bf16.mxu0 0
    %3038 = vmatpush1.bf16.msra.mxu0 0
    %3039 = vmatprep.mubr.bf16.mxu0 0
    %3040 = vmatmul.mubr.bf16.gmra.mrb[0].mxu0 %v3006
    %v3041 = vpop.f32.mrb[0].mxu0
    %v3042 = vadd.f32 0.0, %v3041
    %v3043 = vpop.f32.mrb[0].mxu0
    %v3044 = vadd.f32 0.0, %v3043
    %v3045 = vpop.f32.mrb[0].mxu0
    %v3046 = vpop.f32.mrb[0].mxu0
    %3047 = vdwg.mxu0
    %3048 = vmatprep.subr.bf16.mxu0 %v845
    %3049 = vmatpush1.bf16.msra.mxu0 %v844
    %3050 = vmatprep.subr.bf16.mxu0 %v853
    %3051 = vmatpush1.bf16.msra.mxu0 %v852
    %3052 = vmatprep.subr.bf16.mxu0 %v861
    %3053 = vmatpush1.bf16.msra.mxu0 %v860
    %3054 = vmatprep.subr.bf16.mxu0 %v869
    %3055 = vmatpush1.bf16.msra.mxu0 %v868
    %3056 = vmatprep.subr.bf16.mxu0 %v877
    %3057 = vmatpush1.bf16.msra.mxu0 %v876
    %3058 = vmatprep.subr.bf16.mxu0 %v885
    %3059 = vmatpush1.bf16.msra.mxu0 %v884
    %3060 = vmatprep.subr.bf16.mxu0 %v893
    %3061 = vmatpush1.bf16.msra.mxu0 %v892
    %3062 = vmatprep.subr.bf16.mxu0 %v901
    %3063 = vmatpush1.bf16.msra.mxu0 %v900
    %3064 = vmatprep.subr.bf16.mxu0 0
    %3065 = vmatpush1.bf16.msra.mxu0 0
    %3066 = vmatprep.subr.bf16.mxu0 0
    %3067 = vmatpush1.bf16.msra.mxu0 0
    %3068 = vmatprep.subr.bf16.mxu0 0
    %3069 = vmatpush1.bf16.msra.mxu0 0
    %3070 = vmatprep.subr.bf16.mxu0 0
    %3071 = vmatpush1.bf16.msra.mxu0 0
    %3072 = vmatprep.subr.bf16.mxu0 0
    %3073 = vmatpush1.bf16.msra.mxu0 0
    %3074 = vmatprep.subr.bf16.mxu0 0
    %3075 = vmatpush1.bf16.msra.mxu0 0
    %3076 = vmatprep.subr.bf16.mxu0 0
    %3077 = vmatpush1.bf16.msra.mxu0 0
    %3078 = vmatprep.subr.bf16.mxu0 0
    %3079 = vmatpush1.bf16.msra.mxu0 0
    %3080 = vmatprep.mubr.bf16.mxu0 0
    %3081 = vmatmul.mubr.bf16.gmra.mrb[0].mxu0 %v3006
    %v3082 = vpop.f32.mrb[0].mxu0
    %v3083 = vadd.f32 0.0, %v3082
    %v3084 = vpop.f32.mrb[0].mxu0
    %v3085 = vadd.f32 0.0, %v3084
    %v3086 = vpop.f32.mrb[0].mxu0
    %v3087 = vpop.f32.mrb[0].mxu0
    %3088 = vdwg.mxu0
    %3089 = vmatprep.subr.bf16.mxu0 %v847
    %3090 = vmatpush1.bf16.msra.mxu0 %v846
    %3091 = vmatprep.subr.bf16.mxu0 %v855
    %3092 = vmatpush1.bf16.msra.mxu0 %v854
    %3093 = vmatprep.subr.bf16.mxu0 %v863
    %3094 = vmatpush1.bf16.msra.mxu0 %v862
    %3095 = vmatprep.subr.bf16.mxu0 %v871
    %3096 = vmatpush1.bf16.msra.mxu0 %v870
    %3097 = vmatprep.subr.bf16.mxu0 %v879
    %3098 = vmatpush1.bf16.msra.mxu0 %v878
    %3099 = vmatprep.subr.bf16.mxu0 %v887
    %3100 = vmatpush1.bf16.msra.mxu0 %v886
    %3101 = vmatprep.subr.bf16.mxu0 %v895
    %3102 = vmatpush1.bf16.msra.mxu0 %v894
    %3103 = vmatprep.subr.bf16.mxu0 %v903
    %3104 = vmatpush1.bf16.msra.mxu0 %v902
    %3105 = vmatprep.subr.bf16.mxu0 0
    %3106 = vmatpush1.bf16.msra.mxu0 0
    %3107 = vmatprep.subr.bf16.mxu0 0
    %3108 = vmatpush1.bf16.msra.mxu0 0
    %3109 = vmatprep.subr.bf16.mxu0 0
    %3110 = vmatpush1.bf16.msra.mxu0 0
    %3111 = vmatprep.subr.bf16.mxu0 0
    %3112 = vmatpush1.bf16.msra.mxu0 0
    %3113 = vmatprep.subr.bf16.mxu0 0
    %3114 = vmatpush1.bf16.msra.mxu0 0
    %3115 = vmatprep.subr.bf16.mxu0 0
    %3116 = vmatpush1.bf16.msra.mxu0 0
    %3117 = vmatprep.subr.bf16.mxu0 0
    %3118 = vmatpush1.bf16.msra.mxu0 0
    %3119 = vmatprep.subr.bf16.mxu0 0
    %3120 = vmatpush1.bf16.msra.mxu0 0
    %3121 = vmatprep.mubr.bf16.mxu0 0
    %3122 = vmatmul.mubr.bf16.gmra.mrb[0].mxu0 %v3006
    %v3123 = vpop.f32.mrb[0].mxu0
    %v3124 = vadd.f32 0.0, %v3123
    %v3125 = vpop.f32.mrb[0].mxu0
    %v3126 = vadd.f32 0.0, %v3125
    %v3127 = vpop.f32.mrb[0].mxu0
    %v3128 = vpop.f32.mrb[0].mxu0
    %3129 = vdwg.mxu0
    %3130 = vmatprep.subr.bf16.mxu0 %v849
    %3131 = vmatpush1.bf16.msra.mxu0 %v848
    %3132 = vmatprep.subr.bf16.mxu0 %v857
    %3133 = vmatpush1.bf16.msra.mxu0 %v856
    %3134 = vmatprep.subr.bf16.mxu0 %v865
    %3135 = vmatpush1.bf16.msra.mxu0 %v864
    %3136 = vmatprep.subr.bf16.mxu0 %v873
    %3137 = vmatpush1.bf16.msra.mxu0 %v872
    %3138 = vmatprep.subr.bf16.mxu0 %v881
    %3139 = vmatpush1.bf16.msra.mxu0 %v880
    %3140 = vmatprep.subr.bf16.mxu0 %v889
    %3141 = vmatpush1.bf16.msra.mxu0 %v888
    %3142 = vmatprep.subr.bf16.mxu0 %v897
    %3143 = vmatpush1.bf16.msra.mxu0 %v896
    %3144 = vmatprep.subr.bf16.mxu0 %v905
    %3145 = vmatpush1.bf16.msra.mxu0 %v904
    %3146 = vmatprep.subr.bf16.mxu0 0
    %3147 = vmatpush1.bf16.msra.mxu0 0
    %3148 = vmatprep.subr.bf16.mxu0 0
    %3149 = vmatpush1.bf16.msra.mxu0 0
    %3150 = vmatprep.subr.bf16.mxu0 0
    %3151 = vmatpush1.bf16.msra.mxu0 0
    %3152 = vmatprep.subr.bf16.mxu0 0
    %3153 = vmatpush1.bf16.msra.mxu0 0
    %3154 = vmatprep.subr.bf16.mxu0 0
    %3155 = vmatpush1.bf16.msra.mxu0 0
    %3156 = vmatprep.subr.bf16.mxu0 0
    %3157 = vmatpush1.bf16.msra.mxu0 0
    %3158 = vmatprep.subr.bf16.mxu0 0
    %3159 = vmatpush1.bf16.msra.mxu0 0
    %3160 = vmatprep.subr.bf16.mxu0 0
    %3161 = vmatpush1.bf16.msra.mxu0 0
    %3162 = vmatprep.mubr.bf16.mxu0 0
    %3163 = vmatmul.mubr.bf16.gmra.mrb[0].mxu0 %v3006
    %v3164 = vpop.f32.mrb[0].mxu0
    %v3165 = vadd.f32 0.0, %v3164
    %v3166 = vpop.f32.mrb[0].mxu0
    %v3167 = vadd.f32 0.0, %v3166
    %v3168 = vpop.f32.mrb[0].mxu0
    %v3169 = vpop.f32.mrb[0].mxu0
    %3170 = vdwg.mxu0
    %v3171 = vpack.c.bf16 %v2972, %v2972
    %3172 = vmatprep.subr.bf16.mxu0 %v1231
    %3173 = vmatpush1.bf16.msra.mxu0 %v1230
    %3174 = vmatprep.subr.bf16.mxu0 %v1235
    %3175 = vmatpush1.bf16.msra.mxu0 %v1234
    %3176 = vmatprep.subr.bf16.mxu0 %v1239
    %3177 = vmatpush1.bf16.msra.mxu0 %v1238
    %3178 = vmatprep.subr.bf16.mxu0 %v1243
    %3179 = vmatpush1.bf16.msra.mxu0 %v1242
    %3180 = vmatprep.subr.bf16.mxu0 %v1247
    %3181 = vmatpush1.bf16.msra.mxu0 %v1246
    %3182 = vmatprep.subr.bf16.mxu0 %v1251
    %3183 = vmatpush1.bf16.msra.mxu0 %v1250
    %3184 = vmatprep.subr.bf16.mxu0 %v1255
    %3185 = vmatpush1.bf16.msra.mxu0 %v1254
    %3186 = vmatprep.subr.bf16.mxu0 %v1259
    %3187 = vmatpush1.bf16.msra.mxu0 %v1258
    %3188 = vmatprep.subr.bf16.mxu0 0
    %3189 = vmatpush1.bf16.msra.mxu0 0
    %3190 = vmatprep.subr.bf16.mxu0 0
    %3191 = vmatpush1.bf16.msra.mxu0 0
    %3192 = vmatprep.subr.bf16.mxu0 0
    %3193 = vmatpush1.bf16.msra.mxu0 0
    %3194 = vmatprep.subr.bf16.mxu0 0
    %3195 = vmatpush1.bf16.msra.mxu0 0
    %3196 = vmatprep.subr.bf16.mxu0 0
    %3197 = vmatpush1.bf16.msra.mxu0 0
    %3198 = vmatprep.subr.bf16.mxu0 0
    %3199 = vmatpush1.bf16.msra.mxu0 0
    %3200 = vmatprep.subr.bf16.mxu0 0
    %3201 = vmatpush1.bf16.msra.mxu0 0
    %3202 = vmatprep.subr.bf16.mxu0 0
    %3203 = vmatpush1.bf16.msra.mxu0 0
    %3204 = vmatprep.mubr.bf16.mxu0 0
    %3205 = vmatmul.mubr.bf16.gmra.mrb[0].mxu0 %v3171
    %v3206 = vpop.f32.mrb[0].mxu0
    %v3207 = vadd.f32 0.0, %v3206
    %v3208 = vpop.f32.mrb[0].mxu0
    %v3209 = vadd.f32 0.0, %v3208
    %v3210 = vpop.f32.mrb[0].mxu0
    %v3211 = vpop.f32.mrb[0].mxu0
    %3212 = vdwg.mxu0
    %3213 = vmatprep.subr.bf16.mxu0 %v1233
    %3214 = vmatpush1.bf16.msra.mxu0 %v1232
    %3215 = vmatprep.subr.bf16.mxu0 %v1237
    %3216 = vmatpush1.bf16.msra.mxu0 %v1236
    %3217 = vmatprep.subr.bf16.mxu0 %v1241
    %3218 = vmatpush1.bf16.msra.mxu0 %v1240
    %3219 = vmatprep.subr.bf16.mxu0 %v1245
    %3220 = vmatpush1.bf16.msra.mxu0 %v1244
    %3221 = vmatprep.subr.bf16.mxu0 %v1249
    %3222 = vmatpush1.bf16.msra.mxu0 %v1248
    %3223 = vmatprep.subr.bf16.mxu0 %v1253
    %3224 = vmatpush1.bf16.msra.mxu0 %v1252
    %3225 = vmatprep.subr.bf16.mxu0 %v1257
    %3226 = vmatpush1.bf16.msra.mxu0 %v1256
    %3227 = vmatprep.subr.bf16.mxu0 %v1261
    %3228 = vmatpush1.bf16.msra.mxu0 %v1260
    %3229 = vmatprep.subr.bf16.mxu0 0
    %3230 = vmatpush1.bf16.msra.mxu0 0
    %3231 = vmatprep.subr.bf16.mxu0 0
    %3232 = vmatpush1.bf16.msra.mxu0 0
    %3233 = vmatprep.subr.bf16.mxu0 0
    %3234 = vmatpush1.bf16.msra.mxu0 0
    %3235 = vmatprep.subr.bf16.mxu0 0
    %3236 = vmatpush1.bf16.msra.mxu0 0
    %3237 = vmatprep.subr.bf16.mxu0 0
    %3238 = vmatpush1.bf16.msra.mxu0 0
    %3239 = vmatprep.subr.bf16.mxu0 0
    %3240 = vmatpush1.bf16.msra.mxu0 0
    %3241 = vmatprep.subr.bf16.mxu0 0
    %3242 = vmatpush1.bf16.msra.mxu0 0
    %3243 = vmatprep.subr.bf16.mxu0 0
    %3244 = vmatpush1.bf16.msra.mxu0 0
    %3245 = vmatprep.mubr.bf16.mxu0 0
    %3246 = vmatmul.mubr.bf16.gmra.mrb[0].mxu0 %v3171
    %v3247 = vpop.f32.mrb[0].mxu0
    %v3248 = vadd.f32 0.0, %v3247
    %v3249 = vpop.f32.mrb[0].mxu0
    %v3250 = vadd.f32 0.0, %v3249
    %v3251 = vpop.f32.mrb[0].mxu0
    %v3252 = vpop.f32.mrb[0].mxu0
    %3253 = vdwg.mxu0
    %v3254 = vadd.f32 %v3124, %v3207
    %v3255 = vadd.f32 %v3126, %v3209
    %v3256 = vadd.f32 %v3165, %v3248
    %v3257 = vadd.f32 %v3167, %v3250
    %v3258 = vadd.f32 %v3254, %v508
    %v3259 = vadd.f32 %v3255, %v512
    %v3260 = vadd.f32 %v3256, %v516
    %v3261 = vadd.f32 %v3257, %v520
    %v3262 = vxor.u32 %v3258, 2147483648
    %v3263 = vxor.u32 %v3259, 2147483648
    %v3264 = vxor.u32 %v3260, 2147483648
    %v3265 = vmul.f32 %v3262, 1.442695
    %v3266 = vpow.pop %v3265
    %v3267 = vmul.f32 %v3263, 1.442695
    %v3268 = vpow.pop %v3267
    %v3269 = vmul.f32 %v3264, 1.442695
    %v3270 = vpow.pop %v3269
    %v3271 = vadd.f32 %v3266, 1.0
    %v3272 = vadd.f32 %v3268, 1.0
    %v3273 = vadd.f32 %v3270, 1.0
    %v3274 = vrcp.pop %v3271
    %v3275 = vmul.f32 1.0, %v3274
    %v3276 = vrcp.pop %v3272
    %v3277 = vmul.f32 1.0, %v3276
    %v3278 = vrcp.pop %v3273
    %v3279 = vmul.f32 1.0, %v3278
    %v3280 = vtanh.pop %v3261
    %v3281 = vmul.f32 %v3277, %v2970
    %v3282 = vmul.f32 %v3275, %v3280
    %v3283 = vadd.f32 %v3281, %v3282
    %v3284 = vtanh.pop %v3283
    %v3285 = vmul.f32 %v3279, %v3284
    %s3286 = scalar_lea.vmem [#allocation2], 224
    %v3287 = vld [vmem:[%s3286] sm:$0xff]
    %v3288 = vld [vmem:[%s3286 + $0x8] sm:$0xff]
    %v3289 = vld [vmem:[%s3286 + $0x10] sm:$0xff]
    %v3290 = vld [vmem:[%s3286 + $0x18] sm:$0xff]
    %v3291 = vadd.f32 %v3287, %v3042
    %v3292 = vadd.f32 %v3288, %v3044
    %v3293 = vadd.f32 %v3289, %v3083
    %v3294 = vadd.f32 %v3290, %v3085
    %v3295 = vxor.u32 %v3291, 2147483648
    %v3296 = vxor.u32 %v3292, 2147483648
    %v3297 = vxor.u32 %v3293, 2147483648
    %v3298 = vmul.f32 %v3295, 1.442695
    %v3299 = vpow.pop %v3298
    %v3300 = vmul.f32 %v3296, 1.442695
    %v3301 = vpow.pop %v3300
    %v3302 = vmul.f32 %v3297, 1.442695
    %v3303 = vpow.pop %v3302
    %v3304 = vadd.f32 %v3299, 1.0
    %v3305 = vadd.f32 %v3301, 1.0
    %v3306 = vadd.f32 %v3303, 1.0
    %v3307 = vrcp.pop %v3304
    %v3308 = vmul.f32 1.0, %v3307
    %v3309 = vrcp.pop %v3305
    %v3310 = vmul.f32 1.0, %v3309
    %v3311 = vrcp.pop %v3306
    %v3312 = vmul.f32 1.0, %v3311
    %v3313 = vtanh.pop %v3294
    %v3314 = vmul.f32 %v3310, %v3003
    %v3315 = vmul.f32 %v3308, %v3313
    %v3316 = vadd.f32 %v3314, %v3315
    %v3317 = vtanh.pop %v3316
    %v3318 = vmul.f32 %v3312, %v3317
    %v3319 = vpack.c.bf16 %v3318, %v3318
    %3320 = vmatprep.subr.bf16.mxu0 %v847
    %3321 = vmatpush1.bf16.msra.mxu0 %v846
    %3322 = vmatprep.subr.bf16.mxu0 %v855
    %3323 = vmatpush1.bf16.msra.mxu0 %v854
    %3324 = vmatprep.subr.bf16.mxu0 %v863
    %3325 = vmatpush1.bf16.msra.mxu0 %v862
    %3326 = vmatprep.subr.bf16.mxu0 %v871
    %3327 = vmatpush1.bf16.msra.mxu0 %v870
    %3328 = vmatprep.subr.bf16.mxu0 %v879
    %3329 = vmatpush1.bf16.msra.mxu0 %v878
    %3330 = vmatprep.subr.bf16.mxu0 %v887
    %3331 = vmatpush1.bf16.msra.mxu0 %v886
    %3332 = vmatprep.subr.bf16.mxu0 %v895
    %3333 = vmatpush1.bf16.msra.mxu0 %v894
    %3334 = vmatprep.subr.bf16.mxu0 %v903
    %3335 = vmatpush1.bf16.msra.mxu0 %v902
    %3336 = vmatprep.subr.bf16.mxu0 0
    %3337 = vmatpush1.bf16.msra.mxu0 0
    %3338 = vmatprep.subr.bf16.mxu0 0
    %3339 = vmatpush1.bf16.msra.mxu0 0
    %3340 = vmatprep.subr.bf16.mxu0 0
    %3341 = vmatpush1.bf16.msra.mxu0 0
    %3342 = vmatprep.subr.bf16.mxu0 0
    %3343 = vmatpush1.bf16.msra.mxu0 0
    %3344 = vmatprep.subr.bf16.mxu0 0
    %3345 = vmatpush1.bf16.msra.mxu0 0
    %3346 = vmatprep.subr.bf16.mxu0 0
    %3347 = vmatpush1.bf16.msra.mxu0 0
    %3348 = vmatprep.subr.bf16.mxu0 0
    %3349 = vmatpush1.bf16.msra.mxu0 0
    %3350 = vmatprep.subr.bf16.mxu0 0
    %3351 = vmatpush1.bf16.msra.mxu0 0
    %3352 = vmatprep.mubr.bf16.mxu0 0
    %3353 = vmatmul.mubr.bf16.gmra.mrb[0].mxu0 %v3319
    %v3354 = vpop.f32.mrb[0].mxu0
    %v3355 = vadd.f32 0.0, %v3354
    %v3356 = vpop.f32.mrb[0].mxu0
    %v3357 = vadd.f32 0.0, %v3356
    %v3358 = vpop.f32.mrb[0].mxu0
    %v3359 = vpop.f32.mrb[0].mxu0
    %3360 = vdwg.mxu0
    %3361 = vmatprep.subr.bf16.mxu0 %v849
    %3362 = vmatpush1.bf16.msra.mxu0 %v848
    %3363 = vmatprep.subr.bf16.mxu0 %v857
    %3364 = vmatpush1.bf16.msra.mxu0 %v856
    %3365 = vmatprep.subr.bf16.mxu0 %v865
    %3366 = vmatpush1.bf16.msra.mxu0 %v864
    %3367 = vmatprep.subr.bf16.mxu0 %v873
    %3368 = vmatpush1.bf16.msra.mxu0 %v872
    %3369 = vmatprep.subr.bf16.mxu0 %v881
    %3370 = vmatpush1.bf16.msra.mxu0 %v880
    %3371 = vmatprep.subr.bf16.mxu0 %v889
    %3372 = vmatpush1.bf16.msra.mxu0 %v888
    %3373 = vmatprep.subr.bf16.mxu0 %v897
    %3374 = vmatpush1.bf16.msra.mxu0 %v896
    %3375 = vmatprep.subr.bf16.mxu0 %v905
    %3376 = vmatpush1.bf16.msra.mxu0 %v904
    %3377 = vmatprep.subr.bf16.mxu0 0
    %3378 = vmatpush1.bf16.msra.mxu0 0
    %3379 = vmatprep.subr.bf16.mxu0 0
    %3380 = vmatpush1.bf16.msra.mxu0 0
    %3381 = vmatprep.subr.bf16.mxu0 0
    %3382 = vmatpush1.bf16.msra.mxu0 0
    %3383 = vmatprep.subr.bf16.mxu0 0
    %3384 = vmatpush1.bf16.msra.mxu0 0
    %3385 = vmatprep.subr.bf16.mxu0 0
    %3386 = vmatpush1.bf16.msra.mxu0 0
    %3387 = vmatprep.subr.bf16.mxu0 0
    %3388 = vmatpush1.bf16.msra.mxu0 0
    %3389 = vmatprep.subr.bf16.mxu0 0
    %3390 = vmatpush1.bf16.msra.mxu0 0
    %3391 = vmatprep.subr.bf16.mxu0 0
    %3392 = vmatpush1.bf16.msra.mxu0 0
    %3393 = vmatprep.mubr.bf16.mxu0 0
    %3394 = vmatmul.mubr.bf16.gmra.mrb[0].mxu0 %v3319
    %v3395 = vpop.f32.mrb[0].mxu0
    %v3396 = vadd.f32 0.0, %v3395
    %v3397 = vpop.f32.mrb[0].mxu0
    %v3398 = vadd.f32 0.0, %v3397
    %v3399 = vpop.f32.mrb[0].mxu0
    %v3400 = vpop.f32.mrb[0].mxu0
    %3401 = vdwg.mxu0
    %v3402 = vpack.c.bf16 %v3285, %v3285
    %3403 = vmatprep.subr.bf16.mxu0 %v1231
    %3404 = vmatpush1.bf16.msra.mxu0 %v1230
    %3405 = vmatprep.subr.bf16.mxu0 %v1235
    %3406 = vmatpush1.bf16.msra.mxu0 %v1234
    %3407 = vmatprep.subr.bf16.mxu0 %v1239
    %3408 = vmatpush1.bf16.msra.mxu0 %v1238
    %3409 = vmatprep.subr.bf16.mxu0 %v1243
    %3410 = vmatpush1.bf16.msra.mxu0 %v1242
    %3411 = vmatprep.subr.bf16.mxu0 %v1247
    %3412 = vmatpush1.bf16.msra.mxu0 %v1246
    %3413 = vmatprep.subr.bf16.mxu0 %v1251
    %3414 = vmatpush1.bf16.msra.mxu0 %v1250
    %3415 = vmatprep.subr.bf16.mxu0 %v1255
    %3416 = vmatpush1.bf16.msra.mxu0 %v1254
    %3417 = vmatprep.subr.bf16.mxu0 %v1259
    %3418 = vmatpush1.bf16.msra.mxu0 %v1258
    %3419 = vmatprep.subr.bf16.mxu0 0
    %3420 = vmatpush1.bf16.msra.mxu0 0
    %3421 = vmatprep.subr.bf16.mxu0 0
    %3422 = vmatpush1.bf16.msra.mxu0 0
    %3423 = vmatprep.subr.bf16.mxu0 0
    %3424 = vmatpush1.bf16.msra.mxu0 0
    %3425 = vmatprep.subr.bf16.mxu0 0
    %3426 = vmatpush1.bf16.msra.mxu0 0
    %3427 = vmatprep.subr.bf16.mxu0 0
    %3428 = vmatpush1.bf16.msra.mxu0 0
    %3429 = vmatprep.subr.bf16.mxu0 0
    %3430 = vmatpush1.bf16.msra.mxu0 0
    %3431 = vmatprep.subr.bf16.mxu0 0
    %3432 = vmatpush1.bf16.msra.mxu0 0
    %3433 = vmatprep.subr.bf16.mxu0 0
    %3434 = vmatpush1.bf16.msra.mxu0 0
    %3435 = vmatprep.mubr.bf16.mxu0 0
    %3436 = vmatmul.mubr.bf16.gmra.mrb[0].mxu0 %v3402
    %v3437 = vpop.f32.mrb[0].mxu0
    %v3438 = vadd.f32 0.0, %v3437
    %v3439 = vpop.f32.mrb[0].mxu0
    %v3440 = vadd.f32 0.0, %v3439
    %v3441 = vpop.f32.mrb[0].mxu0
    %v3442 = vpop.f32.mrb[0].mxu0
    %3443 = vdwg.mxu0
    %3444 = vmatprep.subr.bf16.mxu0 %v1233
    %3445 = vmatpush1.bf16.msra.mxu0 %v1232
    %3446 = vmatprep.subr.bf16.mxu0 %v1237
    %3447 = vmatpush1.bf16.msra.mxu0 %v1236
    %3448 = vmatprep.subr.bf16.mxu0 %v1241
    %3449 = vmatpush1.bf16.msra.mxu0 %v1240
    %3450 = vmatprep.subr.bf16.mxu0 %v1245
    %3451 = vmatpush1.bf16.msra.mxu0 %v1244
    %3452 = vmatprep.subr.bf16.mxu0 %v1249
    %3453 = vmatpush1.bf16.msra.mxu0 %v1248
    %3454 = vmatprep.subr.bf16.mxu0 %v1253
    %3455 = vmatpush1.bf16.msra.mxu0 %v1252
    %3456 = vmatprep.subr.bf16.mxu0 %v1257
    %3457 = vmatpush1.bf16.msra.mxu0 %v1256
    %3458 = vmatprep.subr.bf16.mxu0 %v1261
    %3459 = vmatpush1.bf16.msra.mxu0 %v1260
    %3460 = vmatprep.subr.bf16.mxu0 0
    %3461 = vmatpush1.bf16.msra.mxu0 0
    %3462 = vmatprep.subr.bf16.mxu0 0
    %3463 = vmatpush1.bf16.msra.mxu0 0
    %3464 = vmatprep.subr.bf16.mxu0 0
    %3465 = vmatpush1.bf16.msra.mxu0 0
    %3466 = vmatprep.subr.bf16.mxu0 0
    %3467 = vmatpush1.bf16.msra.mxu0 0
    %3468 = vmatprep.subr.bf16.mxu0 0
    %3469 = vmatpush1.bf16.msra.mxu0 0
    %3470 = vmatprep.subr.bf16.mxu0 0
    %3471 = vmatpush1.bf16.msra.mxu0 0
    %3472 = vmatprep.subr.bf16.mxu0 0
    %3473 = vmatpush1.bf16.msra.mxu0 0
    %3474 = vmatprep.subr.bf16.mxu0 0
    %3475 = vmatpush1.bf16.msra.mxu0 0
    %3476 = vmatprep.mubr.bf16.mxu0 0
    %3477 = vmatmul.mubr.bf16.gmra.mrb[0].mxu0 %v3402
    %v3478 = vpop.f32.mrb[0].mxu0
    %v3479 = vadd.f32 0.0, %v3478
    %v3480 = vpop.f32.mrb[0].mxu0
    %v3481 = vadd.f32 0.0, %v3480
    %v3482 = vpop.f32.mrb[0].mxu0
    %v3483 = vpop.f32.mrb[0].mxu0
    %3484 = vdwg.mxu0
    %v3485 = vadd.f32 %v3355, %v3438
    %v3486 = vadd.f32 %v3357, %v3440
    %v3487 = vadd.f32 %v3396, %v3479
    %v3488 = vadd.f32 %v3398, %v3481
    %v3489 = vadd.f32 %v3485, %v508
    %v3490 = vadd.f32 %v3486, %v512
    %v3491 = vadd.f32 %v3487, %v516
    %v3492 = vadd.f32 %v3488, %v520
    %v3493 = vxor.u32 %v3489, 2147483648
    %v3494 = vxor.u32 %v3490, 2147483648
    %v3495 = vxor.u32 %v3491, 2147483648
    %v3496 = vmul.f32 %v3493, 1.442695
    %v3497 = vpow.pop %v3496
    %v3498 = vmul.f32 %v3494, 1.442695
    %v3499 = vpow.pop %v3498
    %v3500 = vmul.f32 %v3495, 1.442695
    %v3501 = vpow.pop %v3500
    %v3502 = vadd.f32 %v3497, 1.0
    %v3503 = vadd.f32 %v3499, 1.0
    %v3504 = vadd.f32 %v3501, 1.0
    %v3505 = vrcp.pop %v3502
    %v3506 = vmul.f32 1.0, %v3505
    %v3507 = vrcp.pop %v3503
    %v3508 = vmul.f32 1.0, %v3507
    %v3509 = vrcp.pop %v3504
    %v3510 = vmul.f32 1.0, %v3509
    %v3511 = vtanh.pop %v3492
    %v3512 = vmul.f32 %v3508, %v3283
    %v3513 = vmul.f32 %v3506, %v3511
    %v3514 = vadd.f32 %v3512, %v3513
    %v3515 = vtanh.pop %v3514
    %v3516 = vmul.f32 %v3510, %v3515
    %v3517 = vpack.c.bf16 %v3516, %v3516
    %v3518 = vld [vmem:[#allocation11] sm:$0xf]
    %v3519 = vld [vmem:[#allocation11 + $0x4] sm:$0xf]
    %v3520 = vld [vmem:[#allocation11 + $0x8] sm:$0xf]
    %v3521 = vld [vmem:[#allocation11 + $0xc] sm:$0xf]
    %v3522 = vld [vmem:[#allocation11 + $0x10] sm:$0xf]
    %v3523 = vld [vmem:[#allocation11 + $0x14] sm:$0xf]
    %v3524 = vld [vmem:[#allocation11 + $0x18] sm:$0xf]
    %v3525 = vld [vmem:[#allocation11 + $0x1c] sm:$0xf]
    %v3526 = vld [vmem:[#allocation11 + $0x20] sm:$0xf]
    %v3527 = vld [vmem:[#allocation11 + $0x24] sm:$0xf]
    %v3528 = vld [vmem:[#allocation11 + $0x28] sm:$0xf]
    %v3529 = vld [vmem:[#allocation11 + $0x2c] sm:$0xf]
    %v3530 = vld [vmem:[#allocation11 + $0x30] sm:$0xf]
    %v3531 = vld [vmem:[#allocation11 + $0x34] sm:$0xf]
    %v3532 = vld [vmem:[#allocation11 + $0x38] sm:$0xf]
    %v3533 = vld [vmem:[#allocation11 + $0x3c] sm:$0xf]
    %v3534 = vld [vmem:[%s7] sm:$0x1]
    %v3536 = vlaneseq
    %v3537 = vshrl.u32 %v3536, 7
    %v3538 = vsub.s32 0, %v3537
    %v3539 = vrot.slane %v3534, %v3538
    %v3557 = vunpack.c.l.b16 %v3518
    %v3558 = vunpack.c.l.b16 %v3519
    %v3559 = vunpack.c.l.b16 %v3520
    %v3560 = vunpack.c.l.b16 %v3521
    %v3561 = vunpack.c.l.b16 %v3522
    %v3562 = vunpack.c.l.b16 %v3523
    %v3563 = vunpack.c.l.b16 %v3524
    %v3564 = vunpack.c.l.b16 %v3525
    %v3565 = vunpack.c.l.b16 %v3526
    %v3566 = vunpack.c.l.b16 %v3527
    %v3567 = vunpack.c.l.b16 %v3528
    %v3568 = vunpack.c.l.b16 %v3529
    %v3569 = vunpack.c.l.b16 %v3530
    %v3570 = vunpack.c.l.b16 %v3531
    %v3571 = vunpack.c.l.b16 %v3532
    %v3572 = vunpack.c.l.b16 %v3533
    %v3573 = vpack.c.b16 %v3558, %v3557
    %v3574 = vpack.c.b16 %v3560, %v3559
    %v3575 = vpack.c.b16 %v3562, %v3561
    %v3576 = vpack.c.b16 %v3564, %v3563
    %v3577 = vpack.c.b16 %v3566, %v3565
    %v3578 = vpack.c.b16 %v3568, %v3567
    %v3579 = vpack.c.b16 %v3570, %v3569
    %v3580 = vpack.c.b16 %v3572, %v3571
    %3589 = vmatprep.subr.bf16.mxu0 0
    %3590 = vmatpush1.bf16.msra.mxu0 %v3573
    %3591 = vmatprep.subr.bf16.mxu0 0
    %3592 = vmatpush1.bf16.msra.mxu0 %v3574
    %3593 = vmatprep.subr.bf16.mxu0 0
    %3594 = vmatpush1.bf16.msra.mxu0 %v3575
    %3595 = vmatprep.subr.bf16.mxu0 0
    %3596 = vmatpush1.bf16.msra.mxu0 %v3576
    %3597 = vmatprep.subr.bf16.mxu0 0
    %3598 = vmatpush1.bf16.msra.mxu0 %v3577
    %3599 = vmatprep.subr.bf16.mxu0 0
    %3600 = vmatpush1.bf16.msra.mxu0 %v3578
    %3601 = vmatprep.subr.bf16.mxu0 0
    %3602 = vmatpush1.bf16.msra.mxu0 %v3579
    %3603 = vmatprep.subr.bf16.mxu0 0
    %3604 = vmatpush1.bf16.msra.mxu0 %v3580
    %3605 = vmatprep.subr.bf16.mxu0 0
    %3606 = vmatpush1.bf16.msra.mxu0 0
    %3607 = vmatprep.subr.bf16.mxu0 0
    %3608 = vmatpush1.bf16.msra.mxu0 0
    %3609 = vmatprep.subr.bf16.mxu0 0
    %3610 = vmatpush1.bf16.msra.mxu0 0
    %3611 = vmatprep.subr.bf16.mxu0 0
    %3612 = vmatpush1.bf16.msra.mxu0 0
    %3613 = vmatprep.subr.bf16.mxu0 0
    %3614 = vmatpush1.bf16.msra.mxu0 0
    %3615 = vmatprep.subr.bf16.mxu0 0
    %3616 = vmatpush1.bf16.msra.mxu0 0
    %3617 = vmatprep.subr.bf16.mxu0 0
    %3618 = vmatpush1.bf16.msra.mxu0 0
    %3619 = vmatprep.subr.bf16.mxu0 0
    %3620 = vmatpush1.bf16.msra.mxu0 0
    %3621 = vmatprep.mubr.bf16.mxu0 0
    %3622 = vmatmul.mubr.bf16.gmra.mrb[0].mxu0 %v3517
    %v3623 = vpop.f32.mrb[0].mxu0
    %v3624 = vadd.f32 %v3539, %v3623
    %v3625 = vpop.f32.mrb[0].mxu0
    %v3626 = vpop.f32.mrb[0].mxu0
    %v3627 = vpop.f32.mrb[0].mxu0
    %3628 = vdwg.mxu0
    %3629 = vst [vmem:[#allocation12] sm:$0xff] %v3624
    // Predicated region
    $region54: #{tpu_custom_call.1} parent=1 // pred_check
      _
    $region55: #{tpu_custom_call.1} parent=1 // pred_check_branch
      %3631 = sbr.rel (0) target = $region57
    $region56: #{tpu_custom_call.1} parent=1 // pred_region
      %s3633 = ssub.s32 128, 128
      %3634 = vsyncadd [#allocation5], %s3633
      %s3636 = sshll.u32 [#allocation12], 4
      %s3637 = int_to_ptr.vmem [resolvable:$true] %s3636
      %3639 = dma.vmem_to_hbm [thread:$0]  %s3637, 128, %s8, [#allocation5]
    $region57: #{tpu_custom_call.1} parent=1 // pred_fallthru
      _
    // Predicated region
    $region58: #{tpu_custom_call.1} parent=1 // pred_check
      _
    $region59: #{tpu_custom_call.1} parent=1 // pred_check_branch
      %3641 = sbr.rel (0) target = $region61
    $region60: #{tpu_custom_call.1} parent=1 // pred_region
      %3642 = dma.done [#allocation5], 128
    $region61: #{tpu_custom_call.1} parent=1 // pred_fallthru
      _
    %3643 = vsyncpa [#allocation4], 1
    %3644 = vsyncpa [#allocation7], 1
    %3645 = vsyncpa [#allocation10], 1
    %3646 = vsyncpa [#allocation5], 1

</llo_original>
